<compile_context>
chip_gen: v7x
topology: tpu7x:2x2x1
jax: 0.10.0
libtpu: 0.0.40
codegen_flags: <defaults>
</compile_context>

<pallas_src>
import functools

import jax
import jax.numpy as jnp
from jax.experimental import pallas as pl
from jax.experimental.pallas import tpu as pltpu


# ----------------------------- kernel helpers -------------------------------


def _ln(x, g, b, eps):
    """LayerNorm over the last axis in f32 (biased variance, like torch LN)."""
    mean = jnp.mean(x, axis=-1, keepdims=True)
    xc = x - mean
    var = jnp.mean(xc * xc, axis=-1, keepdims=True)
    return xc * jax.lax.rsqrt(var + eps) * g + b


# --------------------------- fused whole-model kernel ------------------------


def _vit_kernel(patches_ref, pw_ref, pb_ref, clspos_ref, pospatch_ref, mask_ref,
                ln1g_ref, ln1b_ref, qkvw_ref, qkvb_ref, projw_ref, projb_ref,
                ln2g_ref, ln2b_ref, fc1w_ref, fc1b_ref, fc2w_ref, fc2b_ref,
                ng_ref, nb_ref, hw_ref, hb_ref,
                o_ref, x_scr, attn_scr,
                *, B, T_pad, n_patches, depth, heads, hd, scale, eps):
    f32, bf16 = jnp.float32, jnp.bfloat16
    D = heads * hd
    T = n_patches + 1

    # ---- patch embedding: (B*n_patches, C*p*p) @ (C*p*p, D) + b ----
    pe = jnp.dot(patches_ref[...], pw_ref[...],
                 preferred_element_type=f32) + pb_ref[...]

    # ---- assemble residual stream (B*T_pad, D): [cls | patches | zero pad] ---
    x_scr[...] = jnp.zeros_like(x_scr)
    for b in range(B):                              # static, B=2
        base = b * T_pad
        x_scr[base:base + 1, :] = clspos_ref[...]               # cls + pos[0]
        x_scr[base + 1:base + T, :] = (
            pe[b * n_patches:(b + 1) * n_patches, :] + pospatch_ref[...])
    x = x_scr[...]                                  # (BT, D) f32 residual

    mask = mask_ref[...]                            # (BT, BT) additive 0 / -1e30

    # ---- transformer blocks (static depth loop, stacked weights) ----
    for d in range(depth):
        # LN1 + fused QKV projection (bf16 MXU operands, f32 accumulation)
        xn = _ln(x, ln1g_ref[d], ln1b_ref[d], eps)
        qkv = jnp.dot(xn.astype(bf16), qkvw_ref[d],
                      preferred_element_type=f32) + qkvb_ref[d]   # (BT, 3D)
        q_all = qkv[:, 0:D] * scale                 # scale q (BT*D), not scores
        k_all = qkv[:, D:2 * D]
        v_all = qkv[:, 2 * D:3 * D]

        # attention: one (BT, BT) score matmul per head; cross-batch and padded
        # keys are removed by the hoisted additive mask
        for h in range(heads):                      # static, heads=4
            q = q_all[:, h * hd:(h + 1) * hd].astype(bf16)
            k = k_all[:, h * hd:(h + 1) * hd].astype(bf16)
            v = v_all[:, h * hd:(h + 1) * hd].astype(bf16)
            s = jax.lax.dot_general(q, k, (((1,), (1,)), ((), ())),
                                    preferred_element_type=f32)   # (BT, BT)
            s = s + mask
            s = s - jnp.max(s, axis=-1, keepdims=True)
            p = jnp.exp(s)
            p = p * pl.reciprocal(jnp.sum(p, axis=-1, keepdims=True),
                                  approx=True)
            attn_scr[:, h * hd:(h + 1) * hd] = jnp.dot(
                p.astype(bf16), v, preferred_element_type=f32)
        attn = attn_scr[...]                        # (BT, D), lane-dense

        o = jnp.dot(attn.astype(bf16), projw_ref[d],
                    preferred_element_type=f32) + projb_ref[d]
        x = x + o                                   # residual 1

        # LN2 + MLP
        xn2 = _ln(x, ln2g_ref[d], ln2b_ref[d], eps)
        h1 = jnp.dot(xn2.astype(bf16), fc1w_ref[d],
                     preferred_element_type=f32) + fc1b_ref[d]
        # TODO(synk): timm's nn.GELU defaults to exact erf GELU; using the tanh
        # approximation here for Mosaic-safe EUP lowering inside the kernel.
        h1 = jax.nn.gelu(h1, approximate=True)
        h2 = jnp.dot(h1.astype(bf16), fc2w_ref[d],
                     preferred_element_type=f32) + fc2b_ref[d]
        x = x + h2                                  # residual 2

    # ---- final LN + classifier head; keep only the cls row per batch ----
    xn = _ln(x, ng_ref[...], nb_ref[...], eps)
    logits_all = jnp.dot(xn.astype(bf16), hw_ref[...],
                         preferred_element_type=f32) + hb_ref[...]   # (BT, nc)
    for b in range(B):
        o_ref[b:b + 1, :] = logits_all[b * T_pad:b * T_pad + 1, :].astype(
            o_ref.dtype)


# ------------------------------ parameters ----------------------------------


def init_params(key, cfg):
    """Weights pre-cast to bf16 once here (MXU operands); stats params stay f32."""
    D = cfg["dim"]
    C = cfg["in_chans"]
    p = cfg["patch"]
    n_patches = (cfg["img"] // p) ** 2
    T = n_patches + 1
    mlp = D * cfg["mlp_ratio"]
    depth = cfg["depth"]
    nc = cfg["num_classes"]
    bf16 = jnp.bfloat16

    keys = jax.random.split(key, 4 + depth)
    blk_keys = [jax.random.split(keys[4 + i], 4) for i in range(depth)]

    def w(k, shape, std=0.02):
        return std * jax.random.normal(k, shape, jnp.float32)

    def stack(fn):
        return jnp.stack([fn(i) for i in range(depth)], axis=0)

    blocks = {
        "ln1_g": jnp.ones((depth, 1, D), jnp.float32),
        "ln1_b": jnp.zeros((depth, 1, D), jnp.float32),
        "qkv_w": stack(lambda i: w(blk_keys[i][0], (D, 3 * D))).astype(bf16),
        "qkv_b": jnp.zeros((depth, 1, 3 * D), jnp.float32),
        "proj_w": stack(lambda i: w(blk_keys[i][1], (D, D))).astype(bf16),
        "proj_b": jnp.zeros((depth, 1, D), jnp.float32),
        "ln2_g": jnp.ones((depth, 1, D), jnp.float32),
        "ln2_b": jnp.zeros((depth, 1, D), jnp.float32),
        "fc1_w": stack(lambda i: w(blk_keys[i][2], (D, mlp))).astype(bf16),
        "fc1_b": jnp.zeros((depth, 1, mlp), jnp.float32),
        "fc2_w": stack(lambda i: w(blk_keys[i][3], (mlp, D))).astype(bf16),
        "fc2_b": jnp.zeros((depth, 1, D), jnp.float32),
    }

    return {
        "patch_w": w(keys[0], (C * p * p, D)).astype(bf16),   # (D,C,p,p) flat^T
        "patch_b": jnp.zeros((1, D), jnp.float32),
        "cls_token": w(keys[1], (1, D)),
        "pos_embed": w(keys[2], (T, D)),
        "norm_g": jnp.ones((1, D), jnp.float32),
        "norm_b": jnp.zeros((1, D), jnp.float32),
        "head_w": w(keys[3], (D, nc)).astype(bf16),
        "head_b": jnp.zeros((1, nc), jnp.float32),
        "blocks": blocks,
    }


# -------------------------------- forward -----------------------------------


def _full_spec(arr):
    idx = (0,) * arr.ndim
    return pl.BlockSpec(arr.shape, lambda idx=idx: idx)


def vit_forward(params, x, cfg):
    B, C, H, W = x.shape
    p = cfg["patch"]
    D = cfg["dim"]
    heads = cfg["heads"]
    hd = D // heads
    scale = hd ** -0.5
    eps = cfg["eps"]
    gh, gw = H // p, W // p
    n_patches = gh * gw
    T = n_patches + 1
    T_pad = ((T + 7) // 8) * 8                       # sublane-friendly tokens
    BT = B * T_pad
    depth = cfg["depth"]
    nc = cfg["num_classes"]

    # --- JAX glue: NCHW -> patch rows, flattened in (C, p, p) order ---
    patches = x.reshape(B, C, gh, p, gw, p)
    patches = patches.transpose(0, 2, 4, 1, 3, 5).reshape(B * n_patches,
                                                          C * p * p)
    patches = patches.astype(jnp.bfloat16)

    cls_pos0 = params["cls_token"] + params["pos_embed"][0:1, :]   # (1, D)
    pos_patch = params["pos_embed"][1:T, :]                        # (np, D)

    # additive attention mask: same-batch AND valid (non-padded) key tokens
    rows = jnp.arange(BT)
    cols = jnp.arange(BT)
    same_batch = (rows[:, None] // T_pad) == (cols[None, :] // T_pad)
    valid_key = (cols[None, :] % T_pad) < T
    attn_mask = jnp.where(same_batch & valid_key, 0.0, -1e30).astype(jnp.float32)

    blk = params["blocks"]
    args = (patches, params["patch_w"], params["patch_b"],
            cls_pos0, pos_patch, attn_mask,
            blk["ln1_g"], blk["ln1_b"], blk["qkv_w"], blk["qkv_b"],
            blk["proj_w"], blk["proj_b"], blk["ln2_g"], blk["ln2_b"],
            blk["fc1_w"], blk["fc1_b"], blk["fc2_w"], blk["fc2_b"],
            params["norm_g"], params["norm_b"],
            params["head_w"], params["head_b"])

    kernel = functools.partial(
        _vit_kernel, B=B, T_pad=T_pad, n_patches=n_patches, depth=depth,
        heads=heads, hd=hd, scale=scale, eps=eps)

    # Single fused pallas_call: everything stays VMEM-resident.
    # head = Dropout(p=0.3) [identity at inference] -> Linear(D, num_classes).
    return pl.pallas_call(
        kernel,
        out_shape=jax.ShapeDtypeStruct((B, nc), jnp.float32),
        in_specs=[_full_spec(a) for a in args],
        out_specs=pl.BlockSpec((B, nc), lambda: (0, 0)),
        scratch_shapes=[pltpu.VMEM((BT, D), jnp.float32),   # residual assembly
                        pltpu.VMEM((BT, D), jnp.float32)],  # attention output
    )(*args)


# ---------------------------------- main -------------------------------------


if __name__ == "__main__":
    cfg = dict(img=32, patch=8, in_chans=3, dim=64, depth=2, heads=4,
               mlp_ratio=4, num_classes=8, eps=1e-6)
    key = jax.random.PRNGKey(0)
    pkey, xkey = jax.random.split(key)
    params = init_params(pkey, cfg)
    x = jax.random.normal(xkey, (2, cfg["in_chans"], cfg["img"], cfg["img"]),
                          jnp.float32)

    fwd = jax.jit(functools.partial(vit_forward, cfg=cfg))
    logits = fwd(params, x)
    jax.block_until_ready(logits)
    assert logits.shape == (2, cfg["num_classes"]), logits.shape
    print("KERNEL_OK")
</pallas_src>

<mosaic_0001>
module attributes {stable_mosaic.version = 11 : i64} {
  func.func @_vit_kernel(%arg0: memref<32x192xbf16, #tpu.memory_space<vmem>>, %arg1: memref<192x64xbf16, #tpu.memory_space<vmem>>, %arg2: memref<1x64xf32, #tpu.memory_space<vmem>>, %arg3: memref<1x64xf32, #tpu.memory_space<vmem>>, %arg4: memref<16x64xf32, #tpu.memory_space<vmem>>, %arg5: memref<48x48xf32, #tpu.memory_space<vmem>>, %arg6: memref<2x1x64xf32, #tpu.memory_space<vmem>>, %arg7: memref<2x1x64xf32, #tpu.memory_space<vmem>>, %arg8: memref<2x64x192xbf16, #tpu.memory_space<vmem>>, %arg9: memref<2x1x192xf32, #tpu.memory_space<vmem>>, %arg10: memref<2x64x64xbf16, #tpu.memory_space<vmem>>, %arg11: memref<2x1x64xf32, #tpu.memory_space<vmem>>, %arg12: memref<2x1x64xf32, #tpu.memory_space<vmem>>, %arg13: memref<2x1x64xf32, #tpu.memory_space<vmem>>, %arg14: memref<2x64x256xbf16, #tpu.memory_space<vmem>>, %arg15: memref<2x1x256xf32, #tpu.memory_space<vmem>>, %arg16: memref<2x256x64xbf16, #tpu.memory_space<vmem>>, %arg17: memref<2x1x64xf32, #tpu.memory_space<vmem>>, %arg18: memref<1x64xf32, #tpu.memory_space<vmem>>, %arg19: memref<1x64xf32, #tpu.memory_space<vmem>>, %arg20: memref<64x8xbf16, #tpu.memory_space<vmem>>, %arg21: memref<1x8xf32, #tpu.memory_space<vmem>>, %arg22: memref<2x8xf32, #tpu.memory_space<vmem>>, %arg23: memref<48x64xf32, #tpu.memory_space<vmem>>, %arg24: memref<48x64xf32, #tpu.memory_space<vmem>>) attributes {dimension_semantics = [], scalar_prefetch = 0 : i64, scratch_operands = 2 : i64, tpu.core_type = #tpu.core_type<tc>} {
    %c0 = arith.constant 0 : index
    %c0_0 = arith.constant 0 : index
    %0 = vector.load %arg0[%c0, %c0_0] : memref<32x192xbf16, #tpu.memory_space<vmem>>, vector<32x192xbf16>
    %c0_1 = arith.constant 0 : index
    %c0_2 = arith.constant 0 : index
    %1 = vector.load %arg1[%c0_1, %c0_2] : memref<192x64xbf16, #tpu.memory_space<vmem>>, vector<192x64xbf16>
    %cst = arith.constant dense<0.000000e+00> : vector<32x64xf32>
    %2 = tpu.matmul %0, %1, %cst {dimension_numbers = #tpu.dot_dimension_numbers<[1], [0], [0], [1], [0, 0, 1, 1], [], []>} : vector<32x192xbf16>, vector<192x64xbf16>, vector<32x64xf32> -> vector<32x64xf32>
    %c0_3 = arith.constant 0 : index
    %c0_4 = arith.constant 0 : index
    %3 = vector.load %arg2[%c0_3, %c0_4] : memref<1x64xf32, #tpu.memory_space<vmem>>, vector<1x64xf32>
    %4 = vector.broadcast %3 : vector<1x64xf32> to vector<32x64xf32>
    %5 = arith.addf %2, %4 : vector<32x64xf32>
    %cst_5 = arith.constant 0.000000e+00 : f32
    %6 = vector.broadcast %cst_5 : f32 to vector<48x64xf32>
    %c0_6 = arith.constant 0 : index
    %c0_7 = arith.constant 0 : index
    %7 = vector.load %arg23[%c0_6, %c0_7] : memref<48x64xf32, #tpu.memory_space<vmem>>, vector<48x64xf32>
    tpu.vector_store %arg23[%c0_6, %c0_7], %6 {strides = array<i32>} : memref<48x64xf32, #tpu.memory_space<vmem>>, vector<48x64xf32>,
    %c0_8 = arith.constant 0 : index
    %c0_9 = arith.constant 0 : index
    %8 = vector.load %arg3[%c0_8, %c0_9] : memref<1x64xf32, #tpu.memory_space<vmem>>, vector<1x64xf32>
    %c0_10 = arith.constant 0 : index
    %c0_11 = arith.constant 0 : index
    %9 = vector.load %arg23[%c0_10, %c0_11] : memref<48x64xf32, #tpu.memory_space<vmem>>, vector<1x64xf32>
    tpu.vector_store %arg23[%c0_10, %c0_11], %8 {strides = array<i32>} : memref<48x64xf32, #tpu.memory_space<vmem>>, vector<1x64xf32>,
    %10 = vector.extract_strided_slice %5 {offsets = [0, 0], sizes = [16, 64], strides = [1, 1]} : vector<32x64xf32> to vector<16x64xf32>
    %c0_12 = arith.constant 0 : index
    %c0_13 = arith.constant 0 : index
    %11 = vector.load %arg4[%c0_12, %c0_13] : memref<16x64xf32, #tpu.memory_space<vmem>>, vector<16x64xf32>
    %12 = arith.addf %10, %11 : vector<16x64xf32>
    %c1 = arith.constant 1 : index
    %c0_14 = arith.constant 0 : index
    %13 = vector.load %arg23[%c1, %c0_14] : memref<48x64xf32, #tpu.memory_space<vmem>>, vector<16x64xf32>
    tpu.vector_store %arg23[%c1, %c0_14], %12 {strides = array<i32>} : memref<48x64xf32, #tpu.memory_space<vmem>>, vector<16x64xf32>,
    %c0_15 = arith.constant 0 : index
    %c0_16 = arith.constant 0 : index
    %14 = vector.load %arg3[%c0_15, %c0_16] : memref<1x64xf32, #tpu.memory_space<vmem>>, vector<1x64xf32>
    %c24 = arith.constant 24 : index
    %c0_17 = arith.constant 0 : index
    %15 = vector.load %arg23[%c24, %c0_17] : memref<48x64xf32, #tpu.memory_space<vmem>>, vector<1x64xf32>
    tpu.vector_store %arg23[%c24, %c0_17], %14 {strides = array<i32>} : memref<48x64xf32, #tpu.memory_space<vmem>>, vector<1x64xf32>,
    %16 = vector.extract_strided_slice %5 {offsets = [16, 0], sizes = [16, 64], strides = [1, 1]} : vector<32x64xf32> to vector<16x64xf32>
    %c0_18 = arith.constant 0 : index
    %c0_19 = arith.constant 0 : index
    %17 = vector.load %arg4[%c0_18, %c0_19] : memref<16x64xf32, #tpu.memory_space<vmem>>, vector<16x64xf32>
    %18 = arith.addf %16, %17 : vector<16x64xf32>
    %c25 = arith.constant 25 : index
    %c0_20 = arith.constant 0 : index
    %19 = vector.load %arg23[%c25, %c0_20] : memref<48x64xf32, #tpu.memory_space<vmem>>, vector<16x64xf32>
    tpu.vector_store %arg23[%c25, %c0_20], %18 {strides = array<i32>} : memref<48x64xf32, #tpu.memory_space<vmem>>, vector<16x64xf32>,
    %c0_21 = arith.constant 0 : index
    %c0_22 = arith.constant 0 : index
    %20 = vector.load %arg23[%c0_21, %c0_22] : memref<48x64xf32, #tpu.memory_space<vmem>>, vector<48x64xf32>
    %c0_23 = arith.constant 0 : index
    %c0_24 = arith.constant 0 : index
    %21 = vector.load %arg5[%c0_23, %c0_24] : memref<48x48xf32, #tpu.memory_space<vmem>>, vector<48x48xf32>
    %c0_25 = arith.constant 0 : index
    %c0_26 = arith.constant 0 : index
    %c0_27 = arith.constant 0 : index
    %22 = vector.load %arg6[%c0_25, %c0_26, %c0_27] : memref<2x1x64xf32, #tpu.memory_space<vmem>>, vector<1x1x64xf32>
    %23 = vector.shape_cast %22 : vector<1x1x64xf32> to vector<1x64xf32>
    %c0_28 = arith.constant 0 : index
    %c0_29 = arith.constant 0 : index
    %c0_30 = arith.constant 0 : index
    %24 = vector.load %arg7[%c0_28, %c0_29, %c0_30] : memref<2x1x64xf32, #tpu.memory_space<vmem>>, vector<1x1x64xf32>
    %25 = vector.shape_cast %24 : vector<1x1x64xf32> to vector<1x64xf32>
    %cst_31 = arith.constant dense<0.000000e+00> : vector<48xf32>
    %26 = vector.multi_reduction <add>, %20, %cst_31 [1] : vector<48x64xf32> to vector<48xf32>
    %27 = vector.shape_cast %26 : vector<48xf32> to vector<48x1xf32>
    %cst_32 = arith.constant 6.400000e+01 : f32
    %28 = vector.broadcast %cst_32 : f32 to vector<48x1xf32>
    %29 = arith.divf %27, %28 : vector<48x1xf32>
    %30 = vector.broadcast %29 : vector<48x1xf32> to vector<48x64xf32>
    %31 = arith.subf %20, %30 : vector<48x64xf32>
    %32 = arith.mulf %31, %31 : vector<48x64xf32>
    %cst_33 = arith.constant dense<0.000000e+00> : vector<48xf32>
    %33 = vector.multi_reduction <add>, %32, %cst_33 [1] : vector<48x64xf32> to vector<48xf32>
    %34 = vector.shape_cast %33 : vector<48xf32> to vector<48x1xf32>
    %cst_34 = arith.constant 6.400000e+01 : f32
    %35 = vector.broadcast %cst_34 : f32 to vector<48x1xf32>
    %36 = arith.divf %34, %35 : vector<48x1xf32>
    %cst_35 = arith.constant 9.99999997E-7 : f32
    %37 = vector.broadcast %cst_35 : f32 to vector<48x1xf32>
    %38 = arith.addf %36, %37 : vector<48x1xf32>
    %39 = math.rsqrt %38 : vector<48x1xf32>
    %40 = vector.broadcast %39 : vector<48x1xf32> to vector<48x64xf32>
    %41 = arith.mulf %31, %40 : vector<48x64xf32>
    %42 = vector.broadcast %23 : vector<1x64xf32> to vector<48x64xf32>
    %43 = arith.mulf %41, %42 : vector<48x64xf32>
    %44 = vector.broadcast %25 : vector<1x64xf32> to vector<48x64xf32>
    %45 = arith.addf %43, %44 : vector<48x64xf32>
    %46 = arith.truncf %45 : vector<48x64xf32> to vector<48x64xbf16>
    %c0_36 = arith.constant 0 : index
    %c0_37 = arith.constant 0 : index
    %c0_38 = arith.constant 0 : index
    %47 = vector.load %arg8[%c0_36, %c0_37, %c0_38] : memref<2x64x192xbf16, #tpu.memory_space<vmem>>, vector<1x64x192xbf16>
    %48 = vector.shape_cast %47 : vector<1x64x192xbf16> to vector<64x192xbf16>
    %cst_39 = arith.constant dense<0.000000e+00> : vector<48x192xf32>
    %49 = tpu.matmul %46, %48, %cst_39 {dimension_numbers = #tpu.dot_dimension_numbers<[1], [0], [0], [1], [0, 0, 1, 1], [], []>} : vector<48x64xbf16>, vector<64x192xbf16>, vector<48x192xf32> -> vector<48x192xf32>
    %c0_40 = arith.constant 0 : index
    %c0_41 = arith.constant 0 : index
    %c0_42 = arith.constant 0 : index
    %50 = vector.load %arg9[%c0_40, %c0_41, %c0_42] : memref<2x1x192xf32, #tpu.memory_space<vmem>>, vector<1x1x192xf32>
    %51 = vector.shape_cast %50 : vector<1x1x192xf32> to vector<1x192xf32>
    %52 = vector.broadcast %51 : vector<1x192xf32> to vector<48x192xf32>
    %53 = arith.addf %49, %52 : vector<48x192xf32>
    %54 = vector.extract_strided_slice %53 {offsets = [0, 0], sizes = [48, 64], strides = [1, 1]} : vector<48x192xf32> to vector<48x64xf32>
    %cst_43 = arith.constant 2.500000e-01 : f32
    %55 = vector.broadcast %cst_43 : f32 to vector<48x64xf32>
    %56 = arith.mulf %54, %55 : vector<48x64xf32>
    %57 = vector.extract_strided_slice %53 {offsets = [0, 64], sizes = [48, 64], strides = [1, 1]} : vector<48x192xf32> to vector<48x64xf32>
    %58 = vector.extract_strided_slice %53 {offsets = [0, 128], sizes = [48, 64], strides = [1, 1]} : vector<48x192xf32> to vector<48x64xf32>
    %59 = vector.extract_strided_slice %56 {offsets = [0, 0], sizes = [48, 16], strides = [1, 1]} : vector<48x64xf32> to vector<48x16xf32>
    %60 = arith.truncf %59 : vector<48x16xf32> to vector<48x16xbf16>
    %61 = vector.extract_strided_slice %57 {offsets = [0, 0], sizes = [48, 16], strides = [1, 1]} : vector<48x64xf32> to vector<48x16xf32>
    %62 = arith.truncf %61 : vector<48x16xf32> to vector<48x16xbf16>
    %63 = vector.extract_strided_slice %58 {offsets = [0, 0], sizes = [48, 16], strides = [1, 1]} : vector<48x64xf32> to vector<48x16xf32>
    %64 = arith.truncf %63 : vector<48x16xf32> to vector<48x16xbf16>
    %cst_44 = arith.constant dense<0.000000e+00> : vector<48x48xf32>
    %65 = tpu.matmul %60, %62, %cst_44 {dimension_numbers = #tpu.dot_dimension_numbers<[1], [1], [0], [0], [0, 0, 1, 0], [], []>} : vector<48x16xbf16>, vector<48x16xbf16>, vector<48x48xf32> -> vector<48x48xf32>
    %66 = arith.addf %65, %21 : vector<48x48xf32>
    %cst_45 = arith.constant dense<0xFF800000> : vector<48xf32>
    %67 = vector.multi_reduction <maximumf>, %66, %cst_45 [1] : vector<48x48xf32> to vector<48xf32>
    %68 = vector.shape_cast %67 : vector<48xf32> to vector<48x1xf32>
    %69 = vector.broadcast %68 : vector<48x1xf32> to vector<48x48xf32>
    %70 = arith.subf %66, %69 : vector<48x48xf32>
    %71 = math.exp %70 : vector<48x48xf32>
    %cst_46 = arith.constant dense<0.000000e+00> : vector<48xf32>
    %72 = vector.multi_reduction <add>, %71, %cst_46 [1] : vector<48x48xf32> to vector<48xf32>
    %73 = vector.shape_cast %72 : vector<48xf32> to vector<48x1xf32>
    %74 = tpu.reciprocal %73 {approx = true} : vector<48x1xf32> -> vector<48x1xf32>
    %75 = vector.broadcast %74 : vector<48x1xf32> to vector<48x48xf32>
    %76 = arith.mulf %71, %75 : vector<48x48xf32>
    %77 = arith.truncf %76 : vector<48x48xf32> to vector<48x48xbf16>
    %cst_47 = arith.constant dense<0.000000e+00> : vector<48x16xf32>
    %78 = tpu.matmul %77, %64, %cst_47 {dimension_numbers = #tpu.dot_dimension_numbers<[1], [0], [0], [1], [0, 0, 1, 1], [], []>} : vector<48x48xbf16>, vector<48x16xbf16>, vector<48x16xf32> -> vector<48x16xf32>
    %c0_48 = arith.constant 0 : index
    %c0_49 = arith.constant 0 : index
    %79 = vector.load %arg24[%c0_48, %c0_49] : memref<48x64xf32, #tpu.memory_space<vmem>>, vector<48x16xf32>
    tpu.vector_store %arg24[%c0_48, %c0_49], %78 {strides = array<i32>} : memref<48x64xf32, #tpu.memory_space<vmem>>, vector<48x16xf32>,
    %80 = vector.extract_strided_slice %56 {offsets = [0, 16], sizes = [48, 16], strides = [1, 1]} : vector<48x64xf32> to vector<48x16xf32>
    %81 = arith.truncf %80 : vector<48x16xf32> to vector<48x16xbf16>
    %82 = vector.extract_strided_slice %57 {offsets = [0, 16], sizes = [48, 16], strides = [1, 1]} : vector<48x64xf32> to vector<48x16xf32>
    %83 = arith.truncf %82 : vector<48x16xf32> to vector<48x16xbf16>
    %84 = vector.extract_strided_slice %58 {offsets = [0, 16], sizes = [48, 16], strides = [1, 1]} : vector<48x64xf32> to vector<48x16xf32>
    %85 = arith.truncf %84 : vector<48x16xf32> to vector<48x16xbf16>
    %cst_50 = arith.constant dense<0.000000e+00> : vector<48x48xf32>
    %86 = tpu.matmul %81, %83, %cst_50 {dimension_numbers = #tpu.dot_dimension_numbers<[1], [1], [0], [0], [0, 0, 1, 0], [], []>} : vector<48x16xbf16>, vector<48x16xbf16>, vector<48x48xf32> -> vector<48x48xf32>
    %87 = arith.addf %86, %21 : vector<48x48xf32>
    %cst_51 = arith.constant dense<0xFF800000> : vector<48xf32>
    %88 = vector.multi_reduction <maximumf>, %87, %cst_51 [1] : vector<48x48xf32> to vector<48xf32>
    %89 = vector.shape_cast %88 : vector<48xf32> to vector<48x1xf32>
    %90 = vector.broadcast %89 : vector<48x1xf32> to vector<48x48xf32>
    %91 = arith.subf %87, %90 : vector<48x48xf32>
    %92 = math.exp %91 : vector<48x48xf32>
    %cst_52 = arith.constant dense<0.000000e+00> : vector<48xf32>
    %93 = vector.multi_reduction <add>, %92, %cst_52 [1] : vector<48x48xf32> to vector<48xf32>
    %94 = vector.shape_cast %93 : vector<48xf32> to vector<48x1xf32>
    %95 = tpu.reciprocal %94 {approx = true} : vector<48x1xf32> -> vector<48x1xf32>
    %96 = vector.broadcast %95 : vector<48x1xf32> to vector<48x48xf32>
    %97 = arith.mulf %92, %96 : vector<48x48xf32>
    %98 = arith.truncf %97 : vector<48x48xf32> to vector<48x48xbf16>
    %cst_53 = arith.constant dense<0.000000e+00> : vector<48x16xf32>
    %99 = tpu.matmul %98, %85, %cst_53 {dimension_numbers = #tpu.dot_dimension_numbers<[1], [0], [0], [1], [0, 0, 1, 1], [], []>} : vector<48x48xbf16>, vector<48x16xbf16>, vector<48x16xf32> -> vector<48x16xf32>
    %c0_54 = arith.constant 0 : index
    %c16 = arith.constant 16 : index
    %100 = vector.load %arg24[%c0_54, %c16] : memref<48x64xf32, #tpu.memory_space<vmem>>, vector<48x16xf32>
    tpu.vector_store %arg24[%c0_54, %c16], %99 {strides = array<i32>} : memref<48x64xf32, #tpu.memory_space<vmem>>, vector<48x16xf32>,
    %101 = vector.extract_strided_slice %56 {offsets = [0, 32], sizes = [48, 16], strides = [1, 1]} : vector<48x64xf32> to vector<48x16xf32>
    %102 = arith.truncf %101 : vector<48x16xf32> to vector<48x16xbf16>
    %103 = vector.extract_strided_slice %57 {offsets = [0, 32], sizes = [48, 16], strides = [1, 1]} : vector<48x64xf32> to vector<48x16xf32>
    %104 = arith.truncf %103 : vector<48x16xf32> to vector<48x16xbf16>
    %105 = vector.extract_strided_slice %58 {offsets = [0, 32], sizes = [48, 16], strides = [1, 1]} : vector<48x64xf32> to vector<48x16xf32>
    %106 = arith.truncf %105 : vector<48x16xf32> to vector<48x16xbf16>
    %cst_55 = arith.constant dense<0.000000e+00> : vector<48x48xf32>
    %107 = tpu.matmul %102, %104, %cst_55 {dimension_numbers = #tpu.dot_dimension_numbers<[1], [1], [0], [0], [0, 0, 1, 0], [], []>} : vector<48x16xbf16>, vector<48x16xbf16>, vector<48x48xf32> -> vector<48x48xf32>
    %108 = arith.addf %107, %21 : vector<48x48xf32>
    %cst_56 = arith.constant dense<0xFF800000> : vector<48xf32>
    %109 = vector.multi_reduction <maximumf>, %108, %cst_56 [1] : vector<48x48xf32> to vector<48xf32>
    %110 = vector.shape_cast %109 : vector<48xf32> to vector<48x1xf32>
    %111 = vector.broadcast %110 : vector<48x1xf32> to vector<48x48xf32>
    %112 = arith.subf %108, %111 : vector<48x48xf32>
    %113 = math.exp %112 : vector<48x48xf32>
    %cst_57 = arith.constant dense<0.000000e+00> : vector<48xf32>
    %114 = vector.multi_reduction <add>, %113, %cst_57 [1] : vector<48x48xf32> to vector<48xf32>
    %115 = vector.shape_cast %114 : vector<48xf32> to vector<48x1xf32>
    %116 = tpu.reciprocal %115 {approx = true} : vector<48x1xf32> -> vector<48x1xf32>
    %117 = vector.broadcast %116 : vector<48x1xf32> to vector<48x48xf32>
    %118 = arith.mulf %113, %117 : vector<48x48xf32>
    %119 = arith.truncf %118 : vector<48x48xf32> to vector<48x48xbf16>
    %cst_58 = arith.constant dense<0.000000e+00> : vector<48x16xf32>
    %120 = tpu.matmul %119, %106, %cst_58 {dimension_numbers = #tpu.dot_dimension_numbers<[1], [0], [0], [1], [0, 0, 1, 1], [], []>} : vector<48x48xbf16>, vector<48x16xbf16>, vector<48x16xf32> -> vector<48x16xf32>
    %c0_59 = arith.constant 0 : index
    %c32 = arith.constant 32 : index
    %121 = vector.load %arg24[%c0_59, %c32] : memref<48x64xf32, #tpu.memory_space<vmem>>, vector<48x16xf32>
    tpu.vector_store %arg24[%c0_59, %c32], %120 {strides = array<i32>} : memref<48x64xf32, #tpu.memory_space<vmem>>, vector<48x16xf32>,
    %122 = vector.extract_strided_slice %56 {offsets = [0, 48], sizes = [48, 16], strides = [1, 1]} : vector<48x64xf32> to vector<48x16xf32>
    %123 = arith.truncf %122 : vector<48x16xf32> to vector<48x16xbf16>
    %124 = vector.extract_strided_slice %57 {offsets = [0, 48], sizes = [48, 16], strides = [1, 1]} : vector<48x64xf32> to vector<48x16xf32>
    %125 = arith.truncf %124 : vector<48x16xf32> to vector<48x16xbf16>
    %126 = vector.extract_strided_slice %58 {offsets = [0, 48], sizes = [48, 16], strides = [1, 1]} : vector<48x64xf32> to vector<48x16xf32>
    %127 = arith.truncf %126 : vector<48x16xf32> to vector<48x16xbf16>
    %cst_60 = arith.constant dense<0.000000e+00> : vector<48x48xf32>
    %128 = tpu.matmul %123, %125, %cst_60 {dimension_numbers = #tpu.dot_dimension_numbers<[1], [1], [0], [0], [0, 0, 1, 0], [], []>} : vector<48x16xbf16>, vector<48x16xbf16>, vector<48x48xf32> -> vector<48x48xf32>
    %129 = arith.addf %128, %21 : vector<48x48xf32>
    %cst_61 = arith.constant dense<0xFF800000> : vector<48xf32>
    %130 = vector.multi_reduction <maximumf>, %129, %cst_61 [1] : vector<48x48xf32> to vector<48xf32>
    %131 = vector.shape_cast %130 : vector<48xf32> to vector<48x1xf32>
    %132 = vector.broadcast %131 : vector<48x1xf32> to vector<48x48xf32>
    %133 = arith.subf %129, %132 : vector<48x48xf32>
    %134 = math.exp %133 : vector<48x48xf32>
    %cst_62 = arith.constant dense<0.000000e+00> : vector<48xf32>
    %135 = vector.multi_reduction <add>, %134, %cst_62 [1] : vector<48x48xf32> to vector<48xf32>
    %136 = vector.shape_cast %135 : vector<48xf32> to vector<48x1xf32>
    %137 = tpu.reciprocal %136 {approx = true} : vector<48x1xf32> -> vector<48x1xf32>
    %138 = vector.broadcast %137 : vector<48x1xf32> to vector<48x48xf32>
    %139 = arith.mulf %134, %138 : vector<48x48xf32>
    %140 = arith.truncf %139 : vector<48x48xf32> to vector<48x48xbf16>
    %cst_63 = arith.constant dense<0.000000e+00> : vector<48x16xf32>
    %141 = tpu.matmul %140, %127, %cst_63 {dimension_numbers = #tpu.dot_dimension_numbers<[1], [0], [0], [1], [0, 0, 1, 1], [], []>} : vector<48x48xbf16>, vector<48x16xbf16>, vector<48x16xf32> -> vector<48x16xf32>
    %c0_64 = arith.constant 0 : index
    %c48 = arith.constant 48 : index
    %142 = vector.load %arg24[%c0_64, %c48] : memref<48x64xf32, #tpu.memory_space<vmem>>, vector<48x16xf32>
    tpu.vector_store %arg24[%c0_64, %c48], %141 {strides = array<i32>} : memref<48x64xf32, #tpu.memory_space<vmem>>, vector<48x16xf32>,
    %c0_65 = arith.constant 0 : index
    %c0_66 = arith.constant 0 : index
    %143 = vector.load %arg24[%c0_65, %c0_66] : memref<48x64xf32, #tpu.memory_space<vmem>>, vector<48x64xf32>
    %144 = arith.truncf %143 : vector<48x64xf32> to vector<48x64xbf16>
    %c0_67 = arith.constant 0 : index
    %c0_68 = arith.constant 0 : index
    %c0_69 = arith.constant 0 : index
    %145 = vector.load %arg10[%c0_67, %c0_68, %c0_69] : memref<2x64x64xbf16, #tpu.memory_space<vmem>>, vector<1x64x64xbf16>
    %146 = vector.shape_cast %145 : vector<1x64x64xbf16> to vector<64x64xbf16>
    %cst_70 = arith.constant dense<0.000000e+00> : vector<48x64xf32>
    %147 = tpu.matmul %144, %146, %cst_70 {dimension_numbers = #tpu.dot_dimension_numbers<[1], [0], [0], [1], [0, 0, 1, 1], [], []>} : vector<48x64xbf16>, vector<64x64xbf16>, vector<48x64xf32> -> vector<48x64xf32>
    %c0_71 = arith.constant 0 : index
    %c0_72 = arith.constant 0 : index
    %c0_73 = arith.constant 0 : index
    %148 = vector.load %arg11[%c0_71, %c0_72, %c0_73] : memref<2x1x64xf32, #tpu.memory_space<vmem>>, vector<1x1x64xf32>
    %149 = vector.shape_cast %148 : vector<1x1x64xf32> to vector<1x64xf32>
    %150 = vector.broadcast %149 : vector<1x64xf32> to vector<48x64xf32>
    %151 = arith.addf %147, %150 : vector<48x64xf32>
    %152 = arith.addf %20, %151 : vector<48x64xf32>
    %c0_74 = arith.constant 0 : index
    %c0_75 = arith.constant 0 : index
    %c0_76 = arith.constant 0 : index
    %153 = vector.load %arg12[%c0_74, %c0_75, %c0_76] : memref<2x1x64xf32, #tpu.memory_space<vmem>>, vector<1x1x64xf32>
    %154 = vector.shape_cast %153 : vector<1x1x64xf32> to vector<1x64xf32>
    %c0_77 = arith.constant 0 : index
    %c0_78 = arith.constant 0 : index
    %c0_79 = arith.constant 0 : index
    %155 = vector.load %arg13[%c0_77, %c0_78, %c0_79] : memref<2x1x64xf32, #tpu.memory_space<vmem>>, vector<1x1x64xf32>
    %156 = vector.shape_cast %155 : vector<1x1x64xf32> to vector<1x64xf32>
    %cst_80 = arith.constant dense<0.000000e+00> : vector<48xf32>
    %157 = vector.multi_reduction <add>, %152, %cst_80 [1] : vector<48x64xf32> to vector<48xf32>
    %158 = vector.shape_cast %157 : vector<48xf32> to vector<48x1xf32>
    %cst_81 = arith.constant 6.400000e+01 : f32
    %159 = vector.broadcast %cst_81 : f32 to vector<48x1xf32>
    %160 = arith.divf %158, %159 : vector<48x1xf32>
    %161 = vector.broadcast %160 : vector<48x1xf32> to vector<48x64xf32>
    %162 = arith.subf %152, %161 : vector<48x64xf32>
    %163 = arith.mulf %162, %162 : vector<48x64xf32>
    %cst_82 = arith.constant dense<0.000000e+00> : vector<48xf32>
    %164 = vector.multi_reduction <add>, %163, %cst_82 [1] : vector<48x64xf32> to vector<48xf32>
    %165 = vector.shape_cast %164 : vector<48xf32> to vector<48x1xf32>
    %cst_83 = arith.constant 6.400000e+01 : f32
    %166 = vector.broadcast %cst_83 : f32 to vector<48x1xf32>
    %167 = arith.divf %165, %166 : vector<48x1xf32>
    %cst_84 = arith.constant 9.99999997E-7 : f32
    %168 = vector.broadcast %cst_84 : f32 to vector<48x1xf32>
    %169 = arith.addf %167, %168 : vector<48x1xf32>
    %170 = math.rsqrt %169 : vector<48x1xf32>
    %171 = vector.broadcast %170 : vector<48x1xf32> to vector<48x64xf32>
    %172 = arith.mulf %162, %171 : vector<48x64xf32>
    %173 = vector.broadcast %154 : vector<1x64xf32> to vector<48x64xf32>
    %174 = arith.mulf %172, %173 : vector<48x64xf32>
    %175 = vector.broadcast %156 : vector<1x64xf32> to vector<48x64xf32>
    %176 = arith.addf %174, %175 : vector<48x64xf32>
    %177 = arith.truncf %176 : vector<48x64xf32> to vector<48x64xbf16>
    %c0_85 = arith.constant 0 : index
    %c0_86 = arith.constant 0 : index
    %c0_87 = arith.constant 0 : index
    %178 = vector.load %arg14[%c0_85, %c0_86, %c0_87] : memref<2x64x256xbf16, #tpu.memory_space<vmem>>, vector<1x64x256xbf16>
    %179 = vector.shape_cast %178 : vector<1x64x256xbf16> to vector<64x256xbf16>
    %cst_88 = arith.constant dense<0.000000e+00> : vector<48x256xf32>
    %180 = tpu.matmul %177, %179, %cst_88 {dimension_numbers = #tpu.dot_dimension_numbers<[1], [0], [0], [1], [0, 0, 1, 1], [], []>} : vector<48x64xbf16>, vector<64x256xbf16>, vector<48x256xf32> -> vector<48x256xf32>
    %c0_89 = arith.constant 0 : index
    %c0_90 = arith.constant 0 : index
    %c0_91 = arith.constant 0 : index
    %181 = vector.load %arg15[%c0_89, %c0_90, %c0_91] : memref<2x1x256xf32, #tpu.memory_space<vmem>>, vector<1x1x256xf32>
    %182 = vector.shape_cast %181 : vector<1x1x256xf32> to vector<1x256xf32>
    %183 = vector.broadcast %182 : vector<1x256xf32> to vector<48x256xf32>
    %184 = arith.addf %180, %183 : vector<48x256xf32>
    %185 = arith.mulf %184, %184 : vector<48x256xf32>
    %186 = arith.mulf %184, %185 : vector<48x256xf32>
    %cst_92 = arith.constant 4.471500e-02 : f32
    %187 = vector.broadcast %cst_92 : f32 to vector<48x256xf32>
    %188 = arith.mulf %187, %186 : vector<48x256xf32>
    %189 = arith.addf %184, %188 : vector<48x256xf32>
    %cst_93 = arith.constant 0.797884583 : f32
    %190 = vector.broadcast %cst_93 : f32 to vector<48x256xf32>
    %191 = arith.mulf %190, %189 : vector<48x256xf32>
    %192 = math.tanh %191 : vector<48x256xf32>
    %cst_94 = arith.constant 1.000000e+00 : f32
    %193 = vector.broadcast %cst_94 : f32 to vector<48x256xf32>
    %194 = arith.addf %193, %192 : vector<48x256xf32>
    %cst_95 = arith.constant 5.000000e-01 : f32
    %195 = vector.broadcast %cst_95 : f32 to vector<48x256xf32>
    %196 = arith.mulf %195, %194 : vector<48x256xf32>
    %197 = arith.mulf %184, %196 : vector<48x256xf32>
    %198 = arith.truncf %197 : vector<48x256xf32> to vector<48x256xbf16>
    %c0_96 = arith.constant 0 : index
    %c0_97 = arith.constant 0 : index
    %c0_98 = arith.constant 0 : index
    %199 = vector.load %arg16[%c0_96, %c0_97, %c0_98] : memref<2x256x64xbf16, #tpu.memory_space<vmem>>, vector<1x256x64xbf16>
    %200 = vector.shape_cast %199 : vector<1x256x64xbf16> to vector<256x64xbf16>
    %cst_99 = arith.constant dense<0.000000e+00> : vector<48x64xf32>
    %201 = tpu.matmul %198, %200, %cst_99 {dimension_numbers = #tpu.dot_dimension_numbers<[1], [0], [0], [1], [0, 0, 1, 1], [], []>} : vector<48x256xbf16>, vector<256x64xbf16>, vector<48x64xf32> -> vector<48x64xf32>
    %c0_100 = arith.constant 0 : index
    %c0_101 = arith.constant 0 : index
    %c0_102 = arith.constant 0 : index
    %202 = vector.load %arg17[%c0_100, %c0_101, %c0_102] : memref<2x1x64xf32, #tpu.memory_space<vmem>>, vector<1x1x64xf32>
    %203 = vector.shape_cast %202 : vector<1x1x64xf32> to vector<1x64xf32>
    %204 = vector.broadcast %203 : vector<1x64xf32> to vector<48x64xf32>
    %205 = arith.addf %201, %204 : vector<48x64xf32>
    %206 = arith.addf %152, %205 : vector<48x64xf32>
    %c1_103 = arith.constant 1 : index
    %c0_104 = arith.constant 0 : index
    %c0_105 = arith.constant 0 : index
    %207 = vector.load %arg6[%c1_103, %c0_104, %c0_105] : memref<2x1x64xf32, #tpu.memory_space<vmem>>, vector<1x1x64xf32>
    %208 = vector.shape_cast %207 : vector<1x1x64xf32> to vector<1x64xf32>
    %c1_106 = arith.constant 1 : index
    %c0_107 = arith.constant 0 : index
    %c0_108 = arith.constant 0 : index
    %209 = vector.load %arg7[%c1_106, %c0_107, %c0_108] : memref<2x1x64xf32, #tpu.memory_space<vmem>>, vector<1x1x64xf32>
    %210 = vector.shape_cast %209 : vector<1x1x64xf32> to vector<1x64xf32>
    %cst_109 = arith.constant dense<0.000000e+00> : vector<48xf32>
    %211 = vector.multi_reduction <add>, %206, %cst_109 [1] : vector<48x64xf32> to vector<48xf32>
    %212 = vector.shape_cast %211 : vector<48xf32> to vector<48x1xf32>
    %cst_110 = arith.constant 6.400000e+01 : f32
    %213 = vector.broadcast %cst_110 : f32 to vector<48x1xf32>
    %214 = arith.divf %212, %213 : vector<48x1xf32>
    %215 = vector.broadcast %214 : vector<48x1xf32> to vector<48x64xf32>
    %216 = arith.subf %206, %215 : vector<48x64xf32>
    %217 = arith.mulf %216, %216 : vector<48x64xf32>
    %cst_111 = arith.constant dense<0.000000e+00> : vector<48xf32>
    %218 = vector.multi_reduction <add>, %217, %cst_111 [1] : vector<48x64xf32> to vector<48xf32>
    %219 = vector.shape_cast %218 : vector<48xf32> to vector<48x1xf32>
    %cst_112 = arith.constant 6.400000e+01 : f32
    %220 = vector.broadcast %cst_112 : f32 to vector<48x1xf32>
    %221 = arith.divf %219, %220 : vector<48x1xf32>
    %cst_113 = arith.constant 9.99999997E-7 : f32
    %222 = vector.broadcast %cst_113 : f32 to vector<48x1xf32>
    %223 = arith.addf %221, %222 : vector<48x1xf32>
    %224 = math.rsqrt %223 : vector<48x1xf32>
    %225 = vector.broadcast %224 : vector<48x1xf32> to vector<48x64xf32>
    %226 = arith.mulf %216, %225 : vector<48x64xf32>
    %227 = vector.broadcast %208 : vector<1x64xf32> to vector<48x64xf32>
    %228 = arith.mulf %226, %227 : vector<48x64xf32>
    %229 = vector.broadcast %210 : vector<1x64xf32> to vector<48x64xf32>
    %230 = arith.addf %228, %229 : vector<48x64xf32>
    %231 = arith.truncf %230 : vector<48x64xf32> to vector<48x64xbf16>
    %c1_114 = arith.constant 1 : index
    %c0_115 = arith.constant 0 : index
    %c0_116 = arith.constant 0 : index
    %232 = vector.load %arg8[%c1_114, %c0_115, %c0_116] : memref<2x64x192xbf16, #tpu.memory_space<vmem>>, vector<1x64x192xbf16>
    %233 = vector.shape_cast %232 : vector<1x64x192xbf16> to vector<64x192xbf16>
    %cst_117 = arith.constant dense<0.000000e+00> : vector<48x192xf32>
    %234 = tpu.matmul %231, %233, %cst_117 {dimension_numbers = #tpu.dot_dimension_numbers<[1], [0], [0], [1], [0, 0, 1, 1], [], []>} : vector<48x64xbf16>, vector<64x192xbf16>, vector<48x192xf32> -> vector<48x192xf32>
    %c1_118 = arith.constant 1 : index
    %c0_119 = arith.constant 0 : index
    %c0_120 = arith.constant 0 : index
    %235 = vector.load %arg9[%c1_118, %c0_119, %c0_120] : memref<2x1x192xf32, #tpu.memory_space<vmem>>, vector<1x1x192xf32>
    %236 = vector.shape_cast %235 : vector<1x1x192xf32> to vector<1x192xf32>
    %237 = vector.broadcast %236 : vector<1x192xf32> to vector<48x192xf32>
    %238 = arith.addf %234, %237 : vector<48x192xf32>
    %239 = vector.extract_strided_slice %238 {offsets = [0, 0], sizes = [48, 64], strides = [1, 1]} : vector<48x192xf32> to vector<48x64xf32>
    %cst_121 = arith.constant 2.500000e-01 : f32
    %240 = vector.broadcast %cst_121 : f32 to vector<48x64xf32>
    %241 = arith.mulf %239, %240 : vector<48x64xf32>
    %242 = vector.extract_strided_slice %238 {offsets = [0, 64], sizes = [48, 64], strides = [1, 1]} : vector<48x192xf32> to vector<48x64xf32>
    %243 = vector.extract_strided_slice %238 {offsets = [0, 128], sizes = [48, 64], strides = [1, 1]} : vector<48x192xf32> to vector<48x64xf32>
    %244 = vector.extract_strided_slice %241 {offsets = [0, 0], sizes = [48, 16], strides = [1, 1]} : vector<48x64xf32> to vector<48x16xf32>
    %245 = arith.truncf %244 : vector<48x16xf32> to vector<48x16xbf16>
    %246 = vector.extract_strided_slice %242 {offsets = [0, 0], sizes = [48, 16], strides = [1, 1]} : vector<48x64xf32> to vector<48x16xf32>
    %247 = arith.truncf %246 : vector<48x16xf32> to vector<48x16xbf16>
    %248 = vector.extract_strided_slice %243 {offsets = [0, 0], sizes = [48, 16], strides = [1, 1]} : vector<48x64xf32> to vector<48x16xf32>
    %249 = arith.truncf %248 : vector<48x16xf32> to vector<48x16xbf16>
    %cst_122 = arith.constant dense<0.000000e+00> : vector<48x48xf32>
    %250 = tpu.matmul %245, %247, %cst_122 {dimension_numbers = #tpu.dot_dimension_numbers<[1], [1], [0], [0], [0, 0, 1, 0], [], []>} : vector<48x16xbf16>, vector<48x16xbf16>, vector<48x48xf32> -> vector<48x48xf32>
    %251 = arith.addf %250, %21 : vector<48x48xf32>
    %cst_123 = arith.constant dense<0xFF800000> : vector<48xf32>
    %252 = vector.multi_reduction <maximumf>, %251, %cst_123 [1] : vector<48x48xf32> to vector<48xf32>
    %253 = vector.shape_cast %252 : vector<48xf32> to vector<48x1xf32>
    %254 = vector.broadcast %253 : vector<48x1xf32> to vector<48x48xf32>
    %255 = arith.subf %251, %254 : vector<48x48xf32>
    %256 = math.exp %255 : vector<48x48xf32>
    %cst_124 = arith.constant dense<0.000000e+00> : vector<48xf32>
    %257 = vector.multi_reduction <add>, %256, %cst_124 [1] : vector<48x48xf32> to vector<48xf32>
    %258 = vector.shape_cast %257 : vector<48xf32> to vector<48x1xf32>
    %259 = tpu.reciprocal %258 {approx = true} : vector<48x1xf32> -> vector<48x1xf32>
    %260 = vector.broadcast %259 : vector<48x1xf32> to vector<48x48xf32>
    %261 = arith.mulf %256, %260 : vector<48x48xf32>
    %262 = arith.truncf %261 : vector<48x48xf32> to vector<48x48xbf16>
    %cst_125 = arith.constant dense<0.000000e+00> : vector<48x16xf32>
    %263 = tpu.matmul %262, %249, %cst_125 {dimension_numbers = #tpu.dot_dimension_numbers<[1], [0], [0], [1], [0, 0, 1, 1], [], []>} : vector<48x48xbf16>, vector<48x16xbf16>, vector<48x16xf32> -> vector<48x16xf32>
    %c0_126 = arith.constant 0 : index
    %c0_127 = arith.constant 0 : index
    %264 = vector.load %arg24[%c0_126, %c0_127] : memref<48x64xf32, #tpu.memory_space<vmem>>, vector<48x16xf32>
    tpu.vector_store %arg24[%c0_126, %c0_127], %263 {strides = array<i32>} : memref<48x64xf32, #tpu.memory_space<vmem>>, vector<48x16xf32>,
    %265 = vector.extract_strided_slice %241 {offsets = [0, 16], sizes = [48, 16], strides = [1, 1]} : vector<48x64xf32> to vector<48x16xf32>
    %266 = arith.truncf %265 : vector<48x16xf32> to vector<48x16xbf16>
    %267 = vector.extract_strided_slice %242 {offsets = [0, 16], sizes = [48, 16], strides = [1, 1]} : vector<48x64xf32> to vector<48x16xf32>
    %268 = arith.truncf %267 : vector<48x16xf32> to vector<48x16xbf16>
    %269 = vector.extract_strided_slice %243 {offsets = [0, 16], sizes = [48, 16], strides = [1, 1]} : vector<48x64xf32> to vector<48x16xf32>
    %270 = arith.truncf %269 : vector<48x16xf32> to vector<48x16xbf16>
    %cst_128 = arith.constant dense<0.000000e+00> : vector<48x48xf32>
    %271 = tpu.matmul %266, %268, %cst_128 {dimension_numbers = #tpu.dot_dimension_numbers<[1], [1], [0], [0], [0, 0, 1, 0], [], []>} : vector<48x16xbf16>, vector<48x16xbf16>, vector<48x48xf32> -> vector<48x48xf32>
    %272 = arith.addf %271, %21 : vector<48x48xf32>
    %cst_129 = arith.constant dense<0xFF800000> : vector<48xf32>
    %273 = vector.multi_reduction <maximumf>, %272, %cst_129 [1] : vector<48x48xf32> to vector<48xf32>
    %274 = vector.shape_cast %273 : vector<48xf32> to vector<48x1xf32>
    %275 = vector.broadcast %274 : vector<48x1xf32> to vector<48x48xf32>
    %276 = arith.subf %272, %275 : vector<48x48xf32>
    %277 = math.exp %276 : vector<48x48xf32>
    %cst_130 = arith.constant dense<0.000000e+00> : vector<48xf32>
    %278 = vector.multi_reduction <add>, %277, %cst_130 [1] : vector<48x48xf32> to vector<48xf32>
    %279 = vector.shape_cast %278 : vector<48xf32> to vector<48x1xf32>
    %280 = tpu.reciprocal %279 {approx = true} : vector<48x1xf32> -> vector<48x1xf32>
    %281 = vector.broadcast %280 : vector<48x1xf32> to vector<48x48xf32>
    %282 = arith.mulf %277, %281 : vector<48x48xf32>
    %283 = arith.truncf %282 : vector<48x48xf32> to vector<48x48xbf16>
    %cst_131 = arith.constant dense<0.000000e+00> : vector<48x16xf32>
    %284 = tpu.matmul %283, %270, %cst_131 {dimension_numbers = #tpu.dot_dimension_numbers<[1], [0], [0], [1], [0, 0, 1, 1], [], []>} : vector<48x48xbf16>, vector<48x16xbf16>, vector<48x16xf32> -> vector<48x16xf32>
    %c0_132 = arith.constant 0 : index
    %c16_133 = arith.constant 16 : index
    %285 = vector.load %arg24[%c0_132, %c16_133] : memref<48x64xf32, #tpu.memory_space<vmem>>, vector<48x16xf32>
    tpu.vector_store %arg24[%c0_132, %c16_133], %284 {strides = array<i32>} : memref<48x64xf32, #tpu.memory_space<vmem>>, vector<48x16xf32>,
    %286 = vector.extract_strided_slice %241 {offsets = [0, 32], sizes = [48, 16], strides = [1, 1]} : vector<48x64xf32> to vector<48x16xf32>
    %287 = arith.truncf %286 : vector<48x16xf32> to vector<48x16xbf16>
    %288 = vector.extract_strided_slice %242 {offsets = [0, 32], sizes = [48, 16], strides = [1, 1]} : vector<48x64xf32> to vector<48x16xf32>
    %289 = arith.truncf %288 : vector<48x16xf32> to vector<48x16xbf16>
    %290 = vector.extract_strided_slice %243 {offsets = [0, 32], sizes = [48, 16], strides = [1, 1]} : vector<48x64xf32> to vector<48x16xf32>
    %291 = arith.truncf %290 : vector<48x16xf32> to vector<48x16xbf16>
    %cst_134 = arith.constant dense<0.000000e+00> : vector<48x48xf32>
    %292 = tpu.matmul %287, %289, %cst_134 {dimension_numbers = #tpu.dot_dimension_numbers<[1], [1], [0], [0], [0, 0, 1, 0], [], []>} : vector<48x16xbf16>, vector<48x16xbf16>, vector<48x48xf32> -> vector<48x48xf32>
    %293 = arith.addf %292, %21 : vector<48x48xf32>
    %cst_135 = arith.constant dense<0xFF800000> : vector<48xf32>
    %294 = vector.multi_reduction <maximumf>, %293, %cst_135 [1] : vector<48x48xf32> to vector<48xf32>
    %295 = vector.shape_cast %294 : vector<48xf32> to vector<48x1xf32>
    %296 = vector.broadcast %295 : vector<48x1xf32> to vector<48x48xf32>
    %297 = arith.subf %293, %296 : vector<48x48xf32>
    %298 = math.exp %297 : vector<48x48xf32>
    %cst_136 = arith.constant dense<0.000000e+00> : vector<48xf32>
    %299 = vector.multi_reduction <add>, %298, %cst_136 [1] : vector<48x48xf32> to vector<48xf32>
    %300 = vector.shape_cast %299 : vector<48xf32> to vector<48x1xf32>
    %301 = tpu.reciprocal %300 {approx = true} : vector<48x1xf32> -> vector<48x1xf32>
    %302 = vector.broadcast %301 : vector<48x1xf32> to vector<48x48xf32>
    %303 = arith.mulf %298, %302 : vector<48x48xf32>
    %304 = arith.truncf %303 : vector<48x48xf32> to vector<48x48xbf16>
    %cst_137 = arith.constant dense<0.000000e+00> : vector<48x16xf32>
    %305 = tpu.matmul %304, %291, %cst_137 {dimension_numbers = #tpu.dot_dimension_numbers<[1], [0], [0], [1], [0, 0, 1, 1], [], []>} : vector<48x48xbf16>, vector<48x16xbf16>, vector<48x16xf32> -> vector<48x16xf32>
    %c0_138 = arith.constant 0 : index
    %c32_139 = arith.constant 32 : index
    %306 = vector.load %arg24[%c0_138, %c32_139] : memref<48x64xf32, #tpu.memory_space<vmem>>, vector<48x16xf32>
    tpu.vector_store %arg24[%c0_138, %c32_139], %305 {strides = array<i32>} : memref<48x64xf32, #tpu.memory_space<vmem>>, vector<48x16xf32>,
    %307 = vector.extract_strided_slice %241 {offsets = [0, 48], sizes = [48, 16], strides = [1, 1]} : vector<48x64xf32> to vector<48x16xf32>
    %308 = arith.truncf %307 : vector<48x16xf32> to vector<48x16xbf16>
    %309 = vector.extract_strided_slice %242 {offsets = [0, 48], sizes = [48, 16], strides = [1, 1]} : vector<48x64xf32> to vector<48x16xf32>
    %310 = arith.truncf %309 : vector<48x16xf32> to vector<48x16xbf16>
    %311 = vector.extract_strided_slice %243 {offsets = [0, 48], sizes = [48, 16], strides = [1, 1]} : vector<48x64xf32> to vector<48x16xf32>
    %312 = arith.truncf %311 : vector<48x16xf32> to vector<48x16xbf16>
    %cst_140 = arith.constant dense<0.000000e+00> : vector<48x48xf32>
    %313 = tpu.matmul %308, %310, %cst_140 {dimension_numbers = #tpu.dot_dimension_numbers<[1], [1], [0], [0], [0, 0, 1, 0], [], []>} : vector<48x16xbf16>, vector<48x16xbf16>, vector<48x48xf32> -> vector<48x48xf32>
    %314 = arith.addf %313, %21 : vector<48x48xf32>
    %cst_141 = arith.constant dense<0xFF800000> : vector<48xf32>
    %315 = vector.multi_reduction <maximumf>, %314, %cst_141 [1] : vector<48x48xf32> to vector<48xf32>
    %316 = vector.shape_cast %315 : vector<48xf32> to vector<48x1xf32>
    %317 = vector.broadcast %316 : vector<48x1xf32> to vector<48x48xf32>
    %318 = arith.subf %314, %317 : vector<48x48xf32>
    %319 = math.exp %318 : vector<48x48xf32>
    %cst_142 = arith.constant dense<0.000000e+00> : vector<48xf32>
    %320 = vector.multi_reduction <add>, %319, %cst_142 [1] : vector<48x48xf32> to vector<48xf32>
    %321 = vector.shape_cast %320 : vector<48xf32> to vector<48x1xf32>
    %322 = tpu.reciprocal %321 {approx = true} : vector<48x1xf32> -> vector<48x1xf32>
    %323 = vector.broadcast %322 : vector<48x1xf32> to vector<48x48xf32>
    %324 = arith.mulf %319, %323 : vector<48x48xf32>
    %325 = arith.truncf %324 : vector<48x48xf32> to vector<48x48xbf16>
    %cst_143 = arith.constant dense<0.000000e+00> : vector<48x16xf32>
    %326 = tpu.matmul %325, %312, %cst_143 {dimension_numbers = #tpu.dot_dimension_numbers<[1], [0], [0], [1], [0, 0, 1, 1], [], []>} : vector<48x48xbf16>, vector<48x16xbf16>, vector<48x16xf32> -> vector<48x16xf32>
    %c0_144 = arith.constant 0 : index
    %c48_145 = arith.constant 48 : index
    %327 = vector.load %arg24[%c0_144, %c48_145] : memref<48x64xf32, #tpu.memory_space<vmem>>, vector<48x16xf32>
    tpu.vector_store %arg24[%c0_144, %c48_145], %326 {strides = array<i32>} : memref<48x64xf32, #tpu.memory_space<vmem>>, vector<48x16xf32>,
    %c0_146 = arith.constant 0 : index
    %c0_147 = arith.constant 0 : index
    %328 = vector.load %arg24[%c0_146, %c0_147] : memref<48x64xf32, #tpu.memory_space<vmem>>, vector<48x64xf32>
    %329 = arith.truncf %328 : vector<48x64xf32> to vector<48x64xbf16>
    %c1_148 = arith.constant 1 : index
    %c0_149 = arith.constant 0 : index
    %c0_150 = arith.constant 0 : index
    %330 = vector.load %arg10[%c1_148, %c0_149, %c0_150] : memref<2x64x64xbf16, #tpu.memory_space<vmem>>, vector<1x64x64xbf16>
    %331 = vector.shape_cast %330 : vector<1x64x64xbf16> to vector<64x64xbf16>
    %cst_151 = arith.constant dense<0.000000e+00> : vector<48x64xf32>
    %332 = tpu.matmul %329, %331, %cst_151 {dimension_numbers = #tpu.dot_dimension_numbers<[1], [0], [0], [1], [0, 0, 1, 1], [], []>} : vector<48x64xbf16>, vector<64x64xbf16>, vector<48x64xf32> -> vector<48x64xf32>
    %c1_152 = arith.constant 1 : index
    %c0_153 = arith.constant 0 : index
    %c0_154 = arith.constant 0 : index
    %333 = vector.load %arg11[%c1_152, %c0_153, %c0_154] : memref<2x1x64xf32, #tpu.memory_space<vmem>>, vector<1x1x64xf32>
    %334 = vector.shape_cast %333 : vector<1x1x64xf32> to vector<1x64xf32>
    %335 = vector.broadcast %334 : vector<1x64xf32> to vector<48x64xf32>
    %336 = arith.addf %332, %335 : vector<48x64xf32>
    %337 = arith.addf %206, %336 : vector<48x64xf32>
    %c1_155 = arith.constant 1 : index
    %c0_156 = arith.constant 0 : index
    %c0_157 = arith.constant 0 : index
    %338 = vector.load %arg12[%c1_155, %c0_156, %c0_157] : memref<2x1x64xf32, #tpu.memory_space<vmem>>, vector<1x1x64xf32>
    %339 = vector.shape_cast %338 : vector<1x1x64xf32> to vector<1x64xf32>
    %c1_158 = arith.constant 1 : index
    %c0_159 = arith.constant 0 : index
    %c0_160 = arith.constant 0 : index
    %340 = vector.load %arg13[%c1_158, %c0_159, %c0_160] : memref<2x1x64xf32, #tpu.memory_space<vmem>>, vector<1x1x64xf32>
    %341 = vector.shape_cast %340 : vector<1x1x64xf32> to vector<1x64xf32>
    %cst_161 = arith.constant dense<0.000000e+00> : vector<48xf32>
    %342 = vector.multi_reduction <add>, %337, %cst_161 [1] : vector<48x64xf32> to vector<48xf32>
    %343 = vector.shape_cast %342 : vector<48xf32> to vector<48x1xf32>
    %cst_162 = arith.constant 6.400000e+01 : f32
    %344 = vector.broadcast %cst_162 : f32 to vector<48x1xf32>
    %345 = arith.divf %343, %344 : vector<48x1xf32>
    %346 = vector.broadcast %345 : vector<48x1xf32> to vector<48x64xf32>
    %347 = arith.subf %337, %346 : vector<48x64xf32>
    %348 = arith.mulf %347, %347 : vector<48x64xf32>
    %cst_163 = arith.constant dense<0.000000e+00> : vector<48xf32>
    %349 = vector.multi_reduction <add>, %348, %cst_163 [1] : vector<48x64xf32> to vector<48xf32>
    %350 = vector.shape_cast %349 : vector<48xf32> to vector<48x1xf32>
    %cst_164 = arith.constant 6.400000e+01 : f32
    %351 = vector.broadcast %cst_164 : f32 to vector<48x1xf32>
    %352 = arith.divf %350, %351 : vector<48x1xf32>
    %cst_165 = arith.constant 9.99999997E-7 : f32
    %353 = vector.broadcast %cst_165 : f32 to vector<48x1xf32>
    %354 = arith.addf %352, %353 : vector<48x1xf32>
    %355 = math.rsqrt %354 : vector<48x1xf32>
    %356 = vector.broadcast %355 : vector<48x1xf32> to vector<48x64xf32>
    %357 = arith.mulf %347, %356 : vector<48x64xf32>
    %358 = vector.broadcast %339 : vector<1x64xf32> to vector<48x64xf32>
    %359 = arith.mulf %357, %358 : vector<48x64xf32>
    %360 = vector.broadcast %341 : vector<1x64xf32> to vector<48x64xf32>
    %361 = arith.addf %359, %360 : vector<48x64xf32>
    %362 = arith.truncf %361 : vector<48x64xf32> to vector<48x64xbf16>
    %c1_166 = arith.constant 1 : index
    %c0_167 = arith.constant 0 : index
    %c0_168 = arith.constant 0 : index
    %363 = vector.load %arg14[%c1_166, %c0_167, %c0_168] : memref<2x64x256xbf16, #tpu.memory_space<vmem>>, vector<1x64x256xbf16>
    %364 = vector.shape_cast %363 : vector<1x64x256xbf16> to vector<64x256xbf16>
    %cst_169 = arith.constant dense<0.000000e+00> : vector<48x256xf32>
    %365 = tpu.matmul %362, %364, %cst_169 {dimension_numbers = #tpu.dot_dimension_numbers<[1], [0], [0], [1], [0, 0, 1, 1], [], []>} : vector<48x64xbf16>, vector<64x256xbf16>, vector<48x256xf32> -> vector<48x256xf32>
    %c1_170 = arith.constant 1 : index
    %c0_171 = arith.constant 0 : index
    %c0_172 = arith.constant 0 : index
    %366 = vector.load %arg15[%c1_170, %c0_171, %c0_172] : memref<2x1x256xf32, #tpu.memory_space<vmem>>, vector<1x1x256xf32>
    %367 = vector.shape_cast %366 : vector<1x1x256xf32> to vector<1x256xf32>
    %368 = vector.broadcast %367 : vector<1x256xf32> to vector<48x256xf32>
    %369 = arith.addf %365, %368 : vector<48x256xf32>
    %370 = arith.mulf %369, %369 : vector<48x256xf32>
    %371 = arith.mulf %369, %370 : vector<48x256xf32>
    %cst_173 = arith.constant 4.471500e-02 : f32
    %372 = vector.broadcast %cst_173 : f32 to vector<48x256xf32>
    %373 = arith.mulf %372, %371 : vector<48x256xf32>
    %374 = arith.addf %369, %373 : vector<48x256xf32>
    %cst_174 = arith.constant 0.797884583 : f32
    %375 = vector.broadcast %cst_174 : f32 to vector<48x256xf32>
    %376 = arith.mulf %375, %374 : vector<48x256xf32>
    %377 = math.tanh %376 : vector<48x256xf32>
    %cst_175 = arith.constant 1.000000e+00 : f32
    %378 = vector.broadcast %cst_175 : f32 to vector<48x256xf32>
    %379 = arith.addf %378, %377 : vector<48x256xf32>
    %cst_176 = arith.constant 5.000000e-01 : f32
    %380 = vector.broadcast %cst_176 : f32 to vector<48x256xf32>
    %381 = arith.mulf %380, %379 : vector<48x256xf32>
    %382 = arith.mulf %369, %381 : vector<48x256xf32>
    %383 = arith.truncf %382 : vector<48x256xf32> to vector<48x256xbf16>
    %c1_177 = arith.constant 1 : index
    %c0_178 = arith.constant 0 : index
    %c0_179 = arith.constant 0 : index
    %384 = vector.load %arg16[%c1_177, %c0_178, %c0_179] : memref<2x256x64xbf16, #tpu.memory_space<vmem>>, vector<1x256x64xbf16>
    %385 = vector.shape_cast %384 : vector<1x256x64xbf16> to vector<256x64xbf16>
    %cst_180 = arith.constant dense<0.000000e+00> : vector<48x64xf32>
    %386 = tpu.matmul %383, %385, %cst_180 {dimension_numbers = #tpu.dot_dimension_numbers<[1], [0], [0], [1], [0, 0, 1, 1], [], []>} : vector<48x256xbf16>, vector<256x64xbf16>, vector<48x64xf32> -> vector<48x64xf32>
    %c1_181 = arith.constant 1 : index
    %c0_182 = arith.constant 0 : index
    %c0_183 = arith.constant 0 : index
    %387 = vector.load %arg17[%c1_181, %c0_182, %c0_183] : memref<2x1x64xf32, #tpu.memory_space<vmem>>, vector<1x1x64xf32>
    %388 = vector.shape_cast %387 : vector<1x1x64xf32> to vector<1x64xf32>
    %389 = vector.broadcast %388 : vector<1x64xf32> to vector<48x64xf32>
    %390 = arith.addf %386, %389 : vector<48x64xf32>
    %391 = arith.addf %337, %390 : vector<48x64xf32>
    %c0_184 = arith.constant 0 : index
    %c0_185 = arith.constant 0 : index
    %392 = vector.load %arg18[%c0_184, %c0_185] : memref<1x64xf32, #tpu.memory_space<vmem>>, vector<1x64xf32>
    %c0_186 = arith.constant 0 : index
    %c0_187 = arith.constant 0 : index
    %393 = vector.load %arg19[%c0_186, %c0_187] : memref<1x64xf32, #tpu.memory_space<vmem>>, vector<1x64xf32>
    %cst_188 = arith.constant dense<0.000000e+00> : vector<48xf32>
    %394 = vector.multi_reduction <add>, %391, %cst_188 [1] : vector<48x64xf32> to vector<48xf32>
    %395 = vector.shape_cast %394 : vector<48xf32> to vector<48x1xf32>
    %cst_189 = arith.constant 6.400000e+01 : f32
    %396 = vector.broadcast %cst_189 : f32 to vector<48x1xf32>
    %397 = arith.divf %395, %396 : vector<48x1xf32>
    %398 = vector.broadcast %397 : vector<48x1xf32> to vector<48x64xf32>
    %399 = arith.subf %391, %398 : vector<48x64xf32>
    %400 = arith.mulf %399, %399 : vector<48x64xf32>
    %cst_190 = arith.constant dense<0.000000e+00> : vector<48xf32>
    %401 = vector.multi_reduction <add>, %400, %cst_190 [1] : vector<48x64xf32> to vector<48xf32>
    %402 = vector.shape_cast %401 : vector<48xf32> to vector<48x1xf32>
    %cst_191 = arith.constant 6.400000e+01 : f32
    %403 = vector.broadcast %cst_191 : f32 to vector<48x1xf32>
    %404 = arith.divf %402, %403 : vector<48x1xf32>
    %cst_192 = arith.constant 9.99999997E-7 : f32
    %405 = vector.broadcast %cst_192 : f32 to vector<48x1xf32>
    %406 = arith.addf %404, %405 : vector<48x1xf32>
    %407 = math.rsqrt %406 : vector<48x1xf32>
    %408 = vector.broadcast %407 : vector<48x1xf32> to vector<48x64xf32>
    %409 = arith.mulf %399, %408 : vector<48x64xf32>
    %410 = vector.broadcast %392 : vector<1x64xf32> to vector<48x64xf32>
    %411 = arith.mulf %409, %410 : vector<48x64xf32>
    %412 = vector.broadcast %393 : vector<1x64xf32> to vector<48x64xf32>
    %413 = arith.addf %411, %412 : vector<48x64xf32>
    %414 = arith.truncf %413 : vector<48x64xf32> to vector<48x64xbf16>
    %c0_193 = arith.constant 0 : index
    %c0_194 = arith.constant 0 : index
    %415 = vector.load %arg20[%c0_193, %c0_194] : memref<64x8xbf16, #tpu.memory_space<vmem>>, vector<64x8xbf16>
    %cst_195 = arith.constant dense<0.000000e+00> : vector<48x8xf32>
    %416 = tpu.matmul %414, %415, %cst_195 {dimension_numbers = #tpu.dot_dimension_numbers<[1], [0], [0], [1], [0, 0, 1, 1], [], []>} : vector<48x64xbf16>, vector<64x8xbf16>, vector<48x8xf32> -> vector<48x8xf32>
    %c0_196 = arith.constant 0 : index
    %c0_197 = arith.constant 0 : index
    %417 = vector.load %arg21[%c0_196, %c0_197] : memref<1x8xf32, #tpu.memory_space<vmem>>, vector<1x8xf32>
    %418 = vector.broadcast %417 : vector<1x8xf32> to vector<48x8xf32>
    %419 = arith.addf %416, %418 : vector<48x8xf32>
    %420 = vector.extract_strided_slice %419 {offsets = [0, 0], sizes = [1, 8], strides = [1, 1]} : vector<48x8xf32> to vector<1x8xf32>
    %c0_198 = arith.constant 0 : index
    %c0_199 = arith.constant 0 : index
    %421 = vector.load %arg22[%c0_198, %c0_199] : memref<2x8xf32, #tpu.memory_space<vmem>>, vector<1x8xf32>
    tpu.vector_store %arg22[%c0_198, %c0_199], %420 {strides = array<i32>} : memref<2x8xf32, #tpu.memory_space<vmem>>, vector<1x8xf32>,
    %422 = vector.extract_strided_slice %419 {offsets = [24, 0], sizes = [1, 8], strides = [1, 1]} : vector<48x8xf32> to vector<1x8xf32>
    %c1_200 = arith.constant 1 : index
    %c0_201 = arith.constant 0 : index
    %423 = vector.load %arg22[%c1_200, %c0_201] : memref<2x8xf32, #tpu.memory_space<vmem>>, vector<1x8xf32>
    tpu.vector_store %arg22[%c1_200, %c0_201], %422 {strides = array<i32>} : memref<2x8xf32, #tpu.memory_space<vmem>>, vector<1x8xf32>,
    return
  }
}

</mosaic_0001>

<llo_original>
// kernel: vit_forward.1
$region0: #{vit_forward.1}
  #allocation0 [shape = 'u32[]', space=smem, size = 0x4, offset = 0x4, fixed_abs, tag = 'smem constant byte address 0x4 - core index']
  #allocation1 [shape = 'u32[144,128]{1,0:T(1,128)}', space=vmem, size = 0x12000, scoped, tag = 'internal scratch']
  #allocation2 [shape = 'f32[48,64]{1,0:T(8,128)}', space=vmem, size = 0x6000, scoped, tag = 'scratch operand']
  #allocation3 [shape = 'f32[48,64]{1,0:T(8,128)}', space=vmem, size = 0x6000, scoped, tag = 'scratch operand']
  %s0 = inlined_call_operand.vmem [shape: bf16[32,192], index: 0, kind: input, shape index: {}]
  %s1 = inlined_call_operand.vmem [shape: bf16[192,64], index: 1, kind: input, shape index: {}]
  %s2 = inlined_call_operand.vmem [shape: f32[1,64], index: 2, kind: input, shape index: {}]
  %s3 = inlined_call_operand.vmem [shape: f32[1,64], index: 3, kind: input, shape index: {}]
  %s4 = inlined_call_operand.vmem [shape: f32[16,64], index: 4, kind: input, shape index: {}]
  %s5 = inlined_call_operand.vmem [shape: f32[48,48], index: 5, kind: input, shape index: {}]
  %s6 = inlined_call_operand.vmem [shape: f32[2,1,64], index: 6, kind: input, shape index: {}]
  %s7 = inlined_call_operand.vmem [shape: f32[2,1,64], index: 7, kind: input, shape index: {}]
  %s8 = inlined_call_operand.vmem [shape: bf16[2,64,192], index: 8, kind: input, shape index: {}]
  %s9 = inlined_call_operand.vmem [shape: f32[2,1,192], index: 9, kind: input, shape index: {}]
  %s10 = inlined_call_operand.vmem [shape: bf16[2,64,64], index: 10, kind: input, shape index: {}]
  %s11 = inlined_call_operand.vmem [shape: f32[2,1,64], index: 11, kind: input, shape index: {}]
  %s12 = inlined_call_operand.vmem [shape: f32[2,1,64], index: 12, kind: input, shape index: {}]
  %s13 = inlined_call_operand.vmem [shape: f32[2,1,64], index: 13, kind: input, shape index: {}]
  %s14 = inlined_call_operand.vmem [shape: bf16[2,64,256], index: 14, kind: input, shape index: {}]
  %s15 = inlined_call_operand.vmem [shape: f32[2,1,256], index: 15, kind: input, shape index: {}]
  %s16 = inlined_call_operand.vmem [shape: bf16[2,256,64], index: 16, kind: input, shape index: {}]
  %s17 = inlined_call_operand.vmem [shape: f32[2,1,64], index: 17, kind: input, shape index: {}]
  %s18 = inlined_call_operand.vmem [shape: f32[1,64], index: 18, kind: input, shape index: {}]
  %s19 = inlined_call_operand.vmem [shape: f32[1,64], index: 19, kind: input, shape index: {}]
  %s20 = inlined_call_operand.vmem [shape: bf16[64,8], index: 20, kind: input, shape index: {}]
  %s21 = inlined_call_operand.vmem [shape: f32[1,8], index: 21, kind: input, shape index: {}]
  %s22 = inlined_call_operand.hbm [shape: f32[2,8], index: 22, kind: output, shape index: {}]
  %s23 = sld [smem:[#allocation0]]
  $region98: #{vit_forward.1} parent=0
    _
  %s25 = ssub.s32 1, %s23
  %s26 = scalar_select 0, %s25, %s23
  $region1: #{vit_forward.1} parent=0
    #allocation4 [shape = 'u8[1024]{0}', space=vmem, size = 0x400, scoped, tag = 'output window, operand 0, single buffered']
    #allocation5 [shape = 's32[1]{0}', space=sflag, size = 0x4, scoped, tag = 'scoped memory for vit_forward.1']
    %27 = vsyncpa [#allocation5], 0
    // Predicated region
    $region2: #{vit_forward.1} parent=1 // pred_check
      _
    $region3: #{vit_forward.1} parent=1 // pred_check_branch
      %29 = sbr.rel (0) target = $region5
    $region4: #{vit_forward.1} parent=1 // pred_region
      _
    $region5: #{vit_forward.1} parent=1 // pred_fallthru
      _
    // Predicated region
    $region6: #{vit_forward.1} parent=1 // pred_check
      _
    $region7: #{vit_forward.1} parent=1 // pred_check_branch
      %31 = sbr.rel (0) target = $region9
    $region8: #{vit_forward.1} parent=1 // pred_region
      _
    $region9: #{vit_forward.1} parent=1 // pred_fallthru
      _
    // Predicated region
    $region10: #{vit_forward.1} parent=1 // pred_check
      _
    $region11: #{vit_forward.1} parent=1 // pred_check_branch
      %33 = sbr.rel (0) target = $region13
    $region12: #{vit_forward.1} parent=1 // pred_region
      _
    $region13: #{vit_forward.1} parent=1 // pred_fallthru
      _
    // Predicated region
    $region14: #{vit_forward.1} parent=1 // pred_check
      _
    $region15: #{vit_forward.1} parent=1 // pred_check_branch
      %35 = sbr.rel (0) target = $region17
    $region16: #{vit_forward.1} parent=1 // pred_region
      _
    $region17: #{vit_forward.1} parent=1 // pred_fallthru
      _
    // Predicated region
    $region18: #{vit_forward.1} parent=1 // pred_check
      _
    $region19: #{vit_forward.1} parent=1 // pred_check_branch
      %37 = sbr.rel (0) target = $region21
    $region20: #{vit_forward.1} parent=1 // pred_region
      _
    $region21: #{vit_forward.1} parent=1 // pred_fallthru
      _
    // Predicated region
    $region22: #{vit_forward.1} parent=1 // pred_check
      _
    $region23: #{vit_forward.1} parent=1 // pred_check_branch
      %39 = sbr.rel (0) target = $region25
    $region24: #{vit_forward.1} parent=1 // pred_region
      _
    $region25: #{vit_forward.1} parent=1 // pred_fallthru
      _
    // Predicated region
    $region26: #{vit_forward.1} parent=1 // pred_check
      _
    $region27: #{vit_forward.1} parent=1 // pred_check_branch
      %41 = sbr.rel (0) target = $region29
    $region28: #{vit_forward.1} parent=1 // pred_region
      _
    $region29: #{vit_forward.1} parent=1 // pred_fallthru
      _
    // Predicated region
    $region30: #{vit_forward.1} parent=1 // pred_check
      _
    $region31: #{vit_forward.1} parent=1 // pred_check_branch
      %43 = sbr.rel (0) target = $region33
    $region32: #{vit_forward.1} parent=1 // pred_region
      _
    $region33: #{vit_forward.1} parent=1 // pred_fallthru
      _
    // Predicated region
    $region34: #{vit_forward.1} parent=1 // pred_check
      _
    $region35: #{vit_forward.1} parent=1 // pred_check_branch
      %45 = sbr.rel (0) target = $region37
    $region36: #{vit_forward.1} parent=1 // pred_region
      _
    $region37: #{vit_forward.1} parent=1 // pred_fallthru
      _
    // Predicated region
    $region38: #{vit_forward.1} parent=1 // pred_check
      _
    $region39: #{vit_forward.1} parent=1 // pred_check_branch
      %47 = sbr.rel (0) target = $region41
    $region40: #{vit_forward.1} parent=1 // pred_region
      _
    $region41: #{vit_forward.1} parent=1 // pred_fallthru
      _
    // Predicated region
    $region42: #{vit_forward.1} parent=1 // pred_check
      _
    $region43: #{vit_forward.1} parent=1 // pred_check_branch
      %49 = sbr.rel (0) target = $region45
    $region44: #{vit_forward.1} parent=1 // pred_region
      _
    $region45: #{vit_forward.1} parent=1 // pred_fallthru
      _
    // Predicated region
    $region46: #{vit_forward.1} parent=1 // pred_check
      _
    $region47: #{vit_forward.1} parent=1 // pred_check_branch
      %51 = sbr.rel (0) target = $region49
    $region48: #{vit_forward.1} parent=1 // pred_region
      _
    $region49: #{vit_forward.1} parent=1 // pred_fallthru
      _
    // Predicated region
    $region50: #{vit_forward.1} parent=1 // pred_check
      _
    $region51: #{vit_forward.1} parent=1 // pred_check_branch
      %53 = sbr.rel (0) target = $region53
    $region52: #{vit_forward.1} parent=1 // pred_region
      _
    $region53: #{vit_forward.1} parent=1 // pred_fallthru
      _
    // Predicated region
    $region54: #{vit_forward.1} parent=1 // pred_check
      _
    $region55: #{vit_forward.1} parent=1 // pred_check_branch
      %55 = sbr.rel (0) target = $region57
    $region56: #{vit_forward.1} parent=1 // pred_region
      _
    $region57: #{vit_forward.1} parent=1 // pred_fallthru
      _
    // Predicated region
    $region58: #{vit_forward.1} parent=1 // pred_check
      _
    $region59: #{vit_forward.1} parent=1 // pred_check_branch
      %57 = sbr.rel (0) target = $region61
    $region60: #{vit_forward.1} parent=1 // pred_region
      _
    $region61: #{vit_forward.1} parent=1 // pred_fallthru
      _
    // Predicated region
    $region62: #{vit_forward.1} parent=1 // pred_check
      _
    $region63: #{vit_forward.1} parent=1 // pred_check_branch
      %59 = sbr.rel (0) target = $region65
    $region64: #{vit_forward.1} parent=1 // pred_region
      _
    $region65: #{vit_forward.1} parent=1 // pred_fallthru
      _
    // Predicated region
    $region66: #{vit_forward.1} parent=1 // pred_check
      _
    $region67: #{vit_forward.1} parent=1 // pred_check_branch
      %61 = sbr.rel (0) target = $region69
    $region68: #{vit_forward.1} parent=1 // pred_region
      _
    $region69: #{vit_forward.1} parent=1 // pred_fallthru
      _
    // Predicated region
    $region70: #{vit_forward.1} parent=1 // pred_check
      _
    $region71: #{vit_forward.1} parent=1 // pred_check_branch
      %63 = sbr.rel (0) target = $region73
    $region72: #{vit_forward.1} parent=1 // pred_region
      _
    $region73: #{vit_forward.1} parent=1 // pred_fallthru
      _
    // Predicated region
    $region74: #{vit_forward.1} parent=1 // pred_check
      _
    $region75: #{vit_forward.1} parent=1 // pred_check_branch
      %65 = sbr.rel (0) target = $region77
    $region76: #{vit_forward.1} parent=1 // pred_region
      _
    $region77: #{vit_forward.1} parent=1 // pred_fallthru
      _
    // Predicated region
    $region78: #{vit_forward.1} parent=1 // pred_check
      _
    $region79: #{vit_forward.1} parent=1 // pred_check_branch
      %67 = sbr.rel (0) target = $region81
    $region80: #{vit_forward.1} parent=1 // pred_region
      _
    $region81: #{vit_forward.1} parent=1 // pred_fallthru
      _
    // Predicated region
    $region82: #{vit_forward.1} parent=1 // pred_check
      _
    $region83: #{vit_forward.1} parent=1 // pred_check_branch
      %69 = sbr.rel (0) target = $region85
    $region84: #{vit_forward.1} parent=1 // pred_region
      _
    $region85: #{vit_forward.1} parent=1 // pred_fallthru
      _
    // Predicated region
    $region86: #{vit_forward.1} parent=1 // pred_check
      _
    $region87: #{vit_forward.1} parent=1 // pred_check_branch
      %71 = sbr.rel (0) target = $region89
    $region88: #{vit_forward.1} parent=1 // pred_region
      _
    $region89: #{vit_forward.1} parent=1 // pred_fallthru
      _
    %v73 = vld [vmem:[%s0] sm:$0xff]
    %v74 = vld [vmem:[%s0 + $0x8] sm:$0xff]
    %v75 = vld [vmem:[%s0 + $0x10] sm:$0xff]
    %v76 = vld [vmem:[%s0 + $0x18] sm:$0xff]
    %v77 = vld [vmem:[%s1] sm:$0xf]
    %v78 = vld [vmem:[%s1 + $0x4] sm:$0xf]
    %v79 = vld [vmem:[%s1 + $0x8] sm:$0xf]
    %v80 = vld [vmem:[%s1 + $0xc] sm:$0xf]
    %v81 = vld [vmem:[%s1 + $0x10] sm:$0xf]
    %v82 = vld [vmem:[%s1 + $0x14] sm:$0xf]
    %v83 = vld [vmem:[%s1 + $0x18] sm:$0xf]
    %v84 = vld [vmem:[%s1 + $0x1c] sm:$0xf]
    %v85 = vld [vmem:[%s1 + $0x20] sm:$0xf]
    %v86 = vld [vmem:[%s1 + $0x24] sm:$0xf]
    %v87 = vld [vmem:[%s1 + $0x28] sm:$0xf]
    %v88 = vld [vmem:[%s1 + $0x2c] sm:$0xf]
    %v89 = vld [vmem:[%s1 + $0x30] sm:$0xf]
    %v90 = vld [vmem:[%s1 + $0x34] sm:$0xf]
    %v91 = vld [vmem:[%s1 + $0x38] sm:$0xf]
    %v92 = vld [vmem:[%s1 + $0x3c] sm:$0xf]
    %v93 = vld [vmem:[%s1 + $0x40] sm:$0xf]
    %v94 = vld [vmem:[%s1 + $0x44] sm:$0xf]
    %v95 = vld [vmem:[%s1 + $0x48] sm:$0xf]
    %v96 = vld [vmem:[%s1 + $0x4c] sm:$0xf]
    %v97 = vld [vmem:[%s1 + $0x50] sm:$0xf]
    %v98 = vld [vmem:[%s1 + $0x54] sm:$0xf]
    %v99 = vld [vmem:[%s1 + $0x58] sm:$0xf]
    %v100 = vld [vmem:[%s1 + $0x5c] sm:$0xf]
    %v101 = vld [vmem:[%s2] sm:$0x1]
    %v103 = vlaneseq
    %v104 = vshrl.u32 %v103, 7
    %v105 = vsub.s32 0, %v104
    %v106 = vrot.slane %v101, %v105
    %v112 = vunpack.c.l.b16 %v73
    %v113 = vunpack.c.h.b16 %v73
    %v114 = vunpack.c.l.b16 %v74
    %v115 = vunpack.c.h.b16 %v74
    %v116 = vunpack.c.l.b16 %v75
    %v117 = vunpack.c.h.b16 %v75
    %v118 = vunpack.c.l.b16 %v76
    %v119 = vunpack.c.h.b16 %v76
    %v120 = vpack.c.b16 %v114, %v112
    %v121 = vpack.c.b16 %v115, %v113
    %v122 = vpack.c.b16 %v118, %v116
    %v123 = vpack.c.b16 %v119, %v117
    %v150 = vunpack.c.l.b16 %v77
    %v151 = vunpack.c.l.b16 %v78
    %v152 = vunpack.c.l.b16 %v79
    %v153 = vunpack.c.l.b16 %v80
    %v154 = vunpack.c.l.b16 %v81
    %v155 = vunpack.c.l.b16 %v82
    %v156 = vunpack.c.l.b16 %v83
    %v157 = vunpack.c.l.b16 %v84
    %v158 = vunpack.c.l.b16 %v85
    %v159 = vunpack.c.l.b16 %v86
    %v160 = vunpack.c.l.b16 %v87
    %v161 = vunpack.c.l.b16 %v88
    %v162 = vunpack.c.l.b16 %v89
    %v163 = vunpack.c.l.b16 %v90
    %v164 = vunpack.c.l.b16 %v91
    %v165 = vunpack.c.l.b16 %v92
    %v166 = vunpack.c.l.b16 %v93
    %v167 = vunpack.c.l.b16 %v94
    %v168 = vunpack.c.l.b16 %v95
    %v169 = vunpack.c.l.b16 %v96
    %v170 = vunpack.c.l.b16 %v97
    %v171 = vunpack.c.l.b16 %v98
    %v172 = vunpack.c.l.b16 %v99
    %v173 = vunpack.c.l.b16 %v100
    %v174 = vpack.c.b16 %v151, %v150
    %v175 = vpack.c.b16 %v153, %v152
    %v176 = vpack.c.b16 %v155, %v154
    %v177 = vpack.c.b16 %v157, %v156
    %v178 = vpack.c.b16 %v159, %v158
    %v179 = vpack.c.b16 %v161, %v160
    %v180 = vpack.c.b16 %v163, %v162
    %v181 = vpack.c.b16 %v165, %v164
    %v182 = vpack.c.b16 %v167, %v166
    %v183 = vpack.c.b16 %v169, %v168
    %v184 = vpack.c.b16 %v171, %v170
    %v185 = vpack.c.b16 %v173, %v172
    %vm198 = vcmask 523264
    %v200 = vsel %vm198, %v121, 0
    %v203 = vsel %vm198, %v123, 0
    %205 = vmatprep.subr.bf16.mxu0 0
    %206 = vmatpush1.bf16.msra.mxu0 %v174
    %207 = vmatprep.subr.bf16.mxu0 0
    %208 = vmatpush1.bf16.msra.mxu0 %v175
    %209 = vmatprep.subr.bf16.mxu0 0
    %210 = vmatpush1.bf16.msra.mxu0 %v176
    %211 = vmatprep.subr.bf16.mxu0 0
    %212 = vmatpush1.bf16.msra.mxu0 %v177
    %213 = vmatprep.subr.bf16.mxu0 0
    %214 = vmatpush1.bf16.msra.mxu0 %v178
    %215 = vmatprep.subr.bf16.mxu0 0
    %216 = vmatpush1.bf16.msra.mxu0 %v179
    %217 = vmatprep.subr.bf16.mxu0 0
    %218 = vmatpush1.bf16.msra.mxu0 %v180
    %219 = vmatprep.subr.bf16.mxu0 0
    %220 = vmatpush1.bf16.msra.mxu0 %v181
    %221 = vmatprep.subr.bf16.mxu0 0
    %222 = vmatpush1.bf16.msra.mxu0 %v182
    %223 = vmatprep.subr.bf16.mxu0 0
    %224 = vmatpush1.bf16.msra.mxu0 %v183
    %225 = vmatprep.subr.bf16.mxu0 0
    %226 = vmatpush1.bf16.msra.mxu0 %v184
    %227 = vmatprep.subr.bf16.mxu0 0
    %228 = vmatpush1.bf16.msra.mxu0 %v185
    %229 = vmatprep.subr.bf16.mxu0 0
    %230 = vmatpush1.bf16.msra.mxu0 0
    %231 = vmatprep.subr.bf16.mxu0 0
    %232 = vmatpush1.bf16.msra.mxu0 0
    %233 = vmatprep.subr.bf16.mxu0 0
    %234 = vmatpush1.bf16.msra.mxu0 0
    %235 = vmatprep.subr.bf16.mxu0 0
    %236 = vmatpush1.bf16.msra.mxu0 0
    %237 = vmatprep.mubr.bf16.mxu0 %v200
    %238 = vmatmul.mubr.bf16.gmra.mrb[0].mxu0 %v120
    %v239 = vpop.f32.mrb[0].mxu0
    %v240 = vadd.f32 %v106, %v239
    %v241 = vpop.f32.mrb[0].mxu0
    %v242 = vpop.f32.mrb[0].mxu0
    %v243 = vadd.f32 %v106, %v242
    %v244 = vpop.f32.mrb[0].mxu0
    %245 = vmatprep.mubr.bf16.mxu0 %v203
    %246 = vmatmul.mubr.bf16.gmra.mrb[0].mxu0 %v122
    %v247 = vpop.f32.mrb[0].mxu0
    %v248 = vadd.f32 %v106, %v247
    %v249 = vpop.f32.mrb[0].mxu0
    %v250 = vpop.f32.mrb[0].mxu0
    %v251 = vadd.f32 %v106, %v250
    %v252 = vpop.f32.mrb[0].mxu0
    %253 = vdwg.mxu0
    %254 = vst.msk [vmem:[#allocation2] sm:$0xff] %vm198, 0.0
    %255 = vst.msk [vmem:[#allocation2 + $0x8] sm:$0xff] %vm198, 0.0
    %256 = vst.msk [vmem:[#allocation2 + $0x10] sm:$0xff] %vm198, 0.0
    %257 = vst.msk [vmem:[#allocation2 + $0x18] sm:$0xff] %vm198, 0.0
    %258 = vst.msk [vmem:[#allocation2 + $0x20] sm:$0xff] %vm198, 0.0
    %259 = vst.msk [vmem:[#allocation2 + $0x28] sm:$0xff] %vm198, 0.0
    %v260 = vld [vmem:[%s3] sm:$0x1]
    %vm261 = vcmask 516096
    %262 = vst.msk [vmem:[#allocation2] sm:$0x1] %vm261, %v260
    %v263 = vld [vmem:[%s4] sm:$0xff]
    %v264 = vld [vmem:[%s4 + $0x8] sm:$0xff]
    %v265 = vadd.f32 %v240, %v263
    %v266 = vadd.f32 %v243, %v264
    %267 = vst.msk [vmem:[#allocation2 + $0x1] sm:$0xff] %vm198, %v265
    %268 = vst.msk [vmem:[#allocation2 + $0x9] sm:$0xff] %vm198, %v266
    %v269 = vld [vmem:[%s3] sm:$0x1]
    %270 = vst.msk [vmem:[#allocation2 + $0x18] sm:$0x1] %vm261, %v269
    %v271 = vld [vmem:[%s4] sm:$0xff]
    %v272 = vld [vmem:[%s4 + $0x8] sm:$0xff]
    %v273 = vadd.f32 %v248, %v271
    %v274 = vadd.f32 %v251, %v272
    %275 = vst.msk [vmem:[#allocation2 + $0x19] sm:$0xff] %vm198, %v273
    %276 = vst.msk [vmem:[#allocation2 + $0x21] sm:$0xff] %vm198, %v274
    %v277 = vld [vmem:[#allocation2] sm:$0xff]
    %v278 = vld [vmem:[#allocation2 + $0x8] sm:$0xff]
    %v279 = vld [vmem:[#allocation2 + $0x10] sm:$0xff]
    %v280 = vld [vmem:[#allocation2 + $0x18] sm:$0xff]
    %v281 = vld [vmem:[#allocation2 + $0x20] sm:$0xff]
    %v282 = vld [vmem:[#allocation2 + $0x28] sm:$0xff]
    %v283 = vld [vmem:[%s5] sm:$0xff]
    %v284 = vld [vmem:[%s5 + $0x8] sm:$0xff]
    %v285 = vld [vmem:[%s5 + $0x10] sm:$0xff]
    %v286 = vld [vmem:[%s5 + $0x18] sm:$0xff]
    %v287 = vld [vmem:[%s5 + $0x20] sm:$0xff]
    %v288 = vld [vmem:[%s5 + $0x28] sm:$0xff]
    %v289 = vld [vmem:[%s6] sm:$0x1]
    %v290 = vld [vmem:[%s7] sm:$0x1]
    %v291 = vsel %vm198, %v277, 0.0
    %292 = vadd.xlane.f32.xlu0 %v291
    %v293 = vpop.xlane.xlu0 %292
    %v294 = vsel %vm198, %v278, 0.0
    %295 = vadd.xlane.f32.xlu0 %v294
    %v296 = vpop.xlane.xlu0 %295
    %v297 = vsel %vm198, %v279, 0.0
    %298 = vadd.xlane.f32.xlu0 %v297
    %v299 = vpop.xlane.xlu0 %298
    %v300 = vsel %vm198, %v280, 0.0
    %301 = vadd.xlane.f32.xlu0 %v300
    %v302 = vpop.xlane.xlu0 %301
    %v303 = vsel %vm198, %v281, 0.0
    %304 = vadd.xlane.f32.xlu0 %v303
    %v305 = vpop.xlane.xlu0 %304
    %v306 = vsel %vm198, %v282, 0.0
    %307 = vadd.xlane.f32.xlu0 %v306
    %v308 = vpop.xlane.xlu0 %307
    %v309 = vrcp.pop 64.0
    %v310 = vmul.f32 %v293, %v309
    %v311 = vmul.f32 %v296, %v309
    %v312 = vmul.f32 %v299, %v309
    %v313 = vmul.f32 %v302, %v309
    %v314 = vmul.f32 %v305, %v309
    %v315 = vmul.f32 %v308, %v309
    %v316 = vsub.f32 %v277, %v310
    %v317 = vsub.f32 %v278, %v311
    %v318 = vsub.f32 %v279, %v312
    %v319 = vsub.f32 %v280, %v313
    %v320 = vsub.f32 %v281, %v314
    %v321 = vsub.f32 %v282, %v315
    %v322 = vmul.f32 %v316, %v316
    %v323 = vmul.f32 %v317, %v317
    %v324 = vmul.f32 %v318, %v318
    %v325 = vmul.f32 %v319, %v319
    %v326 = vmul.f32 %v320, %v320
    %v327 = vmul.f32 %v321, %v321
    %v328 = vsel %vm198, %v322, 0.0
    %329 = vadd.xlane.f32.xlu0 %v328
    %v330 = vpop.xlane.xlu0 %329
    %v331 = vsel %vm198, %v323, 0.0
    %332 = vadd.xlane.f32.xlu0 %v331
    %v333 = vpop.xlane.xlu0 %332
    %v334 = vsel %vm198, %v324, 0.0
    %335 = vadd.xlane.f32.xlu0 %v334
    %v336 = vpop.xlane.xlu0 %335
    %v337 = vsel %vm198, %v325, 0.0
    %338 = vadd.xlane.f32.xlu0 %v337
    %v339 = vpop.xlane.xlu0 %338
    %v340 = vsel %vm198, %v326, 0.0
    %341 = vadd.xlane.f32.xlu0 %v340
    %v342 = vpop.xlane.xlu0 %341
    %v343 = vsel %vm198, %v327, 0.0
    %344 = vadd.xlane.f32.xlu0 %v343
    %v345 = vpop.xlane.xlu0 %344
    %v346 = vmul.f32 %v330, %v309
    %v347 = vmul.f32 %v333, %v309
    %v348 = vmul.f32 %v336, %v309
    %v349 = vmul.f32 %v339, %v309
    %v350 = vmul.f32 %v342, %v309
    %v351 = vmul.f32 %v345, %v309
    %v352 = vadd.f32 %v346, 1e-06
    %v353 = vadd.f32 %v347, 1e-06
    %v354 = vadd.f32 %v348, 1e-06
    %v355 = vadd.f32 %v349, 1e-06
    %v356 = vadd.f32 %v350, 1e-06
    %v357 = vadd.f32 %v351, 1e-06
    %v358 = vrsqrt.pop %v352
    %v359 = vrsqrt.pop %v353
    %v360 = vrsqrt.pop %v354
    %v361 = vrsqrt.pop %v355
    %v362 = vrsqrt.pop %v356
    %v363 = vrsqrt.pop %v357
    %v364 = vmul.f32 %v316, %v358
    %v365 = vmul.f32 %v317, %v359
    %v366 = vmul.f32 %v318, %v360
    %v367 = vmul.f32 %v319, %v361
    %v368 = vmul.f32 %v320, %v362
    %v369 = vmul.f32 %v321, %v363
    %v371 = vlaneseq
    %v372 = vshrl.u32 %v371, 7
    %v373 = vsub.s32 0, %v372
    %v374 = vrot.slane %v289, %v373
    %v376 = vmul.f32 %v364, %v374
    %v377 = vmul.f32 %v365, %v374
    %v378 = vmul.f32 %v366, %v374
    %v379 = vmul.f32 %v367, %v374
    %v380 = vmul.f32 %v368, %v374
    %v381 = vmul.f32 %v369, %v374
    %v383 = vlaneseq
    %v384 = vshrl.u32 %v383, 7
    %v385 = vsub.s32 0, %v384
    %v386 = vrot.slane %v290, %v385
    %v388 = vadd.f32 %v376, %v386
    %v389 = vadd.f32 %v377, %v386
    %v390 = vadd.f32 %v378, %v386
    %v391 = vadd.f32 %v379, %v386
    %v392 = vadd.f32 %v380, %v386
    %v393 = vadd.f32 %v381, %v386
    %v394 = vpack.c.bf16 %v389, %v388
    %v395 = vpack.c.bf16 %v391, %v390
    %v396 = vpack.c.bf16 %v393, %v392
    %v397 = vld [vmem:[%s8] sm:$0xff]
    %v398 = vld [vmem:[%s8 + $0x8] sm:$0xff]
    %v399 = vld [vmem:[%s8 + $0x10] sm:$0xff]
    %v400 = vld [vmem:[%s8 + $0x18] sm:$0xff]
    %v401 = vld [vmem:[%s8 + $0x20] sm:$0xff]
    %v402 = vld [vmem:[%s8 + $0x28] sm:$0xff]
    %v403 = vld [vmem:[%s8 + $0x30] sm:$0xff]
    %v404 = vld [vmem:[%s8 + $0x38] sm:$0xff]
    %v405 = vld [vmem:[%s9] sm:$0x3]
    %v407 = vlaneseq
    %v408 = vshrl.u32 %v407, 7
    %v409 = vsub.s32 0, %v408
    %v410 = vrot.slane %v405, %v409
    %v411 = vlaneseq
    %v412 = vshrl.u32 %v411, 7
    %v413 = vsub.s32 1, %v412
    %v414 = vrot.slane %v405, %v413
    %v425 = vunpack.c.l.b16 %v397
    %v426 = vunpack.c.h.b16 %v397
    %v427 = vunpack.c.l.b16 %v398
    %v428 = vunpack.c.h.b16 %v398
    %v429 = vunpack.c.l.b16 %v399
    %v430 = vunpack.c.h.b16 %v399
    %v431 = vunpack.c.l.b16 %v400
    %v432 = vunpack.c.h.b16 %v400
    %v433 = vunpack.c.l.b16 %v401
    %v434 = vunpack.c.h.b16 %v401
    %v435 = vunpack.c.l.b16 %v402
    %v436 = vunpack.c.h.b16 %v402
    %v437 = vunpack.c.l.b16 %v403
    %v438 = vunpack.c.h.b16 %v403
    %v439 = vunpack.c.l.b16 %v404
    %v440 = vunpack.c.h.b16 %v404
    %v441 = vpack.c.b16 %v427, %v425
    %v442 = vpack.c.b16 %v428, %v426
    %v443 = vpack.c.b16 %v431, %v429
    %v444 = vpack.c.b16 %v432, %v430
    %v445 = vpack.c.b16 %v435, %v433
    %v446 = vpack.c.b16 %v436, %v434
    %v447 = vpack.c.b16 %v439, %v437
    %v448 = vpack.c.b16 %v440, %v438
    %v458 = vsel %vm198, %v394, 0
    %v461 = vsel %vm198, %v395, 0
    %v464 = vsel %vm198, %v396, 0
    %466 = vmatprep.subr.bf16.mxu0 %v442
    %467 = vmatpush1.bf16.msra.mxu0 %v441
    %468 = vmatprep.subr.bf16.mxu0 %v444
    %469 = vmatpush1.bf16.msra.mxu0 %v443
    %470 = vmatprep.subr.bf16.mxu0 %v446
    %471 = vmatpush1.bf16.msra.mxu0 %v445
    %472 = vmatprep.subr.bf16.mxu0 %v448
    %473 = vmatpush1.bf16.msra.mxu0 %v447
    %474 = vmatprep.subr.bf16.mxu0 0
    %475 = vmatpush1.bf16.msra.mxu0 0
    %476 = vmatprep.subr.bf16.mxu0 0
    %477 = vmatpush1.bf16.msra.mxu0 0
    %478 = vmatprep.subr.bf16.mxu0 0
    %479 = vmatpush1.bf16.msra.mxu0 0
    %480 = vmatprep.subr.bf16.mxu0 0
    %481 = vmatpush1.bf16.msra.mxu0 0
    %482 = vmatprep.subr.bf16.mxu0 0
    %483 = vmatpush1.bf16.msra.mxu0 0
    %484 = vmatprep.subr.bf16.mxu0 0
    %485 = vmatpush1.bf16.msra.mxu0 0
    %486 = vmatprep.subr.bf16.mxu0 0
    %487 = vmatpush1.bf16.msra.mxu0 0
    %488 = vmatprep.subr.bf16.mxu0 0
    %489 = vmatpush1.bf16.msra.mxu0 0
    %490 = vmatprep.subr.bf16.mxu0 0
    %491 = vmatpush1.bf16.msra.mxu0 0
    %492 = vmatprep.subr.bf16.mxu0 0
    %493 = vmatpush1.bf16.msra.mxu0 0
    %494 = vmatprep.subr.bf16.mxu0 0
    %495 = vmatpush1.bf16.msra.mxu0 0
    %496 = vmatprep.subr.bf16.mxu0 0
    %497 = vmatpush1.bf16.msra.mxu0 0
    %498 = vmatprep.mubr.bf16.mxu0 0
    %499 = vmatmul.mubr.bf16.gmra.mrb[0].mxu0 %v458
    %v500 = vpop.f32.mrb[0].mxu0
    %v501 = vadd.f32 %v410, %v500
    %v502 = vpop.f32.mrb[0].mxu0
    %v503 = vadd.f32 %v414, %v502
    %v504 = vpop.f32.mrb[0].mxu0
    %v505 = vadd.f32 %v410, %v504
    %v506 = vpop.f32.mrb[0].mxu0
    %v507 = vadd.f32 %v414, %v506
    %508 = vmatprep.mubr.bf16.mxu0 0
    %509 = vmatmul.mubr.bf16.gmra.mrb[0].mxu0 %v461
    %v510 = vpop.f32.mrb[0].mxu0
    %v511 = vadd.f32 %v410, %v510
    %v512 = vpop.f32.mrb[0].mxu0
    %v513 = vadd.f32 %v414, %v512
    %v514 = vpop.f32.mrb[0].mxu0
    %v515 = vadd.f32 %v410, %v514
    %v516 = vpop.f32.mrb[0].mxu0
    %v517 = vadd.f32 %v414, %v516
    %518 = vmatprep.mubr.bf16.mxu0 0
    %519 = vmatmul.mubr.bf16.gmra.mrb[0].mxu0 %v464
    %v520 = vpop.f32.mrb[0].mxu0
    %v521 = vadd.f32 %v410, %v520
    %v522 = vpop.f32.mrb[0].mxu0
    %v523 = vadd.f32 %v414, %v522
    %v524 = vpop.f32.mrb[0].mxu0
    %v525 = vadd.f32 %v410, %v524
    %v526 = vpop.f32.mrb[0].mxu0
    %v527 = vadd.f32 %v414, %v526
    %528 = vdwg.mxu0
    %v529 = vmul.f32 %v501, 0.25
    %v530 = vmul.f32 %v505, 0.25
    %v531 = vmul.f32 %v511, 0.25
    %v532 = vmul.f32 %v515, 0.25
    %v533 = vmul.f32 %v521, 0.25
    %v534 = vmul.f32 %v525, 0.25
    %v535 = vpack.c.bf16 %v530, %v529
    %v536 = vpack.c.bf16 %v532, %v531
    %v537 = vpack.c.bf16 %v534, %v533
    %v538 = vpack.c.bf16 %v505, %v501
    %v539 = vpack.c.bf16 %v515, %v511
    %v540 = vpack.c.bf16 %v525, %v521
    %v541 = vpack.c.bf16 %v507, %v503
    %v542 = vpack.c.bf16 %v517, %v513
    %v543 = vpack.c.bf16 %v527, %v523
    %547 = vrot.lane.b32.xlu0 %v538, 64
    %v548 = vpop.permute.xlu0 %547
    %549 = vrot.lane.b32.xlu0 %v539, 64
    %v550 = vpop.permute.xlu0 %549
    %551 = vrot.lane.b32.xlu0 %v540, 64
    %v552 = vpop.permute.xlu0 %551
    %vm553 = vcmask 130048
    %v555 = vsel %vm553, %v535, 0
    %v558 = vsel %vm553, %v536, 0
    %v561 = vsel %vm553, %v537, 0
    %v564 = vsel %vm553, %v548, 0
    %v567 = vsel %vm553, %v550, 0
    %v570 = vsel %vm553, %v552, 0
    %572 = vmatprep.subr.bf16.mxu0 0
    %573 = vmatpush1.bf16.xpose.msra.mxu0 %v564
    %574 = vmatprep.subr.bf16.mxu0 0
    %575 = vmatpush1.bf16.xpose.msra.mxu0 %v567
    %576 = vmatprep.subr.bf16.mxu0 0
    %577 = vmatpush1.bf16.xpose.msra.mxu0 %v570
    %578 = vmatprep.subr.bf16.mxu0 0
    %579 = vmatpush1.bf16.xpose.msra.mxu0 0
    %580 = vmatprep.subr.bf16.mxu0 0
    %581 = vmatpush1.bf16.xpose.msra.mxu0 0
    %582 = vmatprep.subr.bf16.mxu0 0
    %583 = vmatpush1.bf16.xpose.msra.mxu0 0
    %584 = vmatprep.subr.bf16.mxu0 0
    %585 = vmatpush1.bf16.xpose.msra.mxu0 0
    %586 = vmatprep.subr.bf16.mxu0 0
    %587 = vmatpush1.bf16.xpose.msra.mxu0 0
    %588 = vmatprep.subr.bf16.mxu0 0
    %589 = vmatpush1.bf16.xpose.msra.mxu0 0
    %590 = vmatprep.subr.bf16.mxu0 0
    %591 = vmatpush1.bf16.xpose.msra.mxu0 0
    %592 = vmatprep.subr.bf16.mxu0 0
    %593 = vmatpush1.bf16.xpose.msra.mxu0 0
    %594 = vmatprep.subr.bf16.mxu0 0
    %595 = vmatpush1.bf16.xpose.msra.mxu0 0
    %596 = vmatprep.subr.bf16.mxu0 0
    %597 = vmatpush1.bf16.xpose.msra.mxu0 0
    %598 = vmatprep.subr.bf16.mxu0 0
    %599 = vmatpush1.bf16.xpose.msra.mxu0 0
    %600 = vmatprep.subr.bf16.mxu0 0
    %601 = vmatpush1.bf16.xpose.msra.mxu0 0
    %602 = vmatprep.subr.bf16.mxu0 0
    %603 = vmatpush1.bf16.xpose.msra.mxu0 0
    %604 = vmatprep.mubr.bf16.mxu0 0
    %605 = vmatmul.mubr.bf16.gmra.mrb[0].mxu0 %v555
    %v606 = vpop.f32.mrb[0].mxu0
    %v607 = vadd.f32 %v283, %v606
    %v608 = vpop.f32.mrb[0].mxu0
    %v609 = vpop.f32.mrb[0].mxu0
    %v610 = vadd.f32 %v284, %v609
    %v611 = vpop.f32.mrb[0].mxu0
    %612 = vmatprep.mubr.bf16.mxu0 0
    %613 = vmatmul.mubr.bf16.gmra.mrb[0].mxu0 %v558
    %v614 = vpop.f32.mrb[0].mxu0
    %v615 = vadd.f32 %v285, %v614
    %v616 = vpop.f32.mrb[0].mxu0
    %v617 = vpop.f32.mrb[0].mxu0
    %v618 = vadd.f32 %v286, %v617
    %v619 = vpop.f32.mrb[0].mxu0
    %620 = vmatprep.mubr.bf16.mxu0 0
    %621 = vmatmul.mubr.bf16.gmra.mrb[0].mxu0 %v561
    %v622 = vpop.f32.mrb[0].mxu0
    %v623 = vadd.f32 %v287, %v622
    %v624 = vpop.f32.mrb[0].mxu0
    %v625 = vpop.f32.mrb[0].mxu0
    %v626 = vadd.f32 %v288, %v625
    %v627 = vpop.f32.mrb[0].mxu0
    %628 = vdwg.mxu0
    %vm629 = vcmask 392192
    %v630 = vsel %vm629, %v607, -inf
    %631 = vmax.xlane.f32.xlu0 %v630
    %v632 = vpop.xlane.xlu0 %631
    %v633 = vsel %vm629, %v610, -inf
    %634 = vmax.xlane.f32.xlu0 %v633
    %v635 = vpop.xlane.xlu0 %634
    %v636 = vsel %vm629, %v615, -inf
    %637 = vmax.xlane.f32.xlu0 %v636
    %v638 = vpop.xlane.xlu0 %637
    %v639 = vsel %vm629, %v618, -inf
    %640 = vmax.xlane.f32.xlu0 %v639
    %v641 = vpop.xlane.xlu0 %640
    %v642 = vsel %vm629, %v623, -inf
    %643 = vmax.xlane.f32.xlu0 %v642
    %v644 = vpop.xlane.xlu0 %643
    %v645 = vsel %vm629, %v626, -inf
    %646 = vmax.xlane.f32.xlu0 %v645
    %v647 = vpop.xlane.xlu0 %646
    %v648 = vsub.f32 %v607, %v632
    %v649 = vsub.f32 %v610, %v635
    %v650 = vsub.f32 %v615, %v638
    %v651 = vsub.f32 %v618, %v641
    %v652 = vsub.f32 %v623, %v644
    %v653 = vsub.f32 %v626, %v647
    %v654 = vmul.f32 %v648, 1.442695
    %v655 = vpow.pop %v654
    %v656 = vmul.f32 %v649, 1.442695
    %v657 = vpow.pop %v656
    %v658 = vmul.f32 %v650, 1.442695
    %v659 = vpow.pop %v658
    %v660 = vmul.f32 %v651, 1.442695
    %v661 = vpow.pop %v660
    %v662 = vmul.f32 %v652, 1.442695
    %v663 = vpow.pop %v662
    %v664 = vmul.f32 %v653, 1.442695
    %v665 = vpow.pop %v664
    %v666 = vsel %vm629, %v655, 0.0
    %667 = vadd.xlane.f32.xlu0 %v666
    %v668 = vpop.xlane.xlu0 %667
    %v669 = vsel %vm629, %v657, 0.0
    %670 = vadd.xlane.f32.xlu0 %v669
    %v671 = vpop.xlane.xlu0 %670
    %v672 = vsel %vm629, %v659, 0.0
    %673 = vadd.xlane.f32.xlu0 %v672
    %v674 = vpop.xlane.xlu0 %673
    %v675 = vsel %vm629, %v661, 0.0
    %676 = vadd.xlane.f32.xlu0 %v675
    %v677 = vpop.xlane.xlu0 %676
    %v678 = vsel %vm629, %v663, 0.0
    %679 = vadd.xlane.f32.xlu0 %v678
    %v680 = vpop.xlane.xlu0 %679
    %v681 = vsel %vm629, %v665, 0.0
    %682 = vadd.xlane.f32.xlu0 %v681
    %v683 = vpop.xlane.xlu0 %682
    %v684 = vrcp.pop %v668
    %v685 = vrcp.pop %v671
    %v686 = vrcp.pop %v674
    %v687 = vrcp.pop %v677
    %v688 = vrcp.pop %v680
    %v689 = vrcp.pop %v683
    %v690 = vmul.f32 %v655, %v684
    %v691 = vmul.f32 %v657, %v685
    %v692 = vmul.f32 %v659, %v686
    %v693 = vmul.f32 %v661, %v687
    %v694 = vmul.f32 %v663, %v688
    %v695 = vmul.f32 %v665, %v689
    %v696 = vpack.c.bf16 %v691, %v690
    %v697 = vpack.c.bf16 %v693, %v692
    %v698 = vpack.c.bf16 %v695, %v694
    %v700 = vsel %vm629, %v696, 0
    %v703 = vsel %vm629, %v697, 0
    %v706 = vsel %vm629, %v698, 0
    %708 = vmatprep.subr.bf16.mxu0 0
    %709 = vmatpush1.bf16.msra.mxu0 %v541
    %710 = vmatprep.subr.bf16.mxu0 0
    %711 = vmatpush1.bf16.msra.mxu0 %v542
    %712 = vmatprep.subr.bf16.mxu0 0
    %713 = vmatpush1.bf16.msra.mxu0 %v543
    %714 = vmatprep.subr.bf16.mxu0 0
    %715 = vmatpush1.bf16.msra.mxu0 0
    %716 = vmatprep.subr.bf16.mxu0 0
    %717 = vmatpush1.bf16.msra.mxu0 0
    %718 = vmatprep.subr.bf16.mxu0 0
    %719 = vmatpush1.bf16.msra.mxu0 0
    %720 = vmatprep.subr.bf16.mxu0 0
    %721 = vmatpush1.bf16.msra.mxu0 0
    %722 = vmatprep.subr.bf16.mxu0 0
    %723 = vmatpush1.bf16.msra.mxu0 0
    %724 = vmatprep.subr.bf16.mxu0 0
    %725 = vmatpush1.bf16.msra.mxu0 0
    %726 = vmatprep.subr.bf16.mxu0 0
    %727 = vmatpush1.bf16.msra.mxu0 0
    %728 = vmatprep.subr.bf16.mxu0 0
    %729 = vmatpush1.bf16.msra.mxu0 0
    %730 = vmatprep.subr.bf16.mxu0 0
    %731 = vmatpush1.bf16.msra.mxu0 0
    %732 = vmatprep.subr.bf16.mxu0 0
    %733 = vmatpush1.bf16.msra.mxu0 0
    %734 = vmatprep.subr.bf16.mxu0 0
    %735 = vmatpush1.bf16.msra.mxu0 0
    %736 = vmatprep.subr.bf16.mxu0 0
    %737 = vmatpush1.bf16.msra.mxu0 0
    %738 = vmatprep.subr.bf16.mxu0 0
    %739 = vmatpush1.bf16.msra.mxu0 0
    %740 = vmatprep.mubr.bf16.mxu0 0
    %741 = vmatmul.mubr.bf16.gmra.mrb[0].mxu0 %v700
    %v742 = vpop.f32.mrb[0].mxu0
    %v743 = vadd.f32 0.0, %v742
    %v744 = vpop.f32.mrb[0].mxu0
    %v745 = vpop.f32.mrb[0].mxu0
    %v746 = vadd.f32 0.0, %v745
    %v747 = vpop.f32.mrb[0].mxu0
    %748 = vmatprep.mubr.bf16.mxu0 0
    %749 = vmatmul.mubr.bf16.gmra.mrb[0].mxu0 %v703
    %v750 = vpop.f32.mrb[0].mxu0
    %v751 = vadd.f32 0.0, %v750
    %v752 = vpop.f32.mrb[0].mxu0
    %v753 = vpop.f32.mrb[0].mxu0
    %v754 = vadd.f32 0.0, %v753
    %v755 = vpop.f32.mrb[0].mxu0
    %756 = vmatprep.mubr.bf16.mxu0 0
    %757 = vmatmul.mubr.bf16.gmra.mrb[0].mxu0 %v706
    %v758 = vpop.f32.mrb[0].mxu0
    %v759 = vadd.f32 0.0, %v758
    %v760 = vpop.f32.mrb[0].mxu0
    %v761 = vpop.f32.mrb[0].mxu0
    %v762 = vadd.f32 0.0, %v761
    %v763 = vpop.f32.mrb[0].mxu0
    %764 = vdwg.mxu0
    %765 = vst.msk [vmem:[#allocation3] sm:$0xff] %vm553, %v743
    %766 = vst.msk [vmem:[#allocation3 + $0x8] sm:$0xff] %vm553, %v746
    %767 = vst.msk [vmem:[#allocation3 + $0x10] sm:$0xff] %vm553, %v751
    %768 = vst.msk [vmem:[#allocation3 + $0x18] sm:$0xff] %vm553, %v754
    %769 = vst.msk [vmem:[#allocation3 + $0x20] sm:$0xff] %vm553, %v759
    %770 = vst.msk [vmem:[#allocation3 + $0x28] sm:$0xff] %vm553, %v762
    %774 = vrot.lane.b32.xlu0 %v535, 112
    %v775 = vpop.permute.xlu0 %774
    %776 = vrot.lane.b32.xlu0 %v536, 112
    %v777 = vpop.permute.xlu0 %776
    %778 = vrot.lane.b32.xlu0 %v537, 112
    %v779 = vpop.permute.xlu0 %778
    %780 = vrot.lane.b32.xlu0 %v538, 48
    %v781 = vpop.permute.xlu0 %780
    %782 = vrot.lane.b32.xlu0 %v539, 48
    %v783 = vpop.permute.xlu0 %782
    %784 = vrot.lane.b32.xlu0 %v540, 48
    %v785 = vpop.permute.xlu0 %784
    %v787 = vsel %vm553, %v775, 0
    %v790 = vsel %vm553, %v777, 0
    %v793 = vsel %vm553, %v779, 0
    %v796 = vsel %vm553, %v781, 0
    %v799 = vsel %vm553, %v783, 0
    %v802 = vsel %vm553, %v785, 0
    %804 = vmatprep.subr.bf16.mxu0 0
    %805 = vmatpush1.bf16.xpose.msra.mxu0 %v796
    %806 = vmatprep.subr.bf16.mxu0 0
    %807 = vmatpush1.bf16.xpose.msra.mxu0 %v799
    %808 = vmatprep.subr.bf16.mxu0 0
    %809 = vmatpush1.bf16.xpose.msra.mxu0 %v802
    %810 = vmatprep.subr.bf16.mxu0 0
    %811 = vmatpush1.bf16.xpose.msra.mxu0 0
    %812 = vmatprep.subr.bf16.mxu0 0
    %813 = vmatpush1.bf16.xpose.msra.mxu0 0
    %814 = vmatprep.subr.bf16.mxu0 0
    %815 = vmatpush1.bf16.xpose.msra.mxu0 0
    %816 = vmatprep.subr.bf16.mxu0 0
    %817 = vmatpush1.bf16.xpose.msra.mxu0 0
    %818 = vmatprep.subr.bf16.mxu0 0
    %819 = vmatpush1.bf16.xpose.msra.mxu0 0
    %820 = vmatprep.subr.bf16.mxu0 0
    %821 = vmatpush1.bf16.xpose.msra.mxu0 0
    %822 = vmatprep.subr.bf16.mxu0 0
    %823 = vmatpush1.bf16.xpose.msra.mxu0 0
    %824 = vmatprep.subr.bf16.mxu0 0
    %825 = vmatpush1.bf16.xpose.msra.mxu0 0
    %826 = vmatprep.subr.bf16.mxu0 0
    %827 = vmatpush1.bf16.xpose.msra.mxu0 0
    %828 = vmatprep.subr.bf16.mxu0 0
    %829 = vmatpush1.bf16.xpose.msra.mxu0 0
    %830 = vmatprep.subr.bf16.mxu0 0
    %831 = vmatpush1.bf16.xpose.msra.mxu0 0
    %832 = vmatprep.subr.bf16.mxu0 0
    %833 = vmatpush1.bf16.xpose.msra.mxu0 0
    %834 = vmatprep.subr.bf16.mxu0 0
    %835 = vmatpush1.bf16.xpose.msra.mxu0 0
    %836 = vmatprep.mubr.bf16.mxu0 0
    %837 = vmatmul.mubr.bf16.gmra.mrb[0].mxu0 %v787
    %v838 = vpop.f32.mrb[0].mxu0
    %v839 = vadd.f32 %v283, %v838
    %v840 = vpop.f32.mrb[0].mxu0
    %v841 = vpop.f32.mrb[0].mxu0
    %v842 = vadd.f32 %v284, %v841
    %v843 = vpop.f32.mrb[0].mxu0
    %844 = vmatprep.mubr.bf16.mxu0 0
    %845 = vmatmul.mubr.bf16.gmra.mrb[0].mxu0 %v790
    %v846 = vpop.f32.mrb[0].mxu0
    %v847 = vadd.f32 %v285, %v846
    %v848 = vpop.f32.mrb[0].mxu0
    %v849 = vpop.f32.mrb[0].mxu0
    %v850 = vadd.f32 %v286, %v849
    %v851 = vpop.f32.mrb[0].mxu0
    %852 = vmatprep.mubr.bf16.mxu0 0
    %853 = vmatmul.mubr.bf16.gmra.mrb[0].mxu0 %v793
    %v854 = vpop.f32.mrb[0].mxu0
    %v855 = vadd.f32 %v287, %v854
    %v856 = vpop.f32.mrb[0].mxu0
    %v857 = vpop.f32.mrb[0].mxu0
    %v858 = vadd.f32 %v288, %v857
    %v859 = vpop.f32.mrb[0].mxu0
    %860 = vdwg.mxu0
    %v861 = vsel %vm629, %v839, -inf
    %862 = vmax.xlane.f32.xlu0 %v861
    %v863 = vpop.xlane.xlu0 %862
    %v864 = vsel %vm629, %v842, -inf
    %865 = vmax.xlane.f32.xlu0 %v864
    %v866 = vpop.xlane.xlu0 %865
    %v867 = vsel %vm629, %v847, -inf
    %868 = vmax.xlane.f32.xlu0 %v867
    %v869 = vpop.xlane.xlu0 %868
    %v870 = vsel %vm629, %v850, -inf
    %871 = vmax.xlane.f32.xlu0 %v870
    %v872 = vpop.xlane.xlu0 %871
    %v873 = vsel %vm629, %v855, -inf
    %874 = vmax.xlane.f32.xlu0 %v873
    %v875 = vpop.xlane.xlu0 %874
    %v876 = vsel %vm629, %v858, -inf
    %877 = vmax.xlane.f32.xlu0 %v876
    %v878 = vpop.xlane.xlu0 %877
    %v879 = vsub.f32 %v839, %v863
    %v880 = vsub.f32 %v842, %v866
    %v881 = vsub.f32 %v847, %v869
    %v882 = vsub.f32 %v850, %v872
    %v883 = vsub.f32 %v855, %v875
    %v884 = vsub.f32 %v858, %v878
    %v885 = vmul.f32 %v879, 1.442695
    %v886 = vpow.pop %v885
    %v887 = vmul.f32 %v880, 1.442695
    %v888 = vpow.pop %v887
    %v889 = vmul.f32 %v881, 1.442695
    %v890 = vpow.pop %v889
    %v891 = vmul.f32 %v882, 1.442695
    %v892 = vpow.pop %v891
    %v893 = vmul.f32 %v883, 1.442695
    %v894 = vpow.pop %v893
    %v895 = vmul.f32 %v884, 1.442695
    %v896 = vpow.pop %v895
    %v897 = vsel %vm629, %v886, 0.0
    %898 = vadd.xlane.f32.xlu0 %v897
    %v899 = vpop.xlane.xlu0 %898
    %v900 = vsel %vm629, %v888, 0.0
    %901 = vadd.xlane.f32.xlu0 %v900
    %v902 = vpop.xlane.xlu0 %901
    %v903 = vsel %vm629, %v890, 0.0
    %904 = vadd.xlane.f32.xlu0 %v903
    %v905 = vpop.xlane.xlu0 %904
    %v906 = vsel %vm629, %v892, 0.0
    %907 = vadd.xlane.f32.xlu0 %v906
    %v908 = vpop.xlane.xlu0 %907
    %v909 = vsel %vm629, %v894, 0.0
    %910 = vadd.xlane.f32.xlu0 %v909
    %v911 = vpop.xlane.xlu0 %910
    %v912 = vsel %vm629, %v896, 0.0
    %913 = vadd.xlane.f32.xlu0 %v912
    %v914 = vpop.xlane.xlu0 %913
    %v915 = vrcp.pop %v899
    %v916 = vrcp.pop %v902
    %v917 = vrcp.pop %v905
    %v918 = vrcp.pop %v908
    %v919 = vrcp.pop %v911
    %v920 = vrcp.pop %v914
    %v921 = vmul.f32 %v886, %v915
    %v922 = vmul.f32 %v888, %v916
    %v923 = vmul.f32 %v890, %v917
    %v924 = vmul.f32 %v892, %v918
    %v925 = vmul.f32 %v894, %v919
    %v926 = vmul.f32 %v896, %v920
    %v927 = vpack.c.bf16 %v922, %v921
    %v928 = vpack.c.bf16 %v924, %v923
    %v929 = vpack.c.bf16 %v926, %v925
    %933 = vrot.lane.b32.xlu0 %v541, 112
    %v934 = vpop.permute.xlu0 %933
    %935 = vrot.lane.b32.xlu0 %v542, 112
    %v936 = vpop.permute.xlu0 %935
    %937 = vrot.lane.b32.xlu0 %v543, 112
    %v938 = vpop.permute.xlu0 %937
    %v943 = vsel %vm629, %v927, 0
    %v946 = vsel %vm629, %v928, 0
    %v949 = vsel %vm629, %v929, 0
    %951 = vmatprep.subr.bf16.mxu0 0
    %952 = vmatpush1.bf16.msra.mxu0 %v934
    %953 = vmatprep.subr.bf16.mxu0 0
    %954 = vmatpush1.bf16.msra.mxu0 %v936
    %955 = vmatprep.subr.bf16.mxu0 0
    %956 = vmatpush1.bf16.msra.mxu0 %v938
    %957 = vmatprep.subr.bf16.mxu0 0
    %958 = vmatpush1.bf16.msra.mxu0 0
    %959 = vmatprep.subr.bf16.mxu0 0
    %960 = vmatpush1.bf16.msra.mxu0 0
    %961 = vmatprep.subr.bf16.mxu0 0
    %962 = vmatpush1.bf16.msra.mxu0 0
    %963 = vmatprep.subr.bf16.mxu0 0
    %964 = vmatpush1.bf16.msra.mxu0 0
    %965 = vmatprep.subr.bf16.mxu0 0
    %966 = vmatpush1.bf16.msra.mxu0 0
    %967 = vmatprep.subr.bf16.mxu0 0
    %968 = vmatpush1.bf16.msra.mxu0 0
    %969 = vmatprep.subr.bf16.mxu0 0
    %970 = vmatpush1.bf16.msra.mxu0 0
    %971 = vmatprep.subr.bf16.mxu0 0
    %972 = vmatpush1.bf16.msra.mxu0 0
    %973 = vmatprep.subr.bf16.mxu0 0
    %974 = vmatpush1.bf16.msra.mxu0 0
    %975 = vmatprep.subr.bf16.mxu0 0
    %976 = vmatpush1.bf16.msra.mxu0 0
    %977 = vmatprep.subr.bf16.mxu0 0
    %978 = vmatpush1.bf16.msra.mxu0 0
    %979 = vmatprep.subr.bf16.mxu0 0
    %980 = vmatpush1.bf16.msra.mxu0 0
    %981 = vmatprep.subr.bf16.mxu0 0
    %982 = vmatpush1.bf16.msra.mxu0 0
    %983 = vmatprep.mubr.bf16.mxu0 0
    %984 = vmatmul.mubr.bf16.gmra.mrb[0].mxu0 %v943
    %v985 = vpop.f32.mrb[0].mxu0
    %v986 = vadd.f32 0.0, %v985
    %v987 = vpop.f32.mrb[0].mxu0
    %v988 = vpop.f32.mrb[0].mxu0
    %v989 = vadd.f32 0.0, %v988
    %v990 = vpop.f32.mrb[0].mxu0
    %991 = vmatprep.mubr.bf16.mxu0 0
    %992 = vmatmul.mubr.bf16.gmra.mrb[0].mxu0 %v946
    %v993 = vpop.f32.mrb[0].mxu0
    %v994 = vadd.f32 0.0, %v993
    %v995 = vpop.f32.mrb[0].mxu0
    %v996 = vpop.f32.mrb[0].mxu0
    %v997 = vadd.f32 0.0, %v996
    %v998 = vpop.f32.mrb[0].mxu0
    %999 = vmatprep.mubr.bf16.mxu0 0
    %1000 = vmatmul.mubr.bf16.gmra.mrb[0].mxu0 %v949
    %v1001 = vpop.f32.mrb[0].mxu0
    %v1002 = vadd.f32 0.0, %v1001
    %v1003 = vpop.f32.mrb[0].mxu0
    %v1004 = vpop.f32.mrb[0].mxu0
    %v1005 = vadd.f32 0.0, %v1004
    %v1006 = vpop.f32.mrb[0].mxu0
    %1007 = vdwg.mxu0
    %1014 = vrot.lane.b32.xlu0 %v986, 16
    %v1015 = vpop.permute.xlu0 %1014
    %1016 = vrot.lane.b32.xlu0 %v989, 16
    %v1017 = vpop.permute.xlu0 %1016
    %1018 = vrot.lane.b32.xlu0 %v994, 16
    %v1019 = vpop.permute.xlu0 %1018
    %1020 = vrot.lane.b32.xlu0 %v997, 16
    %v1021 = vpop.permute.xlu0 %1020
    %1022 = vrot.lane.b32.xlu0 %v1002, 16
    %v1023 = vpop.permute.xlu0 %1022
    %1024 = vrot.lane.b32.xlu0 %v1005, 16
    %v1025 = vpop.permute.xlu0 %1024
    %vm1032 = vcmask 261248
    %1033 = vst.msk [vmem:[#allocation3] sm:$0xff] %vm1032, %v1015
    %1034 = vst.msk [vmem:[#allocation3 + $0x8] sm:$0xff] %vm1032, %v1017
    %1035 = vst.msk [vmem:[#allocation3 + $0x10] sm:$0xff] %vm1032, %v1019
    %1036 = vst.msk [vmem:[#allocation3 + $0x18] sm:$0xff] %vm1032, %v1021
    %1037 = vst.msk [vmem:[#allocation3 + $0x20] sm:$0xff] %vm1032, %v1023
    %1038 = vst.msk [vmem:[#allocation3 + $0x28] sm:$0xff] %vm1032, %v1025
    %1039 = vrot.lane.b32.xlu0 %v535, 96
    %v1040 = vpop.permute.xlu0 %1039
    %1041 = vrot.lane.b32.xlu0 %v536, 96
    %v1042 = vpop.permute.xlu0 %1041
    %1043 = vrot.lane.b32.xlu0 %v537, 96
    %v1044 = vpop.permute.xlu0 %1043
    %1045 = vrot.lane.b32.xlu0 %v538, 32
    %v1046 = vpop.permute.xlu0 %1045
    %1047 = vrot.lane.b32.xlu0 %v539, 32
    %v1048 = vpop.permute.xlu0 %1047
    %1049 = vrot.lane.b32.xlu0 %v540, 32
    %v1050 = vpop.permute.xlu0 %1049
    %v1052 = vsel %vm553, %v1040, 0
    %v1055 = vsel %vm553, %v1042, 0
    %v1058 = vsel %vm553, %v1044, 0
    %v1061 = vsel %vm553, %v1046, 0
    %v1064 = vsel %vm553, %v1048, 0
    %v1067 = vsel %vm553, %v1050, 0
    %1069 = vmatprep.subr.bf16.mxu0 0
    %1070 = vmatpush1.bf16.xpose.msra.mxu0 %v1061
    %1071 = vmatprep.subr.bf16.mxu0 0
    %1072 = vmatpush1.bf16.xpose.msra.mxu0 %v1064
    %1073 = vmatprep.subr.bf16.mxu0 0
    %1074 = vmatpush1.bf16.xpose.msra.mxu0 %v1067
    %1075 = vmatprep.subr.bf16.mxu0 0
    %1076 = vmatpush1.bf16.xpose.msra.mxu0 0
    %1077 = vmatprep.subr.bf16.mxu0 0
    %1078 = vmatpush1.bf16.xpose.msra.mxu0 0
    %1079 = vmatprep.subr.bf16.mxu0 0
    %1080 = vmatpush1.bf16.xpose.msra.mxu0 0
    %1081 = vmatprep.subr.bf16.mxu0 0
    %1082 = vmatpush1.bf16.xpose.msra.mxu0 0
    %1083 = vmatprep.subr.bf16.mxu0 0
    %1084 = vmatpush1.bf16.xpose.msra.mxu0 0
    %1085 = vmatprep.subr.bf16.mxu0 0
    %1086 = vmatpush1.bf16.xpose.msra.mxu0 0
    %1087 = vmatprep.subr.bf16.mxu0 0
    %1088 = vmatpush1.bf16.xpose.msra.mxu0 0
    %1089 = vmatprep.subr.bf16.mxu0 0
    %1090 = vmatpush1.bf16.xpose.msra.mxu0 0
    %1091 = vmatprep.subr.bf16.mxu0 0
    %1092 = vmatpush1.bf16.xpose.msra.mxu0 0
    %1093 = vmatprep.subr.bf16.mxu0 0
    %1094 = vmatpush1.bf16.xpose.msra.mxu0 0
    %1095 = vmatprep.subr.bf16.mxu0 0
    %1096 = vmatpush1.bf16.xpose.msra.mxu0 0
    %1097 = vmatprep.subr.bf16.mxu0 0
    %1098 = vmatpush1.bf16.xpose.msra.mxu0 0
    %1099 = vmatprep.subr.bf16.mxu0 0
    %1100 = vmatpush1.bf16.xpose.msra.mxu0 0
    %1101 = vmatprep.mubr.bf16.mxu0 0
    %1102 = vmatmul.mubr.bf16.gmra.mrb[0].mxu0 %v1052
    %v1103 = vpop.f32.mrb[0].mxu0
    %v1104 = vadd.f32 %v283, %v1103
    %v1105 = vpop.f32.mrb[0].mxu0
    %v1106 = vpop.f32.mrb[0].mxu0
    %v1107 = vadd.f32 %v284, %v1106
    %v1108 = vpop.f32.mrb[0].mxu0
    %1109 = vmatprep.mubr.bf16.mxu0 0
    %1110 = vmatmul.mubr.bf16.gmra.mrb[0].mxu0 %v1055
    %v1111 = vpop.f32.mrb[0].mxu0
    %v1112 = vadd.f32 %v285, %v1111
    %v1113 = vpop.f32.mrb[0].mxu0
    %v1114 = vpop.f32.mrb[0].mxu0
    %v1115 = vadd.f32 %v286, %v1114
    %v1116 = vpop.f32.mrb[0].mxu0
    %1117 = vmatprep.mubr.bf16.mxu0 0
    %1118 = vmatmul.mubr.bf16.gmra.mrb[0].mxu0 %v1058
    %v1119 = vpop.f32.mrb[0].mxu0
    %v1120 = vadd.f32 %v287, %v1119
    %v1121 = vpop.f32.mrb[0].mxu0
    %v1122 = vpop.f32.mrb[0].mxu0
    %v1123 = vadd.f32 %v288, %v1122
    %v1124 = vpop.f32.mrb[0].mxu0
    %1125 = vdwg.mxu0
    %v1126 = vsel %vm629, %v1104, -inf
    %1127 = vmax.xlane.f32.xlu0 %v1126
    %v1128 = vpop.xlane.xlu0 %1127
    %v1129 = vsel %vm629, %v1107, -inf
    %1130 = vmax.xlane.f32.xlu0 %v1129
    %v1131 = vpop.xlane.xlu0 %1130
    %v1132 = vsel %vm629, %v1112, -inf
    %1133 = vmax.xlane.f32.xlu0 %v1132
    %v1134 = vpop.xlane.xlu0 %1133
    %v1135 = vsel %vm629, %v1115, -inf
    %1136 = vmax.xlane.f32.xlu0 %v1135
    %v1137 = vpop.xlane.xlu0 %1136
    %v1138 = vsel %vm629, %v1120, -inf
    %1139 = vmax.xlane.f32.xlu0 %v1138
    %v1140 = vpop.xlane.xlu0 %1139
    %v1141 = vsel %vm629, %v1123, -inf
    %1142 = vmax.xlane.f32.xlu0 %v1141
    %v1143 = vpop.xlane.xlu0 %1142
    %v1144 = vsub.f32 %v1104, %v1128
    %v1145 = vsub.f32 %v1107, %v1131
    %v1146 = vsub.f32 %v1112, %v1134
    %v1147 = vsub.f32 %v1115, %v1137
    %v1148 = vsub.f32 %v1120, %v1140
    %v1149 = vsub.f32 %v1123, %v1143
    %v1150 = vmul.f32 %v1144, 1.442695
    %v1151 = vpow.pop %v1150
    %v1152 = vmul.f32 %v1145, 1.442695
    %v1153 = vpow.pop %v1152
    %v1154 = vmul.f32 %v1146, 1.442695
    %v1155 = vpow.pop %v1154
    %v1156 = vmul.f32 %v1147, 1.442695
    %v1157 = vpow.pop %v1156
    %v1158 = vmul.f32 %v1148, 1.442695
    %v1159 = vpow.pop %v1158
    %v1160 = vmul.f32 %v1149, 1.442695
    %v1161 = vpow.pop %v1160
    %v1162 = vsel %vm629, %v1151, 0.0
    %1163 = vadd.xlane.f32.xlu0 %v1162
    %v1164 = vpop.xlane.xlu0 %1163
    %v1165 = vsel %vm629, %v1153, 0.0
    %1166 = vadd.xlane.f32.xlu0 %v1165
    %v1167 = vpop.xlane.xlu0 %1166
    %v1168 = vsel %vm629, %v1155, 0.0
    %1169 = vadd.xlane.f32.xlu0 %v1168
    %v1170 = vpop.xlane.xlu0 %1169
    %v1171 = vsel %vm629, %v1157, 0.0
    %1172 = vadd.xlane.f32.xlu0 %v1171
    %v1173 = vpop.xlane.xlu0 %1172
    %v1174 = vsel %vm629, %v1159, 0.0
    %1175 = vadd.xlane.f32.xlu0 %v1174
    %v1176 = vpop.xlane.xlu0 %1175
    %v1177 = vsel %vm629, %v1161, 0.0
    %1178 = vadd.xlane.f32.xlu0 %v1177
    %v1179 = vpop.xlane.xlu0 %1178
    %v1180 = vrcp.pop %v1164
    %v1181 = vrcp.pop %v1167
    %v1182 = vrcp.pop %v1170
    %v1183 = vrcp.pop %v1173
    %v1184 = vrcp.pop %v1176
    %v1185 = vrcp.pop %v1179
    %v1186 = vmul.f32 %v1151, %v1180
    %v1187 = vmul.f32 %v1153, %v1181
    %v1188 = vmul.f32 %v1155, %v1182
    %v1189 = vmul.f32 %v1157, %v1183
    %v1190 = vmul.f32 %v1159, %v1184
    %v1191 = vmul.f32 %v1161, %v1185
    %v1192 = vpack.c.bf16 %v1187, %v1186
    %v1193 = vpack.c.bf16 %v1189, %v1188
    %v1194 = vpack.c.bf16 %v1191, %v1190
    %1195 = vrot.lane.b32.xlu0 %v541, 96
    %v1196 = vpop.permute.xlu0 %1195
    %1197 = vrot.lane.b32.xlu0 %v542, 96
    %v1198 = vpop.permute.xlu0 %1197
    %1199 = vrot.lane.b32.xlu0 %v543, 96
    %v1200 = vpop.permute.xlu0 %1199
    %v1205 = vsel %vm629, %v1192, 0
    %v1208 = vsel %vm629, %v1193, 0
    %v1211 = vsel %vm629, %v1194, 0
    %1213 = vmatprep.subr.bf16.mxu0 0
    %1214 = vmatpush1.bf16.msra.mxu0 %v1196
    %1215 = vmatprep.subr.bf16.mxu0 0
    %1216 = vmatpush1.bf16.msra.mxu0 %v1198
    %1217 = vmatprep.subr.bf16.mxu0 0
    %1218 = vmatpush1.bf16.msra.mxu0 %v1200
    %1219 = vmatprep.subr.bf16.mxu0 0
    %1220 = vmatpush1.bf16.msra.mxu0 0
    %1221 = vmatprep.subr.bf16.mxu0 0
    %1222 = vmatpush1.bf16.msra.mxu0 0
    %1223 = vmatprep.subr.bf16.mxu0 0
    %1224 = vmatpush1.bf16.msra.mxu0 0
    %1225 = vmatprep.subr.bf16.mxu0 0
    %1226 = vmatpush1.bf16.msra.mxu0 0
    %1227 = vmatprep.subr.bf16.mxu0 0
    %1228 = vmatpush1.bf16.msra.mxu0 0
    %1229 = vmatprep.subr.bf16.mxu0 0
    %1230 = vmatpush1.bf16.msra.mxu0 0
    %1231 = vmatprep.subr.bf16.mxu0 0
    %1232 = vmatpush1.bf16.msra.mxu0 0
    %1233 = vmatprep.subr.bf16.mxu0 0
    %1234 = vmatpush1.bf16.msra.mxu0 0
    %1235 = vmatprep.subr.bf16.mxu0 0
    %1236 = vmatpush1.bf16.msra.mxu0 0
    %1237 = vmatprep.subr.bf16.mxu0 0
    %1238 = vmatpush1.bf16.msra.mxu0 0
    %1239 = vmatprep.subr.bf16.mxu0 0
    %1240 = vmatpush1.bf16.msra.mxu0 0
    %1241 = vmatprep.subr.bf16.mxu0 0
    %1242 = vmatpush1.bf16.msra.mxu0 0
    %1243 = vmatprep.subr.bf16.mxu0 0
    %1244 = vmatpush1.bf16.msra.mxu0 0
    %1245 = vmatprep.mubr.bf16.mxu0 0
    %1246 = vmatmul.mubr.bf16.gmra.mrb[0].mxu0 %v1205
    %v1247 = vpop.f32.mrb[0].mxu0
    %v1248 = vadd.f32 0.0, %v1247
    %v1249 = vpop.f32.mrb[0].mxu0
    %v1250 = vpop.f32.mrb[0].mxu0
    %v1251 = vadd.f32 0.0, %v1250
    %v1252 = vpop.f32.mrb[0].mxu0
    %1253 = vmatprep.mubr.bf16.mxu0 0
    %1254 = vmatmul.mubr.bf16.gmra.mrb[0].mxu0 %v1208
    %v1255 = vpop.f32.mrb[0].mxu0
    %v1256 = vadd.f32 0.0, %v1255
    %v1257 = vpop.f32.mrb[0].mxu0
    %v1258 = vpop.f32.mrb[0].mxu0
    %v1259 = vadd.f32 0.0, %v1258
    %v1260 = vpop.f32.mrb[0].mxu0
    %1261 = vmatprep.mubr.bf16.mxu0 0
    %1262 = vmatmul.mubr.bf16.gmra.mrb[0].mxu0 %v1211
    %v1263 = vpop.f32.mrb[0].mxu0
    %v1264 = vadd.f32 0.0, %v1263
    %v1265 = vpop.f32.mrb[0].mxu0
    %v1266 = vpop.f32.mrb[0].mxu0
    %v1267 = vadd.f32 0.0, %v1266
    %v1268 = vpop.f32.mrb[0].mxu0
    %1269 = vdwg.mxu0
    %1276 = vrot.lane.b32.xlu0 %v1248, 32
    %v1277 = vpop.permute.xlu0 %1276
    %1278 = vrot.lane.b32.xlu0 %v1251, 32
    %v1279 = vpop.permute.xlu0 %1278
    %1280 = vrot.lane.b32.xlu0 %v1256, 32
    %v1281 = vpop.permute.xlu0 %1280
    %1282 = vrot.lane.b32.xlu0 %v1259, 32
    %v1283 = vpop.permute.xlu0 %1282
    %1284 = vrot.lane.b32.xlu0 %v1264, 32
    %v1285 = vpop.permute.xlu0 %1284
    %1286 = vrot.lane.b32.xlu0 %v1267, 32
    %v1287 = vpop.permute.xlu0 %1286
    %vm1294 = vcmask 392448
    %1295 = vst.msk [vmem:[#allocation3] sm:$0xff] %vm1294, %v1277
    %1296 = vst.msk [vmem:[#allocation3 + $0x8] sm:$0xff] %vm1294, %v1279
    %1297 = vst.msk [vmem:[#allocation3 + $0x10] sm:$0xff] %vm1294, %v1281
    %1298 = vst.msk [vmem:[#allocation3 + $0x18] sm:$0xff] %vm1294, %v1283
    %1299 = vst.msk [vmem:[#allocation3 + $0x20] sm:$0xff] %vm1294, %v1285
    %1300 = vst.msk [vmem:[#allocation3 + $0x28] sm:$0xff] %vm1294, %v1287
    %1301 = vrot.lane.b32.xlu0 %v535, 80
    %v1302 = vpop.permute.xlu0 %1301
    %1303 = vrot.lane.b32.xlu0 %v536, 80
    %v1304 = vpop.permute.xlu0 %1303
    %1305 = vrot.lane.b32.xlu0 %v537, 80
    %v1306 = vpop.permute.xlu0 %1305
    %1307 = vrot.lane.b32.xlu0 %v538, 16
    %v1308 = vpop.permute.xlu0 %1307
    %1309 = vrot.lane.b32.xlu0 %v539, 16
    %v1310 = vpop.permute.xlu0 %1309
    %1311 = vrot.lane.b32.xlu0 %v540, 16
    %v1312 = vpop.permute.xlu0 %1311
    %v1314 = vsel %vm553, %v1302, 0
    %v1317 = vsel %vm553, %v1304, 0
    %v1320 = vsel %vm553, %v1306, 0
    %v1323 = vsel %vm553, %v1308, 0
    %v1326 = vsel %vm553, %v1310, 0
    %v1329 = vsel %vm553, %v1312, 0
    %1331 = vmatprep.subr.bf16.mxu0 0
    %1332 = vmatpush1.bf16.xpose.msra.mxu0 %v1323
    %1333 = vmatprep.subr.bf16.mxu0 0
    %1334 = vmatpush1.bf16.xpose.msra.mxu0 %v1326
    %1335 = vmatprep.subr.bf16.mxu0 0
    %1336 = vmatpush1.bf16.xpose.msra.mxu0 %v1329
    %1337 = vmatprep.subr.bf16.mxu0 0
    %1338 = vmatpush1.bf16.xpose.msra.mxu0 0
    %1339 = vmatprep.subr.bf16.mxu0 0
    %1340 = vmatpush1.bf16.xpose.msra.mxu0 0
    %1341 = vmatprep.subr.bf16.mxu0 0
    %1342 = vmatpush1.bf16.xpose.msra.mxu0 0
    %1343 = vmatprep.subr.bf16.mxu0 0
    %1344 = vmatpush1.bf16.xpose.msra.mxu0 0
    %1345 = vmatprep.subr.bf16.mxu0 0
    %1346 = vmatpush1.bf16.xpose.msra.mxu0 0
    %1347 = vmatprep.subr.bf16.mxu0 0
    %1348 = vmatpush1.bf16.xpose.msra.mxu0 0
    %1349 = vmatprep.subr.bf16.mxu0 0
    %1350 = vmatpush1.bf16.xpose.msra.mxu0 0
    %1351 = vmatprep.subr.bf16.mxu0 0
    %1352 = vmatpush1.bf16.xpose.msra.mxu0 0
    %1353 = vmatprep.subr.bf16.mxu0 0
    %1354 = vmatpush1.bf16.xpose.msra.mxu0 0
    %1355 = vmatprep.subr.bf16.mxu0 0
    %1356 = vmatpush1.bf16.xpose.msra.mxu0 0
    %1357 = vmatprep.subr.bf16.mxu0 0
    %1358 = vmatpush1.bf16.xpose.msra.mxu0 0
    %1359 = vmatprep.subr.bf16.mxu0 0
    %1360 = vmatpush1.bf16.xpose.msra.mxu0 0
    %1361 = vmatprep.subr.bf16.mxu0 0
    %1362 = vmatpush1.bf16.xpose.msra.mxu0 0
    %1363 = vmatprep.mubr.bf16.mxu0 0
    %1364 = vmatmul.mubr.bf16.gmra.mrb[0].mxu0 %v1314
    %v1365 = vpop.f32.mrb[0].mxu0
    %v1366 = vadd.f32 %v283, %v1365
    %v1367 = vpop.f32.mrb[0].mxu0
    %v1368 = vpop.f32.mrb[0].mxu0
    %v1369 = vadd.f32 %v284, %v1368
    %v1370 = vpop.f32.mrb[0].mxu0
    %1371 = vmatprep.mubr.bf16.mxu0 0
    %1372 = vmatmul.mubr.bf16.gmra.mrb[0].mxu0 %v1317
    %v1373 = vpop.f32.mrb[0].mxu0
    %v1374 = vadd.f32 %v285, %v1373
    %v1375 = vpop.f32.mrb[0].mxu0
    %v1376 = vpop.f32.mrb[0].mxu0
    %v1377 = vadd.f32 %v286, %v1376
    %v1378 = vpop.f32.mrb[0].mxu0
    %1379 = vmatprep.mubr.bf16.mxu0 0
    %1380 = vmatmul.mubr.bf16.gmra.mrb[0].mxu0 %v1320
    %v1381 = vpop.f32.mrb[0].mxu0
    %v1382 = vadd.f32 %v287, %v1381
    %v1383 = vpop.f32.mrb[0].mxu0
    %v1384 = vpop.f32.mrb[0].mxu0
    %v1385 = vadd.f32 %v288, %v1384
    %v1386 = vpop.f32.mrb[0].mxu0
    %1387 = vdwg.mxu0
    %v1388 = vsel %vm629, %v1366, -inf
    %1389 = vmax.xlane.f32.xlu0 %v1388
    %v1390 = vpop.xlane.xlu0 %1389
    %v1391 = vsel %vm629, %v1369, -inf
    %1392 = vmax.xlane.f32.xlu0 %v1391
    %v1393 = vpop.xlane.xlu0 %1392
    %v1394 = vsel %vm629, %v1374, -inf
    %1395 = vmax.xlane.f32.xlu0 %v1394
    %v1396 = vpop.xlane.xlu0 %1395
    %v1397 = vsel %vm629, %v1377, -inf
    %1398 = vmax.xlane.f32.xlu0 %v1397
    %v1399 = vpop.xlane.xlu0 %1398
    %v1400 = vsel %vm629, %v1382, -inf
    %1401 = vmax.xlane.f32.xlu0 %v1400
    %v1402 = vpop.xlane.xlu0 %1401
    %v1403 = vsel %vm629, %v1385, -inf
    %1404 = vmax.xlane.f32.xlu0 %v1403
    %v1405 = vpop.xlane.xlu0 %1404
    %v1406 = vsub.f32 %v1366, %v1390
    %v1407 = vsub.f32 %v1369, %v1393
    %v1408 = vsub.f32 %v1374, %v1396
    %v1409 = vsub.f32 %v1377, %v1399
    %v1410 = vsub.f32 %v1382, %v1402
    %v1411 = vsub.f32 %v1385, %v1405
    %v1412 = vmul.f32 %v1406, 1.442695
    %v1413 = vpow.pop %v1412
    %v1414 = vmul.f32 %v1407, 1.442695
    %v1415 = vpow.pop %v1414
    %v1416 = vmul.f32 %v1408, 1.442695
    %v1417 = vpow.pop %v1416
    %v1418 = vmul.f32 %v1409, 1.442695
    %v1419 = vpow.pop %v1418
    %v1420 = vmul.f32 %v1410, 1.442695
    %v1421 = vpow.pop %v1420
    %v1422 = vmul.f32 %v1411, 1.442695
    %v1423 = vpow.pop %v1422
    %v1424 = vsel %vm629, %v1413, 0.0
    %1425 = vadd.xlane.f32.xlu0 %v1424
    %v1426 = vpop.xlane.xlu0 %1425
    %v1427 = vsel %vm629, %v1415, 0.0
    %1428 = vadd.xlane.f32.xlu0 %v1427
    %v1429 = vpop.xlane.xlu0 %1428
    %v1430 = vsel %vm629, %v1417, 0.0
    %1431 = vadd.xlane.f32.xlu0 %v1430
    %v1432 = vpop.xlane.xlu0 %1431
    %v1433 = vsel %vm629, %v1419, 0.0
    %1434 = vadd.xlane.f32.xlu0 %v1433
    %v1435 = vpop.xlane.xlu0 %1434
    %v1436 = vsel %vm629, %v1421, 0.0
    %1437 = vadd.xlane.f32.xlu0 %v1436
    %v1438 = vpop.xlane.xlu0 %1437
    %v1439 = vsel %vm629, %v1423, 0.0
    %1440 = vadd.xlane.f32.xlu0 %v1439
    %v1441 = vpop.xlane.xlu0 %1440
    %v1442 = vrcp.pop %v1426
    %v1443 = vrcp.pop %v1429
    %v1444 = vrcp.pop %v1432
    %v1445 = vrcp.pop %v1435
    %v1446 = vrcp.pop %v1438
    %v1447 = vrcp.pop %v1441
    %v1448 = vmul.f32 %v1413, %v1442
    %v1449 = vmul.f32 %v1415, %v1443
    %v1450 = vmul.f32 %v1417, %v1444
    %v1451 = vmul.f32 %v1419, %v1445
    %v1452 = vmul.f32 %v1421, %v1446
    %v1453 = vmul.f32 %v1423, %v1447
    %v1454 = vpack.c.bf16 %v1449, %v1448
    %v1455 = vpack.c.bf16 %v1451, %v1450
    %v1456 = vpack.c.bf16 %v1453, %v1452
    %1457 = vrot.lane.b32.xlu0 %v541, 80
    %v1458 = vpop.permute.xlu0 %1457
    %1459 = vrot.lane.b32.xlu0 %v542, 80
    %v1460 = vpop.permute.xlu0 %1459
    %1461 = vrot.lane.b32.xlu0 %v543, 80
    %v1462 = vpop.permute.xlu0 %1461
    %v1467 = vsel %vm629, %v1454, 0
    %v1470 = vsel %vm629, %v1455, 0
    %v1473 = vsel %vm629, %v1456, 0
    %1475 = vmatprep.subr.bf16.mxu0 0
    %1476 = vmatpush1.bf16.msra.mxu0 %v1458
    %1477 = vmatprep.subr.bf16.mxu0 0
    %1478 = vmatpush1.bf16.msra.mxu0 %v1460
    %1479 = vmatprep.subr.bf16.mxu0 0
    %1480 = vmatpush1.bf16.msra.mxu0 %v1462
    %1481 = vmatprep.subr.bf16.mxu0 0
    %1482 = vmatpush1.bf16.msra.mxu0 0
    %1483 = vmatprep.subr.bf16.mxu0 0
    %1484 = vmatpush1.bf16.msra.mxu0 0
    %1485 = vmatprep.subr.bf16.mxu0 0
    %1486 = vmatpush1.bf16.msra.mxu0 0
    %1487 = vmatprep.subr.bf16.mxu0 0
    %1488 = vmatpush1.bf16.msra.mxu0 0
    %1489 = vmatprep.subr.bf16.mxu0 0
    %1490 = vmatpush1.bf16.msra.mxu0 0
    %1491 = vmatprep.subr.bf16.mxu0 0
    %1492 = vmatpush1.bf16.msra.mxu0 0
    %1493 = vmatprep.subr.bf16.mxu0 0
    %1494 = vmatpush1.bf16.msra.mxu0 0
    %1495 = vmatprep.subr.bf16.mxu0 0
    %1496 = vmatpush1.bf16.msra.mxu0 0
    %1497 = vmatprep.subr.bf16.mxu0 0
    %1498 = vmatpush1.bf16.msra.mxu0 0
    %1499 = vmatprep.subr.bf16.mxu0 0
    %1500 = vmatpush1.bf16.msra.mxu0 0
    %1501 = vmatprep.subr.bf16.mxu0 0
    %1502 = vmatpush1.bf16.msra.mxu0 0
    %1503 = vmatprep.subr.bf16.mxu0 0
    %1504 = vmatpush1.bf16.msra.mxu0 0
    %1505 = vmatprep.subr.bf16.mxu0 0
    %1506 = vmatpush1.bf16.msra.mxu0 0
    %1507 = vmatprep.mubr.bf16.mxu0 0
    %1508 = vmatmul.mubr.bf16.gmra.mrb[0].mxu0 %v1467
    %v1509 = vpop.f32.mrb[0].mxu0
    %v1510 = vadd.f32 0.0, %v1509
    %v1511 = vpop.f32.mrb[0].mxu0
    %v1512 = vpop.f32.mrb[0].mxu0
    %v1513 = vadd.f32 0.0, %v1512
    %v1514 = vpop.f32.mrb[0].mxu0
    %1515 = vmatprep.mubr.bf16.mxu0 0
    %1516 = vmatmul.mubr.bf16.gmra.mrb[0].mxu0 %v1470
    %v1517 = vpop.f32.mrb[0].mxu0
    %v1518 = vadd.f32 0.0, %v1517
    %v1519 = vpop.f32.mrb[0].mxu0
    %v1520 = vpop.f32.mrb[0].mxu0
    %v1521 = vadd.f32 0.0, %v1520
    %v1522 = vpop.f32.mrb[0].mxu0
    %1523 = vmatprep.mubr.bf16.mxu0 0
    %1524 = vmatmul.mubr.bf16.gmra.mrb[0].mxu0 %v1473
    %v1525 = vpop.f32.mrb[0].mxu0
    %v1526 = vadd.f32 0.0, %v1525
    %v1527 = vpop.f32.mrb[0].mxu0
    %v1528 = vpop.f32.mrb[0].mxu0
    %v1529 = vadd.f32 0.0, %v1528
    %v1530 = vpop.f32.mrb[0].mxu0
    %1531 = vdwg.mxu0
    %1538 = vrot.lane.b32.xlu0 %v1510, 48
    %v1539 = vpop.permute.xlu0 %1538
    %1540 = vrot.lane.b32.xlu0 %v1513, 48
    %v1541 = vpop.permute.xlu0 %1540
    %1542 = vrot.lane.b32.xlu0 %v1518, 48
    %v1543 = vpop.permute.xlu0 %1542
    %1544 = vrot.lane.b32.xlu0 %v1521, 48
    %v1545 = vpop.permute.xlu0 %1544
    %1546 = vrot.lane.b32.xlu0 %v1526, 48
    %v1547 = vpop.permute.xlu0 %1546
    %1548 = vrot.lane.b32.xlu0 %v1529, 48
    %v1549 = vpop.permute.xlu0 %1548
    %vm1556 = vcmask 523648
    %1557 = vst.msk [vmem:[#allocation3] sm:$0xff] %vm1556, %v1539
    %1558 = vst.msk [vmem:[#allocation3 + $0x8] sm:$0xff] %vm1556, %v1541
    %1559 = vst.msk [vmem:[#allocation3 + $0x10] sm:$0xff] %vm1556, %v1543
    %1560 = vst.msk [vmem:[#allocation3 + $0x18] sm:$0xff] %vm1556, %v1545
    %1561 = vst.msk [vmem:[#allocation3 + $0x20] sm:$0xff] %vm1556, %v1547
    %1562 = vst.msk [vmem:[#allocation3 + $0x28] sm:$0xff] %vm1556, %v1549
    %v1563 = vld [vmem:[#allocation3] sm:$0xff]
    %v1564 = vld [vmem:[#allocation3 + $0x8] sm:$0xff]
    %v1565 = vld [vmem:[#allocation3 + $0x10] sm:$0xff]
    %v1566 = vld [vmem:[#allocation3 + $0x18] sm:$0xff]
    %v1567 = vld [vmem:[#allocation3 + $0x20] sm:$0xff]
    %v1568 = vld [vmem:[#allocation3 + $0x28] sm:$0xff]
    %v1569 = vpack.c.bf16 %v1564, %v1563
    %v1570 = vpack.c.bf16 %v1566, %v1565
    %v1571 = vpack.c.bf16 %v1568, %v1567
    %v1572 = vld [vmem:[%s10] sm:$0xf]
    %v1573 = vld [vmem:[%s10 + $0x4] sm:$0xf]
    %v1574 = vld [vmem:[%s10 + $0x8] sm:$0xf]
    %v1575 = vld [vmem:[%s10 + $0xc] sm:$0xf]
    %v1576 = vld [vmem:[%s10 + $0x10] sm:$0xf]
    %v1577 = vld [vmem:[%s10 + $0x14] sm:$0xf]
    %v1578 = vld [vmem:[%s10 + $0x18] sm:$0xf]
    %v1579 = vld [vmem:[%s10 + $0x1c] sm:$0xf]
    %v1580 = vld [vmem:[%s11] sm:$0x1]
    %v1582 = vlaneseq
    %v1583 = vshrl.u32 %v1582, 7
    %v1584 = vsub.s32 0, %v1583
    %v1585 = vrot.slane %v1580, %v1584
    %v1595 = vunpack.c.l.b16 %v1572
    %v1596 = vunpack.c.l.b16 %v1573
    %v1597 = vunpack.c.l.b16 %v1574
    %v1598 = vunpack.c.l.b16 %v1575
    %v1599 = vunpack.c.l.b16 %v1576
    %v1600 = vunpack.c.l.b16 %v1577
    %v1601 = vunpack.c.l.b16 %v1578
    %v1602 = vunpack.c.l.b16 %v1579
    %v1603 = vpack.c.b16 %v1596, %v1595
    %v1604 = vpack.c.b16 %v1598, %v1597
    %v1605 = vpack.c.b16 %v1600, %v1599
    %v1606 = vpack.c.b16 %v1602, %v1601
    %v1612 = vsel %vm198, %v1569, 0
    %v1615 = vsel %vm198, %v1570, 0
    %v1618 = vsel %vm198, %v1571, 0
    %1620 = vmatprep.subr.bf16.mxu0 0
    %1621 = vmatpush1.bf16.msra.mxu0 %v1603
    %1622 = vmatprep.subr.bf16.mxu0 0
    %1623 = vmatpush1.bf16.msra.mxu0 %v1604
    %1624 = vmatprep.subr.bf16.mxu0 0
    %1625 = vmatpush1.bf16.msra.mxu0 %v1605
    %1626 = vmatprep.subr.bf16.mxu0 0
    %1627 = vmatpush1.bf16.msra.mxu0 %v1606
    %1628 = vmatprep.subr.bf16.mxu0 0
    %1629 = vmatpush1.bf16.msra.mxu0 0
    %1630 = vmatprep.subr.bf16.mxu0 0
    %1631 = vmatpush1.bf16.msra.mxu0 0
    %1632 = vmatprep.subr.bf16.mxu0 0
    %1633 = vmatpush1.bf16.msra.mxu0 0
    %1634 = vmatprep.subr.bf16.mxu0 0
    %1635 = vmatpush1.bf16.msra.mxu0 0
    %1636 = vmatprep.subr.bf16.mxu0 0
    %1637 = vmatpush1.bf16.msra.mxu0 0
    %1638 = vmatprep.subr.bf16.mxu0 0
    %1639 = vmatpush1.bf16.msra.mxu0 0
    %1640 = vmatprep.subr.bf16.mxu0 0
    %1641 = vmatpush1.bf16.msra.mxu0 0
    %1642 = vmatprep.subr.bf16.mxu0 0
    %1643 = vmatpush1.bf16.msra.mxu0 0
    %1644 = vmatprep.subr.bf16.mxu0 0
    %1645 = vmatpush1.bf16.msra.mxu0 0
    %1646 = vmatprep.subr.bf16.mxu0 0
    %1647 = vmatpush1.bf16.msra.mxu0 0
    %1648 = vmatprep.subr.bf16.mxu0 0
    %1649 = vmatpush1.bf16.msra.mxu0 0
    %1650 = vmatprep.subr.bf16.mxu0 0
    %1651 = vmatpush1.bf16.msra.mxu0 0
    %1652 = vmatprep.mubr.bf16.mxu0 0
    %1653 = vmatmul.mubr.bf16.gmra.mrb[0].mxu0 %v1612
    %v1654 = vpop.f32.mrb[0].mxu0
    %v1655 = vadd.f32 %v1585, %v1654
    %v1656 = vpop.f32.mrb[0].mxu0
    %v1657 = vpop.f32.mrb[0].mxu0
    %v1658 = vadd.f32 %v1585, %v1657
    %v1659 = vpop.f32.mrb[0].mxu0
    %1660 = vmatprep.mubr.bf16.mxu0 0
    %1661 = vmatmul.mubr.bf16.gmra.mrb[0].mxu0 %v1615
    %v1662 = vpop.f32.mrb[0].mxu0
    %v1663 = vadd.f32 %v1585, %v1662
    %v1664 = vpop.f32.mrb[0].mxu0
    %v1665 = vpop.f32.mrb[0].mxu0
    %v1666 = vadd.f32 %v1585, %v1665
    %v1667 = vpop.f32.mrb[0].mxu0
    %1668 = vmatprep.mubr.bf16.mxu0 0
    %1669 = vmatmul.mubr.bf16.gmra.mrb[0].mxu0 %v1618
    %v1670 = vpop.f32.mrb[0].mxu0
    %v1671 = vadd.f32 %v1585, %v1670
    %v1672 = vpop.f32.mrb[0].mxu0
    %v1673 = vpop.f32.mrb[0].mxu0
    %v1674 = vadd.f32 %v1585, %v1673
    %v1675 = vpop.f32.mrb[0].mxu0
    %1676 = vdwg.mxu0
    %v1677 = vadd.f32 %v277, %v1655
    %v1678 = vadd.f32 %v278, %v1658
    %v1679 = vadd.f32 %v279, %v1663
    %v1680 = vadd.f32 %v280, %v1666
    %v1681 = vadd.f32 %v281, %v1671
    %v1682 = vadd.f32 %v282, %v1674
    %v1683 = vld [vmem:[%s12] sm:$0x1]
    %v1684 = vld [vmem:[%s13] sm:$0x1]
    %v1685 = vsel %vm198, %v1677, 0.0
    %1686 = vadd.xlane.f32.xlu0 %v1685
    %v1687 = vpop.xlane.xlu0 %1686
    %v1688 = vsel %vm198, %v1678, 0.0
    %1689 = vadd.xlane.f32.xlu0 %v1688
    %v1690 = vpop.xlane.xlu0 %1689
    %v1691 = vsel %vm198, %v1679, 0.0
    %1692 = vadd.xlane.f32.xlu0 %v1691
    %v1693 = vpop.xlane.xlu0 %1692
    %v1694 = vsel %vm198, %v1680, 0.0
    %1695 = vadd.xlane.f32.xlu0 %v1694
    %v1696 = vpop.xlane.xlu0 %1695
    %v1697 = vsel %vm198, %v1681, 0.0
    %1698 = vadd.xlane.f32.xlu0 %v1697
    %v1699 = vpop.xlane.xlu0 %1698
    %v1700 = vsel %vm198, %v1682, 0.0
    %1701 = vadd.xlane.f32.xlu0 %v1700
    %v1702 = vpop.xlane.xlu0 %1701
    %v1703 = vmul.f32 %v1687, %v309
    %v1704 = vmul.f32 %v1690, %v309
    %v1705 = vmul.f32 %v1693, %v309
    %v1706 = vmul.f32 %v1696, %v309
    %v1707 = vmul.f32 %v1699, %v309
    %v1708 = vmul.f32 %v1702, %v309
    %v1709 = vsub.f32 %v1677, %v1703
    %v1710 = vsub.f32 %v1678, %v1704
    %v1711 = vsub.f32 %v1679, %v1705
    %v1712 = vsub.f32 %v1680, %v1706
    %v1713 = vsub.f32 %v1681, %v1707
    %v1714 = vsub.f32 %v1682, %v1708
    %v1715 = vmul.f32 %v1709, %v1709
    %v1716 = vmul.f32 %v1710, %v1710
    %v1717 = vmul.f32 %v1711, %v1711
    %v1718 = vmul.f32 %v1712, %v1712
    %v1719 = vmul.f32 %v1713, %v1713
    %v1720 = vmul.f32 %v1714, %v1714
    %v1721 = vsel %vm198, %v1715, 0.0
    %1722 = vadd.xlane.f32.xlu0 %v1721
    %v1723 = vpop.xlane.xlu0 %1722
    %v1724 = vsel %vm198, %v1716, 0.0
    %1725 = vadd.xlane.f32.xlu0 %v1724
    %v1726 = vpop.xlane.xlu0 %1725
    %v1727 = vsel %vm198, %v1717, 0.0
    %1728 = vadd.xlane.f32.xlu0 %v1727
    %v1729 = vpop.xlane.xlu0 %1728
    %v1730 = vsel %vm198, %v1718, 0.0
    %1731 = vadd.xlane.f32.xlu0 %v1730
    %v1732 = vpop.xlane.xlu0 %1731
    %v1733 = vsel %vm198, %v1719, 0.0
    %1734 = vadd.xlane.f32.xlu0 %v1733
    %v1735 = vpop.xlane.xlu0 %1734
    %v1736 = vsel %vm198, %v1720, 0.0
    %1737 = vadd.xlane.f32.xlu0 %v1736
    %v1738 = vpop.xlane.xlu0 %1737
    %v1739 = vmul.f32 %v1723, %v309
    %v1740 = vmul.f32 %v1726, %v309
    %v1741 = vmul.f32 %v1729, %v309
    %v1742 = vmul.f32 %v1732, %v309
    %v1743 = vmul.f32 %v1735, %v309
    %v1744 = vmul.f32 %v1738, %v309
    %v1745 = vadd.f32 %v1739, 1e-06
    %v1746 = vadd.f32 %v1740, 1e-06
    %v1747 = vadd.f32 %v1741, 1e-06
    %v1748 = vadd.f32 %v1742, 1e-06
    %v1749 = vadd.f32 %v1743, 1e-06
    %v1750 = vadd.f32 %v1744, 1e-06
    %v1751 = vrsqrt.pop %v1745
    %v1752 = vrsqrt.pop %v1746
    %v1753 = vrsqrt.pop %v1747
    %v1754 = vrsqrt.pop %v1748
    %v1755 = vrsqrt.pop %v1749
    %v1756 = vrsqrt.pop %v1750
    %v1757 = vmul.f32 %v1709, %v1751
    %v1758 = vmul.f32 %v1710, %v1752
    %v1759 = vmul.f32 %v1711, %v1753
    %v1760 = vmul.f32 %v1712, %v1754
    %v1761 = vmul.f32 %v1713, %v1755
    %v1762 = vmul.f32 %v1714, %v1756
    %v1764 = vlaneseq
    %v1765 = vshrl.u32 %v1764, 7
    %v1766 = vsub.s32 0, %v1765
    %v1767 = vrot.slane %v1683, %v1766
    %v1769 = vmul.f32 %v1757, %v1767
    %v1770 = vmul.f32 %v1758, %v1767
    %v1771 = vmul.f32 %v1759, %v1767
    %v1772 = vmul.f32 %v1760, %v1767
    %v1773 = vmul.f32 %v1761, %v1767
    %v1774 = vmul.f32 %v1762, %v1767
    %v1776 = vlaneseq
    %v1777 = vshrl.u32 %v1776, 7
    %v1778 = vsub.s32 0, %v1777
    %v1779 = vrot.slane %v1684, %v1778
    %v1781 = vadd.f32 %v1769, %v1779
    %v1782 = vadd.f32 %v1770, %v1779
    %v1783 = vadd.f32 %v1771, %v1779
    %v1784 = vadd.f32 %v1772, %v1779
    %v1785 = vadd.f32 %v1773, %v1779
    %v1786 = vadd.f32 %v1774, %v1779
    %v1787 = vpack.c.bf16 %v1782, %v1781
    %v1788 = vpack.c.bf16 %v1784, %v1783
    %v1789 = vpack.c.bf16 %v1786, %v1785
    %v1790 = vld [vmem:[%s14] sm:$0xff]
    %v1791 = vld [vmem:[%s14 + $0x8] sm:$0xff]
    %v1792 = vld [vmem:[%s14 + $0x10] sm:$0xff]
    %v1793 = vld [vmem:[%s14 + $0x18] sm:$0xff]
    %v1794 = vld [vmem:[%s14 + $0x20] sm:$0xff]
    %v1795 = vld [vmem:[%s14 + $0x28] sm:$0xff]
    %v1796 = vld [vmem:[%s14 + $0x30] sm:$0xff]
    %v1797 = vld [vmem:[%s14 + $0x38] sm:$0xff]
    %v1798 = vld [vmem:[%s15] sm:$0x3]
    %v1800 = vlaneseq
    %v1801 = vshrl.u32 %v1800, 7
    %v1802 = vsub.s32 0, %v1801
    %v1803 = vrot.slane %v1798, %v1802
    %v1804 = vlaneseq
    %v1805 = vshrl.u32 %v1804, 7
    %v1806 = vsub.s32 1, %v1805
    %v1807 = vrot.slane %v1798, %v1806
    %v1818 = vunpack.c.l.b16 %v1790
    %v1819 = vunpack.c.h.b16 %v1790
    %v1820 = vunpack.c.l.b16 %v1791
    %v1821 = vunpack.c.h.b16 %v1791
    %v1822 = vunpack.c.l.b16 %v1792
    %v1823 = vunpack.c.h.b16 %v1792
    %v1824 = vunpack.c.l.b16 %v1793
    %v1825 = vunpack.c.h.b16 %v1793
    %v1826 = vunpack.c.l.b16 %v1794
    %v1827 = vunpack.c.h.b16 %v1794
    %v1828 = vunpack.c.l.b16 %v1795
    %v1829 = vunpack.c.h.b16 %v1795
    %v1830 = vunpack.c.l.b16 %v1796
    %v1831 = vunpack.c.h.b16 %v1796
    %v1832 = vunpack.c.l.b16 %v1797
    %v1833 = vunpack.c.h.b16 %v1797
    %v1834 = vpack.c.b16 %v1820, %v1818
    %v1835 = vpack.c.b16 %v1821, %v1819
    %v1836 = vpack.c.b16 %v1824, %v1822
    %v1837 = vpack.c.b16 %v1825, %v1823
    %v1838 = vpack.c.b16 %v1828, %v1826
    %v1839 = vpack.c.b16 %v1829, %v1827
    %v1840 = vpack.c.b16 %v1832, %v1830
    %v1841 = vpack.c.b16 %v1833, %v1831
    %v1851 = vsel %vm198, %v1787, 0
    %v1854 = vsel %vm198, %v1788, 0
    %v1857 = vsel %vm198, %v1789, 0
    %1859 = vmatprep.subr.bf16.mxu0 %v1835
    %1860 = vmatpush1.bf16.msra.mxu0 %v1834
    %1861 = vmatprep.subr.bf16.mxu0 %v1837
    %1862 = vmatpush1.bf16.msra.mxu0 %v1836
    %1863 = vmatprep.subr.bf16.mxu0 %v1839
    %1864 = vmatpush1.bf16.msra.mxu0 %v1838
    %1865 = vmatprep.subr.bf16.mxu0 %v1841
    %1866 = vmatpush1.bf16.msra.mxu0 %v1840
    %1867 = vmatprep.subr.bf16.mxu0 0
    %1868 = vmatpush1.bf16.msra.mxu0 0
    %1869 = vmatprep.subr.bf16.mxu0 0
    %1870 = vmatpush1.bf16.msra.mxu0 0
    %1871 = vmatprep.subr.bf16.mxu0 0
    %1872 = vmatpush1.bf16.msra.mxu0 0
    %1873 = vmatprep.subr.bf16.mxu0 0
    %1874 = vmatpush1.bf16.msra.mxu0 0
    %1875 = vmatprep.subr.bf16.mxu0 0
    %1876 = vmatpush1.bf16.msra.mxu0 0
    %1877 = vmatprep.subr.bf16.mxu0 0
    %1878 = vmatpush1.bf16.msra.mxu0 0
    %1879 = vmatprep.subr.bf16.mxu0 0
    %1880 = vmatpush1.bf16.msra.mxu0 0
    %1881 = vmatprep.subr.bf16.mxu0 0
    %1882 = vmatpush1.bf16.msra.mxu0 0
    %1883 = vmatprep.subr.bf16.mxu0 0
    %1884 = vmatpush1.bf16.msra.mxu0 0
    %1885 = vmatprep.subr.bf16.mxu0 0
    %1886 = vmatpush1.bf16.msra.mxu0 0
    %1887 = vmatprep.subr.bf16.mxu0 0
    %1888 = vmatpush1.bf16.msra.mxu0 0
    %1889 = vmatprep.subr.bf16.mxu0 0
    %1890 = vmatpush1.bf16.msra.mxu0 0
    %1891 = vmatprep.mubr.bf16.mxu0 0
    %1892 = vmatmul.mubr.bf16.gmra.mrb[0].mxu0 %v1851
    %v1893 = vpop.f32.mrb[0].mxu0
    %v1894 = vadd.f32 %v1803, %v1893
    %v1895 = vpop.f32.mrb[0].mxu0
    %v1896 = vadd.f32 %v1807, %v1895
    %v1897 = vpop.f32.mrb[0].mxu0
    %v1898 = vadd.f32 %v1803, %v1897
    %v1899 = vpop.f32.mrb[0].mxu0
    %v1900 = vadd.f32 %v1807, %v1899
    %1901 = vmatprep.mubr.bf16.mxu0 0
    %1902 = vmatmul.mubr.bf16.gmra.mrb[0].mxu0 %v1854
    %v1903 = vpop.f32.mrb[0].mxu0
    %v1904 = vadd.f32 %v1803, %v1903
    %v1905 = vpop.f32.mrb[0].mxu0
    %v1906 = vadd.f32 %v1807, %v1905
    %v1907 = vpop.f32.mrb[0].mxu0
    %v1908 = vadd.f32 %v1803, %v1907
    %v1909 = vpop.f32.mrb[0].mxu0
    %v1910 = vadd.f32 %v1807, %v1909
    %1911 = vmatprep.mubr.bf16.mxu0 0
    %1912 = vmatmul.mubr.bf16.gmra.mrb[0].mxu0 %v1857
    %v1913 = vpop.f32.mrb[0].mxu0
    %v1914 = vadd.f32 %v1803, %v1913
    %v1915 = vpop.f32.mrb[0].mxu0
    %v1916 = vadd.f32 %v1807, %v1915
    %v1917 = vpop.f32.mrb[0].mxu0
    %v1918 = vadd.f32 %v1803, %v1917
    %v1919 = vpop.f32.mrb[0].mxu0
    %v1920 = vadd.f32 %v1807, %v1919
    %1921 = vdwg.mxu0
    %v1922 = vmul.f32 %v1894, %v1894
    %v1923 = vmul.f32 %v1896, %v1896
    %v1924 = vmul.f32 %v1898, %v1898
    %v1925 = vmul.f32 %v1900, %v1900
    %v1926 = vmul.f32 %v1904, %v1904
    %v1927 = vmul.f32 %v1906, %v1906
    %v1928 = vmul.f32 %v1908, %v1908
    %v1929 = vmul.f32 %v1910, %v1910
    %v1930 = vmul.f32 %v1914, %v1914
    %v1931 = vmul.f32 %v1916, %v1916
    %v1932 = vmul.f32 %v1918, %v1918
    %v1933 = vmul.f32 %v1920, %v1920
    %v1934 = vmul.f32 %v1894, %v1922
    %v1935 = vmul.f32 %v1896, %v1923
    %v1936 = vmul.f32 %v1898, %v1924
    %v1937 = vmul.f32 %v1900, %v1925
    %v1938 = vmul.f32 %v1904, %v1926
    %v1939 = vmul.f32 %v1906, %v1927
    %v1940 = vmul.f32 %v1908, %v1928
    %v1941 = vmul.f32 %v1910, %v1929
    %v1942 = vmul.f32 %v1914, %v1930
    %v1943 = vmul.f32 %v1916, %v1931
    %v1944 = vmul.f32 %v1918, %v1932
    %v1945 = vmul.f32 %v1920, %v1933
    %v1946 = vmul.f32 %v1934, 0.044715
    %v1947 = vmul.f32 %v1935, 0.044715
    %v1948 = vmul.f32 %v1936, 0.044715
    %v1949 = vmul.f32 %v1937, 0.044715
    %v1950 = vmul.f32 %v1938, 0.044715
    %v1951 = vmul.f32 %v1939, 0.044715
    %v1952 = vmul.f32 %v1940, 0.044715
    %v1953 = vmul.f32 %v1941, 0.044715
    %v1954 = vmul.f32 %v1942, 0.044715
    %v1955 = vmul.f32 %v1943, 0.044715
    %v1956 = vmul.f32 %v1944, 0.044715
    %v1957 = vmul.f32 %v1945, 0.044715
    %v1958 = vadd.f32 %v1894, %v1946
    %v1959 = vadd.f32 %v1896, %v1947
    %v1960 = vadd.f32 %v1898, %v1948
    %v1961 = vadd.f32 %v1900, %v1949
    %v1962 = vadd.f32 %v1904, %v1950
    %v1963 = vadd.f32 %v1906, %v1951
    %v1964 = vadd.f32 %v1908, %v1952
    %v1965 = vadd.f32 %v1910, %v1953
    %v1966 = vadd.f32 %v1914, %v1954
    %v1967 = vadd.f32 %v1916, %v1955
    %v1968 = vadd.f32 %v1918, %v1956
    %v1969 = vadd.f32 %v1920, %v1957
    %v1970 = vmul.f32 %v1958, 0.7978846
    %v1971 = vmul.f32 %v1959, 0.7978846
    %v1972 = vmul.f32 %v1960, 0.7978846
    %v1973 = vmul.f32 %v1961, 0.7978846
    %v1974 = vmul.f32 %v1962, 0.7978846
    %v1975 = vmul.f32 %v1963, 0.7978846
    %v1976 = vmul.f32 %v1964, 0.7978846
    %v1977 = vmul.f32 %v1965, 0.7978846
    %v1978 = vmul.f32 %v1966, 0.7978846
    %v1979 = vmul.f32 %v1967, 0.7978846
    %v1980 = vmul.f32 %v1968, 0.7978846
    %v1981 = vmul.f32 %v1969, 0.7978846
    %v1982 = vtanh.pop %v1970
    %v1983 = vtanh.pop %v1971
    %v1984 = vtanh.pop %v1972
    %v1985 = vtanh.pop %v1973
    %v1986 = vtanh.pop %v1974
    %v1987 = vtanh.pop %v1975
    %v1988 = vtanh.pop %v1976
    %v1989 = vtanh.pop %v1977
    %v1990 = vtanh.pop %v1978
    %v1991 = vtanh.pop %v1979
    %v1992 = vtanh.pop %v1980
    %v1993 = vtanh.pop %v1981
    %v1994 = vadd.f32 %v1982, 1.0
    %v1995 = vadd.f32 %v1983, 1.0
    %v1996 = vadd.f32 %v1984, 1.0
    %v1997 = vadd.f32 %v1985, 1.0
    %v1998 = vadd.f32 %v1986, 1.0
    %v1999 = vadd.f32 %v1987, 1.0
    %v2000 = vadd.f32 %v1988, 1.0
    %v2001 = vadd.f32 %v1989, 1.0
    %v2002 = vadd.f32 %v1990, 1.0
    %v2003 = vadd.f32 %v1991, 1.0
    %v2004 = vadd.f32 %v1992, 1.0
    %v2005 = vadd.f32 %v1993, 1.0
    %v2006 = vmul.f32 %v1994, 0.5
    %v2007 = vmul.f32 %v1995, 0.5
    %v2008 = vmul.f32 %v1996, 0.5
    %v2009 = vmul.f32 %v1997, 0.5
    %v2010 = vmul.f32 %v1998, 0.5
    %v2011 = vmul.f32 %v1999, 0.5
    %v2012 = vmul.f32 %v2000, 0.5
    %v2013 = vmul.f32 %v2001, 0.5
    %v2014 = vmul.f32 %v2002, 0.5
    %v2015 = vmul.f32 %v2003, 0.5
    %v2016 = vmul.f32 %v2004, 0.5
    %v2017 = vmul.f32 %v2005, 0.5
    %v2018 = vmul.f32 %v1894, %v2006
    %v2019 = vmul.f32 %v1896, %v2007
    %v2020 = vmul.f32 %v1898, %v2008
    %v2021 = vmul.f32 %v1900, %v2009
    %v2022 = vmul.f32 %v1904, %v2010
    %v2023 = vmul.f32 %v1906, %v2011
    %v2024 = vmul.f32 %v1908, %v2012
    %v2025 = vmul.f32 %v1910, %v2013
    %v2026 = vmul.f32 %v1914, %v2014
    %v2027 = vmul.f32 %v1916, %v2015
    %v2028 = vmul.f32 %v1918, %v2016
    %v2029 = vmul.f32 %v1920, %v2017
    %v2030 = vpack.c.bf16 %v2020, %v2018
    %v2031 = vpack.c.bf16 %v2021, %v2019
    %v2032 = vpack.c.bf16 %v2024, %v2022
    %v2033 = vpack.c.bf16 %v2025, %v2023
    %v2034 = vpack.c.bf16 %v2028, %v2026
    %v2035 = vpack.c.bf16 %v2029, %v2027
    %v2036 = vld [vmem:[%s16] sm:$0xf]
    %v2037 = vld [vmem:[%s16 + $0x4] sm:$0xf]
    %v2038 = vld [vmem:[%s16 + $0x8] sm:$0xf]
    %v2039 = vld [vmem:[%s16 + $0xc] sm:$0xf]
    %v2040 = vld [vmem:[%s16 + $0x10] sm:$0xf]
    %v2041 = vld [vmem:[%s16 + $0x14] sm:$0xf]
    %v2042 = vld [vmem:[%s16 + $0x18] sm:$0xf]
    %v2043 = vld [vmem:[%s16 + $0x1c] sm:$0xf]
    %v2044 = vld [vmem:[%s16 + $0x20] sm:$0xf]
    %v2045 = vld [vmem:[%s16 + $0x24] sm:$0xf]
    %v2046 = vld [vmem:[%s16 + $0x28] sm:$0xf]
    %v2047 = vld [vmem:[%s16 + $0x2c] sm:$0xf]
    %v2048 = vld [vmem:[%s16 + $0x30] sm:$0xf]
    %v2049 = vld [vmem:[%s16 + $0x34] sm:$0xf]
    %v2050 = vld [vmem:[%s16 + $0x38] sm:$0xf]
    %v2051 = vld [vmem:[%s16 + $0x3c] sm:$0xf]
    %v2052 = vld [vmem:[%s16 + $0x40] sm:$0xf]
    %v2053 = vld [vmem:[%s16 + $0x44] sm:$0xf]
    %v2054 = vld [vmem:[%s16 + $0x48] sm:$0xf]
    %v2055 = vld [vmem:[%s16 + $0x4c] sm:$0xf]
    %v2056 = vld [vmem:[%s16 + $0x50] sm:$0xf]
    %v2057 = vld [vmem:[%s16 + $0x54] sm:$0xf]
    %v2058 = vld [vmem:[%s16 + $0x58] sm:$0xf]
    %v2059 = vld [vmem:[%s16 + $0x5c] sm:$0xf]
    %v2060 = vld [vmem:[%s16 + $0x60] sm:$0xf]
    %v2061 = vld [vmem:[%s16 + $0x64] sm:$0xf]
    %v2062 = vld [vmem:[%s16 + $0x68] sm:$0xf]
    %v2063 = vld [vmem:[%s16 + $0x6c] sm:$0xf]
    %v2064 = vld [vmem:[%s16 + $0x70] sm:$0xf]
    %v2065 = vld [vmem:[%s16 + $0x74] sm:$0xf]
    %v2066 = vld [vmem:[%s16 + $0x78] sm:$0xf]
    %v2067 = vld [vmem:[%s16 + $0x7c] sm:$0xf]
    %v2068 = vld [vmem:[%s17] sm:$0x1]
    %v2070 = vlaneseq
    %v2071 = vshrl.u32 %v2070, 7
    %v2072 = vsub.s32 0, %v2071
    %v2073 = vrot.slane %v2068, %v2072
    %v2107 = vunpack.c.l.b16 %v2036
    %v2108 = vunpack.c.l.b16 %v2037
    %v2109 = vunpack.c.l.b16 %v2038
    %v2110 = vunpack.c.l.b16 %v2039
    %v2111 = vunpack.c.l.b16 %v2040
    %v2112 = vunpack.c.l.b16 %v2041
    %v2113 = vunpack.c.l.b16 %v2042
    %v2114 = vunpack.c.l.b16 %v2043
    %v2115 = vunpack.c.l.b16 %v2044
    %v2116 = vunpack.c.l.b16 %v2045
    %v2117 = vunpack.c.l.b16 %v2046
    %v2118 = vunpack.c.l.b16 %v2047
    %v2119 = vunpack.c.l.b16 %v2048
    %v2120 = vunpack.c.l.b16 %v2049
    %v2121 = vunpack.c.l.b16 %v2050
    %v2122 = vunpack.c.l.b16 %v2051
    %v2123 = vunpack.c.l.b16 %v2052
    %v2124 = vunpack.c.l.b16 %v2053
    %v2125 = vunpack.c.l.b16 %v2054
    %v2126 = vunpack.c.l.b16 %v2055
    %v2127 = vunpack.c.l.b16 %v2056
    %v2128 = vunpack.c.l.b16 %v2057
    %v2129 = vunpack.c.l.b16 %v2058
    %v2130 = vunpack.c.l.b16 %v2059
    %v2131 = vunpack.c.l.b16 %v2060
    %v2132 = vunpack.c.l.b16 %v2061
    %v2133 = vunpack.c.l.b16 %v2062
    %v2134 = vunpack.c.l.b16 %v2063
    %v2135 = vunpack.c.l.b16 %v2064
    %v2136 = vunpack.c.l.b16 %v2065
    %v2137 = vunpack.c.l.b16 %v2066
    %v2138 = vunpack.c.l.b16 %v2067
    %v2139 = vpack.c.b16 %v2108, %v2107
    %v2140 = vpack.c.b16 %v2110, %v2109
    %v2141 = vpack.c.b16 %v2112, %v2111
    %v2142 = vpack.c.b16 %v2114, %v2113
    %v2143 = vpack.c.b16 %v2116, %v2115
    %v2144 = vpack.c.b16 %v2118, %v2117
    %v2145 = vpack.c.b16 %v2120, %v2119
    %v2146 = vpack.c.b16 %v2122, %v2121
    %v2147 = vpack.c.b16 %v2124, %v2123
    %v2148 = vpack.c.b16 %v2126, %v2125
    %v2149 = vpack.c.b16 %v2128, %v2127
    %v2150 = vpack.c.b16 %v2130, %v2129
    %v2151 = vpack.c.b16 %v2132, %v2131
    %v2152 = vpack.c.b16 %v2134, %v2133
    %v2153 = vpack.c.b16 %v2136, %v2135
    %v2154 = vpack.c.b16 %v2138, %v2137
    %2171 = vmatprep.subr.bf16.mxu0 0
    %2172 = vmatpush1.bf16.msra.mxu0 %v2139
    %2173 = vmatprep.subr.bf16.mxu0 0
    %2174 = vmatpush1.bf16.msra.mxu0 %v2140
    %2175 = vmatprep.subr.bf16.mxu0 0
    %2176 = vmatpush1.bf16.msra.mxu0 %v2141
    %2177 = vmatprep.subr.bf16.mxu0 0
    %2178 = vmatpush1.bf16.msra.mxu0 %v2142
    %2179 = vmatprep.subr.bf16.mxu0 0
    %2180 = vmatpush1.bf16.msra.mxu0 %v2143
    %2181 = vmatprep.subr.bf16.mxu0 0
    %2182 = vmatpush1.bf16.msra.mxu0 %v2144
    %2183 = vmatprep.subr.bf16.mxu0 0
    %2184 = vmatpush1.bf16.msra.mxu0 %v2145
    %2185 = vmatprep.subr.bf16.mxu0 0
    %2186 = vmatpush1.bf16.msra.mxu0 %v2146
    %2187 = vmatprep.subr.bf16.mxu0 0
    %2188 = vmatpush1.bf16.msra.mxu0 %v2147
    %2189 = vmatprep.subr.bf16.mxu0 0
    %2190 = vmatpush1.bf16.msra.mxu0 %v2148
    %2191 = vmatprep.subr.bf16.mxu0 0
    %2192 = vmatpush1.bf16.msra.mxu0 %v2149
    %2193 = vmatprep.subr.bf16.mxu0 0
    %2194 = vmatpush1.bf16.msra.mxu0 %v2150
    %2195 = vmatprep.subr.bf16.mxu0 0
    %2196 = vmatpush1.bf16.msra.mxu0 %v2151
    %2197 = vmatprep.subr.bf16.mxu0 0
    %2198 = vmatpush1.bf16.msra.mxu0 %v2152
    %2199 = vmatprep.subr.bf16.mxu0 0
    %2200 = vmatpush1.bf16.msra.mxu0 %v2153
    %2201 = vmatprep.subr.bf16.mxu0 0
    %2202 = vmatpush1.bf16.msra.mxu0 %v2154
    %2203 = vmatprep.mubr.bf16.mxu0 %v2031
    %2204 = vmatmul.mubr.bf16.gmra.mrb[0].mxu0 %v2030
    %v2205 = vpop.f32.mrb[0].mxu0
    %v2206 = vadd.f32 %v2073, %v2205
    %v2207 = vpop.f32.mrb[0].mxu0
    %v2208 = vpop.f32.mrb[0].mxu0
    %v2209 = vadd.f32 %v2073, %v2208
    %v2210 = vpop.f32.mrb[0].mxu0
    %2211 = vmatprep.mubr.bf16.mxu0 %v2033
    %2212 = vmatmul.mubr.bf16.gmra.mrb[0].mxu0 %v2032
    %v2213 = vpop.f32.mrb[0].mxu0
    %v2214 = vadd.f32 %v2073, %v2213
    %v2215 = vpop.f32.mrb[0].mxu0
    %v2216 = vpop.f32.mrb[0].mxu0
    %v2217 = vadd.f32 %v2073, %v2216
    %v2218 = vpop.f32.mrb[0].mxu0
    %2219 = vmatprep.mubr.bf16.mxu0 %v2035
    %2220 = vmatmul.mubr.bf16.gmra.mrb[0].mxu0 %v2034
    %v2221 = vpop.f32.mrb[0].mxu0
    %v2222 = vadd.f32 %v2073, %v2221
    %v2223 = vpop.f32.mrb[0].mxu0
    %v2224 = vpop.f32.mrb[0].mxu0
    %v2225 = vadd.f32 %v2073, %v2224
    %v2226 = vpop.f32.mrb[0].mxu0
    %2227 = vdwg.mxu0
    %v2228 = vadd.f32 %v1677, %v2206
    %v2229 = vadd.f32 %v1678, %v2209
    %v2230 = vadd.f32 %v1679, %v2214
    %v2231 = vadd.f32 %v1680, %v2217
    %v2232 = vadd.f32 %v1681, %v2222
    %v2233 = vadd.f32 %v1682, %v2225
    %s2234 = scalar_lea.vmem %s6, 1
    %v2235 = vld [vmem:[%s2234] sm:$0x1]
    %s2236 = scalar_lea.vmem %s7, 1
    %v2237 = vld [vmem:[%s2236] sm:$0x1]
    %v2238 = vsel %vm198, %v2228, 0.0
    %2239 = vadd.xlane.f32.xlu0 %v2238
    %v2240 = vpop.xlane.xlu0 %2239
    %v2241 = vsel %vm198, %v2229, 0.0
    %2242 = vadd.xlane.f32.xlu0 %v2241
    %v2243 = vpop.xlane.xlu0 %2242
    %v2244 = vsel %vm198, %v2230, 0.0
    %2245 = vadd.xlane.f32.xlu0 %v2244
    %v2246 = vpop.xlane.xlu0 %2245
    %v2247 = vsel %vm198, %v2231, 0.0
    %2248 = vadd.xlane.f32.xlu0 %v2247
    %v2249 = vpop.xlane.xlu0 %2248
    %v2250 = vsel %vm198, %v2232, 0.0
    %2251 = vadd.xlane.f32.xlu0 %v2250
    %v2252 = vpop.xlane.xlu0 %2251
    %v2253 = vsel %vm198, %v2233, 0.0
    %2254 = vadd.xlane.f32.xlu0 %v2253
    %v2255 = vpop.xlane.xlu0 %2254
    %v2256 = vmul.f32 %v2240, %v309
    %v2257 = vmul.f32 %v2243, %v309
    %v2258 = vmul.f32 %v2246, %v309
    %v2259 = vmul.f32 %v2249, %v309
    %v2260 = vmul.f32 %v2252, %v309
    %v2261 = vmul.f32 %v2255, %v309
    %v2262 = vsub.f32 %v2228, %v2256
    %v2263 = vsub.f32 %v2229, %v2257
    %v2264 = vsub.f32 %v2230, %v2258
    %v2265 = vsub.f32 %v2231, %v2259
    %v2266 = vsub.f32 %v2232, %v2260
    %v2267 = vsub.f32 %v2233, %v2261
    %v2268 = vmul.f32 %v2262, %v2262
    %v2269 = vmul.f32 %v2263, %v2263
    %v2270 = vmul.f32 %v2264, %v2264
    %v2271 = vmul.f32 %v2265, %v2265
    %v2272 = vmul.f32 %v2266, %v2266
    %v2273 = vmul.f32 %v2267, %v2267
    %v2274 = vsel %vm198, %v2268, 0.0
    %2275 = vadd.xlane.f32.xlu0 %v2274
    %v2276 = vpop.xlane.xlu0 %2275
    %v2277 = vsel %vm198, %v2269, 0.0
    %2278 = vadd.xlane.f32.xlu0 %v2277
    %v2279 = vpop.xlane.xlu0 %2278
    %v2280 = vsel %vm198, %v2270, 0.0
    %2281 = vadd.xlane.f32.xlu0 %v2280
    %v2282 = vpop.xlane.xlu0 %2281
    %v2283 = vsel %vm198, %v2271, 0.0
    %2284 = vadd.xlane.f32.xlu0 %v2283
    %v2285 = vpop.xlane.xlu0 %2284
    %v2286 = vsel %vm198, %v2272, 0.0
    %2287 = vadd.xlane.f32.xlu0 %v2286
    %v2288 = vpop.xlane.xlu0 %2287
    %v2289 = vsel %vm198, %v2273, 0.0
    %2290 = vadd.xlane.f32.xlu0 %v2289
    %v2291 = vpop.xlane.xlu0 %2290
    %v2292 = vmul.f32 %v2276, %v309
    %v2293 = vmul.f32 %v2279, %v309
    %v2294 = vmul.f32 %v2282, %v309
    %v2295 = vmul.f32 %v2285, %v309
    %v2296 = vmul.f32 %v2288, %v309
    %v2297 = vmul.f32 %v2291, %v309
    %v2298 = vadd.f32 %v2292, 1e-06
    %v2299 = vadd.f32 %v2293, 1e-06
    %v2300 = vadd.f32 %v2294, 1e-06
    %v2301 = vadd.f32 %v2295, 1e-06
    %v2302 = vadd.f32 %v2296, 1e-06
    %v2303 = vadd.f32 %v2297, 1e-06
    %v2304 = vrsqrt.pop %v2298
    %v2305 = vrsqrt.pop %v2299
    %v2306 = vrsqrt.pop %v2300
    %v2307 = vrsqrt.pop %v2301
    %v2308 = vrsqrt.pop %v2302
    %v2309 = vrsqrt.pop %v2303
    %v2310 = vmul.f32 %v2262, %v2304
    %v2311 = vmul.f32 %v2263, %v2305
    %v2312 = vmul.f32 %v2264, %v2306
    %v2313 = vmul.f32 %v2265, %v2307
    %v2314 = vmul.f32 %v2266, %v2308
    %v2315 = vmul.f32 %v2267, %v2309
    %v2317 = vlaneseq
    %v2318 = vshrl.u32 %v2317, 7
    %v2319 = vsub.s32 0, %v2318
    %v2320 = vrot.slane %v2235, %v2319
    %v2322 = vmul.f32 %v2310, %v2320
    %v2323 = vmul.f32 %v2311, %v2320
    %v2324 = vmul.f32 %v2312, %v2320
    %v2325 = vmul.f32 %v2313, %v2320
    %v2326 = vmul.f32 %v2314, %v2320
    %v2327 = vmul.f32 %v2315, %v2320
    %v2329 = vlaneseq
    %v2330 = vshrl.u32 %v2329, 7
    %v2331 = vsub.s32 0, %v2330
    %v2332 = vrot.slane %v2237, %v2331
    %v2334 = vadd.f32 %v2322, %v2332
    %v2335 = vadd.f32 %v2323, %v2332
    %v2336 = vadd.f32 %v2324, %v2332
    %v2337 = vadd.f32 %v2325, %v2332
    %v2338 = vadd.f32 %v2326, %v2332
    %v2339 = vadd.f32 %v2327, %v2332
    %v2340 = vpack.c.bf16 %v2335, %v2334
    %v2341 = vpack.c.bf16 %v2337, %v2336
    %v2342 = vpack.c.bf16 %v2339, %v2338
    %s2343 = scalar_lea.vmem %s8, 64
    %v2344 = vld [vmem:[%s2343] sm:$0xff]
    %v2345 = vld [vmem:[%s2343 + $0x8] sm:$0xff]
    %v2346 = vld [vmem:[%s2343 + $0x10] sm:$0xff]
    %v2347 = vld [vmem:[%s2343 + $0x18] sm:$0xff]
    %v2348 = vld [vmem:[%s2343 + $0x20] sm:$0xff]
    %v2349 = vld [vmem:[%s2343 + $0x28] sm:$0xff]
    %v2350 = vld [vmem:[%s2343 + $0x30] sm:$0xff]
    %v2351 = vld [vmem:[%s2343 + $0x38] sm:$0xff]
    %s2352 = scalar_lea.vmem %s9, 2
    %v2353 = vld [vmem:[%s2352] sm:$0x3]
    %v2355 = vlaneseq
    %v2356 = vshrl.u32 %v2355, 7
    %v2357 = vsub.s32 0, %v2356
    %v2358 = vrot.slane %v2353, %v2357
    %v2359 = vlaneseq
    %v2360 = vshrl.u32 %v2359, 7
    %v2361 = vsub.s32 1, %v2360
    %v2362 = vrot.slane %v2353, %v2361
    %v2373 = vunpack.c.l.b16 %v2344
    %v2374 = vunpack.c.h.b16 %v2344
    %v2375 = vunpack.c.l.b16 %v2345
    %v2376 = vunpack.c.h.b16 %v2345
    %v2377 = vunpack.c.l.b16 %v2346
    %v2378 = vunpack.c.h.b16 %v2346
    %v2379 = vunpack.c.l.b16 %v2347
    %v2380 = vunpack.c.h.b16 %v2347
    %v2381 = vunpack.c.l.b16 %v2348
    %v2382 = vunpack.c.h.b16 %v2348
    %v2383 = vunpack.c.l.b16 %v2349
    %v2384 = vunpack.c.h.b16 %v2349
    %v2385 = vunpack.c.l.b16 %v2350
    %v2386 = vunpack.c.h.b16 %v2350
    %v2387 = vunpack.c.l.b16 %v2351
    %v2388 = vunpack.c.h.b16 %v2351
    %v2389 = vpack.c.b16 %v2375, %v2373
    %v2390 = vpack.c.b16 %v2376, %v2374
    %v2391 = vpack.c.b16 %v2379, %v2377
    %v2392 = vpack.c.b16 %v2380, %v2378
    %v2393 = vpack.c.b16 %v2383, %v2381
    %v2394 = vpack.c.b16 %v2384, %v2382
    %v2395 = vpack.c.b16 %v2387, %v2385
    %v2396 = vpack.c.b16 %v2388, %v2386
    %v2406 = vsel %vm198, %v2340, 0
    %v2409 = vsel %vm198, %v2341, 0
    %v2412 = vsel %vm198, %v2342, 0
    %2414 = vmatprep.subr.bf16.mxu0 %v2390
    %2415 = vmatpush1.bf16.msra.mxu0 %v2389
    %2416 = vmatprep.subr.bf16.mxu0 %v2392
    %2417 = vmatpush1.bf16.msra.mxu0 %v2391
    %2418 = vmatprep.subr.bf16.mxu0 %v2394
    %2419 = vmatpush1.bf16.msra.mxu0 %v2393
    %2420 = vmatprep.subr.bf16.mxu0 %v2396
    %2421 = vmatpush1.bf16.msra.mxu0 %v2395
    %2422 = vmatprep.subr.bf16.mxu0 0
    %2423 = vmatpush1.bf16.msra.mxu0 0
    %2424 = vmatprep.subr.bf16.mxu0 0
    %2425 = vmatpush1.bf16.msra.mxu0 0
    %2426 = vmatprep.subr.bf16.mxu0 0
    %2427 = vmatpush1.bf16.msra.mxu0 0
    %2428 = vmatprep.subr.bf16.mxu0 0
    %2429 = vmatpush1.bf16.msra.mxu0 0
    %2430 = vmatprep.subr.bf16.mxu0 0
    %2431 = vmatpush1.bf16.msra.mxu0 0
    %2432 = vmatprep.subr.bf16.mxu0 0
    %2433 = vmatpush1.bf16.msra.mxu0 0
    %2434 = vmatprep.subr.bf16.mxu0 0
    %2435 = vmatpush1.bf16.msra.mxu0 0
    %2436 = vmatprep.subr.bf16.mxu0 0
    %2437 = vmatpush1.bf16.msra.mxu0 0
    %2438 = vmatprep.subr.bf16.mxu0 0
    %2439 = vmatpush1.bf16.msra.mxu0 0
    %2440 = vmatprep.subr.bf16.mxu0 0
    %2441 = vmatpush1.bf16.msra.mxu0 0
    %2442 = vmatprep.subr.bf16.mxu0 0
    %2443 = vmatpush1.bf16.msra.mxu0 0
    %2444 = vmatprep.subr.bf16.mxu0 0
    %2445 = vmatpush1.bf16.msra.mxu0 0
    %2446 = vmatprep.mubr.bf16.mxu0 0
    %2447 = vmatmul.mubr.bf16.gmra.mrb[0].mxu0 %v2406
    %v2448 = vpop.f32.mrb[0].mxu0
    %v2449 = vadd.f32 %v2358, %v2448
    %v2450 = vpop.f32.mrb[0].mxu0
    %v2451 = vadd.f32 %v2362, %v2450
    %v2452 = vpop.f32.mrb[0].mxu0
    %v2453 = vadd.f32 %v2358, %v2452
    %v2454 = vpop.f32.mrb[0].mxu0
    %v2455 = vadd.f32 %v2362, %v2454
    %2456 = vmatprep.mubr.bf16.mxu0 0
    %2457 = vmatmul.mubr.bf16.gmra.mrb[0].mxu0 %v2409
    %v2458 = vpop.f32.mrb[0].mxu0
    %v2459 = vadd.f32 %v2358, %v2458
    %v2460 = vpop.f32.mrb[0].mxu0
    %v2461 = vadd.f32 %v2362, %v2460
    %v2462 = vpop.f32.mrb[0].mxu0
    %v2463 = vadd.f32 %v2358, %v2462
    %v2464 = vpop.f32.mrb[0].mxu0
    %v2465 = vadd.f32 %v2362, %v2464
    %2466 = vmatprep.mubr.bf16.mxu0 0
    %2467 = vmatmul.mubr.bf16.gmra.mrb[0].mxu0 %v2412
    %v2468 = vpop.f32.mrb[0].mxu0
    %v2469 = vadd.f32 %v2358, %v2468
    %v2470 = vpop.f32.mrb[0].mxu0
    %v2471 = vadd.f32 %v2362, %v2470
    %v2472 = vpop.f32.mrb[0].mxu0
    %v2473 = vadd.f32 %v2358, %v2472
    %v2474 = vpop.f32.mrb[0].mxu0
    %v2475 = vadd.f32 %v2362, %v2474
    %2476 = vdwg.mxu0
    %v2477 = vmul.f32 %v2449, 0.25
    %v2478 = vmul.f32 %v2453, 0.25
    %v2479 = vmul.f32 %v2459, 0.25
    %v2480 = vmul.f32 %v2463, 0.25
    %v2481 = vmul.f32 %v2469, 0.25
    %v2482 = vmul.f32 %v2473, 0.25
    %v2483 = vpack.c.bf16 %v2478, %v2477
    %v2484 = vpack.c.bf16 %v2480, %v2479
    %v2485 = vpack.c.bf16 %v2482, %v2481
    %v2486 = vpack.c.bf16 %v2453, %v2449
    %v2487 = vpack.c.bf16 %v2463, %v2459
    %v2488 = vpack.c.bf16 %v2473, %v2469
    %v2489 = vpack.c.bf16 %v2455, %v2451
    %v2490 = vpack.c.bf16 %v2465, %v2461
    %v2491 = vpack.c.bf16 %v2475, %v2471
    %2495 = vrot.lane.b32.xlu0 %v2486, 64
    %v2496 = vpop.permute.xlu0 %2495
    %2497 = vrot.lane.b32.xlu0 %v2487, 64
    %v2498 = vpop.permute.xlu0 %2497
    %2499 = vrot.lane.b32.xlu0 %v2488, 64
    %v2500 = vpop.permute.xlu0 %2499
    %v2502 = vsel %vm553, %v2483, 0
    %v2505 = vsel %vm553, %v2484, 0
    %v2508 = vsel %vm553, %v2485, 0
    %v2511 = vsel %vm553, %v2496, 0
    %v2514 = vsel %vm553, %v2498, 0
    %v2517 = vsel %vm553, %v2500, 0
    %2519 = vmatprep.subr.bf16.mxu0 0
    %2520 = vmatpush1.bf16.xpose.msra.mxu0 %v2511
    %2521 = vmatprep.subr.bf16.mxu0 0
    %2522 = vmatpush1.bf16.xpose.msra.mxu0 %v2514
    %2523 = vmatprep.subr.bf16.mxu0 0
    %2524 = vmatpush1.bf16.xpose.msra.mxu0 %v2517
    %2525 = vmatprep.subr.bf16.mxu0 0
    %2526 = vmatpush1.bf16.xpose.msra.mxu0 0
    %2527 = vmatprep.subr.bf16.mxu0 0
    %2528 = vmatpush1.bf16.xpose.msra.mxu0 0
    %2529 = vmatprep.subr.bf16.mxu0 0
    %2530 = vmatpush1.bf16.xpose.msra.mxu0 0
    %2531 = vmatprep.subr.bf16.mxu0 0
    %2532 = vmatpush1.bf16.xpose.msra.mxu0 0
    %2533 = vmatprep.subr.bf16.mxu0 0
    %2534 = vmatpush1.bf16.xpose.msra.mxu0 0
    %2535 = vmatprep.subr.bf16.mxu0 0
    %2536 = vmatpush1.bf16.xpose.msra.mxu0 0
    %2537 = vmatprep.subr.bf16.mxu0 0
    %2538 = vmatpush1.bf16.xpose.msra.mxu0 0
    %2539 = vmatprep.subr.bf16.mxu0 0
    %2540 = vmatpush1.bf16.xpose.msra.mxu0 0
    %2541 = vmatprep.subr.bf16.mxu0 0
    %2542 = vmatpush1.bf16.xpose.msra.mxu0 0
    %2543 = vmatprep.subr.bf16.mxu0 0
    %2544 = vmatpush1.bf16.xpose.msra.mxu0 0
    %2545 = vmatprep.subr.bf16.mxu0 0
    %2546 = vmatpush1.bf16.xpose.msra.mxu0 0
    %2547 = vmatprep.subr.bf16.mxu0 0
    %2548 = vmatpush1.bf16.xpose.msra.mxu0 0
    %2549 = vmatprep.subr.bf16.mxu0 0
    %2550 = vmatpush1.bf16.xpose.msra.mxu0 0
    %2551 = vmatprep.mubr.bf16.mxu0 0
    %2552 = vmatmul.mubr.bf16.gmra.mrb[0].mxu0 %v2502
    %v2553 = vpop.f32.mrb[0].mxu0
    %v2554 = vadd.f32 %v283, %v2553
    %v2555 = vpop.f32.mrb[0].mxu0
    %v2556 = vpop.f32.mrb[0].mxu0
    %v2557 = vadd.f32 %v284, %v2556
    %v2558 = vpop.f32.mrb[0].mxu0
    %2559 = vmatprep.mubr.bf16.mxu0 0
    %2560 = vmatmul.mubr.bf16.gmra.mrb[0].mxu0 %v2505
    %v2561 = vpop.f32.mrb[0].mxu0
    %v2562 = vadd.f32 %v285, %v2561
    %v2563 = vpop.f32.mrb[0].mxu0
    %v2564 = vpop.f32.mrb[0].mxu0
    %v2565 = vadd.f32 %v286, %v2564
    %v2566 = vpop.f32.mrb[0].mxu0
    %2567 = vmatprep.mubr.bf16.mxu0 0
    %2568 = vmatmul.mubr.bf16.gmra.mrb[0].mxu0 %v2508
    %v2569 = vpop.f32.mrb[0].mxu0
    %v2570 = vadd.f32 %v287, %v2569
    %v2571 = vpop.f32.mrb[0].mxu0
    %v2572 = vpop.f32.mrb[0].mxu0
    %v2573 = vadd.f32 %v288, %v2572
    %v2574 = vpop.f32.mrb[0].mxu0
    %2575 = vdwg.mxu0
    %v2576 = vsel %vm629, %v2554, -inf
    %2577 = vmax.xlane.f32.xlu0 %v2576
    %v2578 = vpop.xlane.xlu0 %2577
    %v2579 = vsel %vm629, %v2557, -inf
    %2580 = vmax.xlane.f32.xlu0 %v2579
    %v2581 = vpop.xlane.xlu0 %2580
    %v2582 = vsel %vm629, %v2562, -inf
    %2583 = vmax.xlane.f32.xlu0 %v2582
    %v2584 = vpop.xlane.xlu0 %2583
    %v2585 = vsel %vm629, %v2565, -inf
    %2586 = vmax.xlane.f32.xlu0 %v2585
    %v2587 = vpop.xlane.xlu0 %2586
    %v2588 = vsel %vm629, %v2570, -inf
    %2589 = vmax.xlane.f32.xlu0 %v2588
    %v2590 = vpop.xlane.xlu0 %2589
    %v2591 = vsel %vm629, %v2573, -inf
    %2592 = vmax.xlane.f32.xlu0 %v2591
    %v2593 = vpop.xlane.xlu0 %2592
    %v2594 = vsub.f32 %v2554, %v2578
    %v2595 = vsub.f32 %v2557, %v2581
    %v2596 = vsub.f32 %v2562, %v2584
    %v2597 = vsub.f32 %v2565, %v2587
    %v2598 = vsub.f32 %v2570, %v2590
    %v2599 = vsub.f32 %v2573, %v2593
    %v2600 = vmul.f32 %v2594, 1.442695
    %v2601 = vpow.pop %v2600
    %v2602 = vmul.f32 %v2595, 1.442695
    %v2603 = vpow.pop %v2602
    %v2604 = vmul.f32 %v2596, 1.442695
    %v2605 = vpow.pop %v2604
    %v2606 = vmul.f32 %v2597, 1.442695
    %v2607 = vpow.pop %v2606
    %v2608 = vmul.f32 %v2598, 1.442695
    %v2609 = vpow.pop %v2608
    %v2610 = vmul.f32 %v2599, 1.442695
    %v2611 = vpow.pop %v2610
    %v2612 = vsel %vm629, %v2601, 0.0
    %2613 = vadd.xlane.f32.xlu0 %v2612
    %v2614 = vpop.xlane.xlu0 %2613
    %v2615 = vsel %vm629, %v2603, 0.0
    %2616 = vadd.xlane.f32.xlu0 %v2615
    %v2617 = vpop.xlane.xlu0 %2616
    %v2618 = vsel %vm629, %v2605, 0.0
    %2619 = vadd.xlane.f32.xlu0 %v2618
    %v2620 = vpop.xlane.xlu0 %2619
    %v2621 = vsel %vm629, %v2607, 0.0
    %2622 = vadd.xlane.f32.xlu0 %v2621
    %v2623 = vpop.xlane.xlu0 %2622
    %v2624 = vsel %vm629, %v2609, 0.0
    %2625 = vadd.xlane.f32.xlu0 %v2624
    %v2626 = vpop.xlane.xlu0 %2625
    %v2627 = vsel %vm629, %v2611, 0.0
    %2628 = vadd.xlane.f32.xlu0 %v2627
    %v2629 = vpop.xlane.xlu0 %2628
    %v2630 = vrcp.pop %v2614
    %v2631 = vrcp.pop %v2617
    %v2632 = vrcp.pop %v2620
    %v2633 = vrcp.pop %v2623
    %v2634 = vrcp.pop %v2626
    %v2635 = vrcp.pop %v2629
    %v2636 = vmul.f32 %v2601, %v2630
    %v2637 = vmul.f32 %v2603, %v2631
    %v2638 = vmul.f32 %v2605, %v2632
    %v2639 = vmul.f32 %v2607, %v2633
    %v2640 = vmul.f32 %v2609, %v2634
    %v2641 = vmul.f32 %v2611, %v2635
    %v2642 = vpack.c.bf16 %v2637, %v2636
    %v2643 = vpack.c.bf16 %v2639, %v2638
    %v2644 = vpack.c.bf16 %v2641, %v2640
    %v2646 = vsel %vm629, %v2642, 0
    %v2649 = vsel %vm629, %v2643, 0
    %v2652 = vsel %vm629, %v2644, 0
    %2654 = vmatprep.subr.bf16.mxu0 0
    %2655 = vmatpush1.bf16.msra.mxu0 %v2489
    %2656 = vmatprep.subr.bf16.mxu0 0
    %2657 = vmatpush1.bf16.msra.mxu0 %v2490
    %2658 = vmatprep.subr.bf16.mxu0 0
    %2659 = vmatpush1.bf16.msra.mxu0 %v2491
    %2660 = vmatprep.subr.bf16.mxu0 0
    %2661 = vmatpush1.bf16.msra.mxu0 0
    %2662 = vmatprep.subr.bf16.mxu0 0
    %2663 = vmatpush1.bf16.msra.mxu0 0
    %2664 = vmatprep.subr.bf16.mxu0 0
    %2665 = vmatpush1.bf16.msra.mxu0 0
    %2666 = vmatprep.subr.bf16.mxu0 0
    %2667 = vmatpush1.bf16.msra.mxu0 0
    %2668 = vmatprep.subr.bf16.mxu0 0
    %2669 = vmatpush1.bf16.msra.mxu0 0
    %2670 = vmatprep.subr.bf16.mxu0 0
    %2671 = vmatpush1.bf16.msra.mxu0 0
    %2672 = vmatprep.subr.bf16.mxu0 0
    %2673 = vmatpush1.bf16.msra.mxu0 0
    %2674 = vmatprep.subr.bf16.mxu0 0
    %2675 = vmatpush1.bf16.msra.mxu0 0
    %2676 = vmatprep.subr.bf16.mxu0 0
    %2677 = vmatpush1.bf16.msra.mxu0 0
    %2678 = vmatprep.subr.bf16.mxu0 0
    %2679 = vmatpush1.bf16.msra.mxu0 0
    %2680 = vmatprep.subr.bf16.mxu0 0
    %2681 = vmatpush1.bf16.msra.mxu0 0
    %2682 = vmatprep.subr.bf16.mxu0 0
    %2683 = vmatpush1.bf16.msra.mxu0 0
    %2684 = vmatprep.subr.bf16.mxu0 0
    %2685 = vmatpush1.bf16.msra.mxu0 0
    %2686 = vmatprep.mubr.bf16.mxu0 0
    %2687 = vmatmul.mubr.bf16.gmra.mrb[0].mxu0 %v2646
    %v2688 = vpop.f32.mrb[0].mxu0
    %v2689 = vadd.f32 0.0, %v2688
    %v2690 = vpop.f32.mrb[0].mxu0
    %v2691 = vpop.f32.mrb[0].mxu0
    %v2692 = vadd.f32 0.0, %v2691
    %v2693 = vpop.f32.mrb[0].mxu0
    %2694 = vmatprep.mubr.bf16.mxu0 0
    %2695 = vmatmul.mubr.bf16.gmra.mrb[0].mxu0 %v2649
    %v2696 = vpop.f32.mrb[0].mxu0
    %v2697 = vadd.f32 0.0, %v2696
    %v2698 = vpop.f32.mrb[0].mxu0
    %v2699 = vpop.f32.mrb[0].mxu0
    %v2700 = vadd.f32 0.0, %v2699
    %v2701 = vpop.f32.mrb[0].mxu0
    %2702 = vmatprep.mubr.bf16.mxu0 0
    %2703 = vmatmul.mubr.bf16.gmra.mrb[0].mxu0 %v2652
    %v2704 = vpop.f32.mrb[0].mxu0
    %v2705 = vadd.f32 0.0, %v2704
    %v2706 = vpop.f32.mrb[0].mxu0
    %v2707 = vpop.f32.mrb[0].mxu0
    %v2708 = vadd.f32 0.0, %v2707
    %v2709 = vpop.f32.mrb[0].mxu0
    %2710 = vdwg.mxu0
    %2711 = vst.msk [vmem:[#allocation3] sm:$0xff] %vm553, %v2689
    %2712 = vst.msk [vmem:[#allocation3 + $0x8] sm:$0xff] %vm553, %v2692
    %2713 = vst.msk [vmem:[#allocation3 + $0x10] sm:$0xff] %vm553, %v2697
    %2714 = vst.msk [vmem:[#allocation3 + $0x18] sm:$0xff] %vm553, %v2700
    %2715 = vst.msk [vmem:[#allocation3 + $0x20] sm:$0xff] %vm553, %v2705
    %2716 = vst.msk [vmem:[#allocation3 + $0x28] sm:$0xff] %vm553, %v2708
    %2720 = vrot.lane.b32.xlu0 %v2483, 112
    %v2721 = vpop.permute.xlu0 %2720
    %2722 = vrot.lane.b32.xlu0 %v2484, 112
    %v2723 = vpop.permute.xlu0 %2722
    %2724 = vrot.lane.b32.xlu0 %v2485, 112
    %v2725 = vpop.permute.xlu0 %2724
    %2726 = vrot.lane.b32.xlu0 %v2486, 48
    %v2727 = vpop.permute.xlu0 %2726
    %2728 = vrot.lane.b32.xlu0 %v2487, 48
    %v2729 = vpop.permute.xlu0 %2728
    %2730 = vrot.lane.b32.xlu0 %v2488, 48
    %v2731 = vpop.permute.xlu0 %2730
    %v2733 = vsel %vm553, %v2721, 0
    %v2736 = vsel %vm553, %v2723, 0
    %v2739 = vsel %vm553, %v2725, 0
    %v2742 = vsel %vm553, %v2727, 0
    %v2745 = vsel %vm553, %v2729, 0
    %v2748 = vsel %vm553, %v2731, 0
    %2750 = vmatprep.subr.bf16.mxu0 0
    %2751 = vmatpush1.bf16.xpose.msra.mxu0 %v2742
    %2752 = vmatprep.subr.bf16.mxu0 0
    %2753 = vmatpush1.bf16.xpose.msra.mxu0 %v2745
    %2754 = vmatprep.subr.bf16.mxu0 0
    %2755 = vmatpush1.bf16.xpose.msra.mxu0 %v2748
    %2756 = vmatprep.subr.bf16.mxu0 0
    %2757 = vmatpush1.bf16.xpose.msra.mxu0 0
    %2758 = vmatprep.subr.bf16.mxu0 0
    %2759 = vmatpush1.bf16.xpose.msra.mxu0 0
    %2760 = vmatprep.subr.bf16.mxu0 0
    %2761 = vmatpush1.bf16.xpose.msra.mxu0 0
    %2762 = vmatprep.subr.bf16.mxu0 0
    %2763 = vmatpush1.bf16.xpose.msra.mxu0 0
    %2764 = vmatprep.subr.bf16.mxu0 0
    %2765 = vmatpush1.bf16.xpose.msra.mxu0 0
    %2766 = vmatprep.subr.bf16.mxu0 0
    %2767 = vmatpush1.bf16.xpose.msra.mxu0 0
    %2768 = vmatprep.subr.bf16.mxu0 0
    %2769 = vmatpush1.bf16.xpose.msra.mxu0 0
    %2770 = vmatprep.subr.bf16.mxu0 0
    %2771 = vmatpush1.bf16.xpose.msra.mxu0 0
    %2772 = vmatprep.subr.bf16.mxu0 0
    %2773 = vmatpush1.bf16.xpose.msra.mxu0 0
    %2774 = vmatprep.subr.bf16.mxu0 0
    %2775 = vmatpush1.bf16.xpose.msra.mxu0 0
    %2776 = vmatprep.subr.bf16.mxu0 0
    %2777 = vmatpush1.bf16.xpose.msra.mxu0 0
    %2778 = vmatprep.subr.bf16.mxu0 0
    %2779 = vmatpush1.bf16.xpose.msra.mxu0 0
    %2780 = vmatprep.subr.bf16.mxu0 0
    %2781 = vmatpush1.bf16.xpose.msra.mxu0 0
    %2782 = vmatprep.mubr.bf16.mxu0 0
    %2783 = vmatmul.mubr.bf16.gmra.mrb[0].mxu0 %v2733
    %v2784 = vpop.f32.mrb[0].mxu0
    %v2785 = vadd.f32 %v283, %v2784
    %v2786 = vpop.f32.mrb[0].mxu0
    %v2787 = vpop.f32.mrb[0].mxu0
    %v2788 = vadd.f32 %v284, %v2787
    %v2789 = vpop.f32.mrb[0].mxu0
    %2790 = vmatprep.mubr.bf16.mxu0 0
    %2791 = vmatmul.mubr.bf16.gmra.mrb[0].mxu0 %v2736
    %v2792 = vpop.f32.mrb[0].mxu0
    %v2793 = vadd.f32 %v285, %v2792
    %v2794 = vpop.f32.mrb[0].mxu0
    %v2795 = vpop.f32.mrb[0].mxu0
    %v2796 = vadd.f32 %v286, %v2795
    %v2797 = vpop.f32.mrb[0].mxu0
    %2798 = vmatprep.mubr.bf16.mxu0 0
    %2799 = vmatmul.mubr.bf16.gmra.mrb[0].mxu0 %v2739
    %v2800 = vpop.f32.mrb[0].mxu0
    %v2801 = vadd.f32 %v287, %v2800
    %v2802 = vpop.f32.mrb[0].mxu0
    %v2803 = vpop.f32.mrb[0].mxu0
    %v2804 = vadd.f32 %v288, %v2803
    %v2805 = vpop.f32.mrb[0].mxu0
    %2806 = vdwg.mxu0
    %v2807 = vsel %vm629, %v2785, -inf
    %2808 = vmax.xlane.f32.xlu0 %v2807
    %v2809 = vpop.xlane.xlu0 %2808
    %v2810 = vsel %vm629, %v2788, -inf
    %2811 = vmax.xlane.f32.xlu0 %v2810
    %v2812 = vpop.xlane.xlu0 %2811
    %v2813 = vsel %vm629, %v2793, -inf
    %2814 = vmax.xlane.f32.xlu0 %v2813
    %v2815 = vpop.xlane.xlu0 %2814
    %v2816 = vsel %vm629, %v2796, -inf
    %2817 = vmax.xlane.f32.xlu0 %v2816
    %v2818 = vpop.xlane.xlu0 %2817
    %v2819 = vsel %vm629, %v2801, -inf
    %2820 = vmax.xlane.f32.xlu0 %v2819
    %v2821 = vpop.xlane.xlu0 %2820
    %v2822 = vsel %vm629, %v2804, -inf
    %2823 = vmax.xlane.f32.xlu0 %v2822
    %v2824 = vpop.xlane.xlu0 %2823
    %v2825 = vsub.f32 %v2785, %v2809
    %v2826 = vsub.f32 %v2788, %v2812
    %v2827 = vsub.f32 %v2793, %v2815
    %v2828 = vsub.f32 %v2796, %v2818
    %v2829 = vsub.f32 %v2801, %v2821
    %v2830 = vsub.f32 %v2804, %v2824
    %v2831 = vmul.f32 %v2825, 1.442695
    %v2832 = vpow.pop %v2831
    %v2833 = vmul.f32 %v2826, 1.442695
    %v2834 = vpow.pop %v2833
    %v2835 = vmul.f32 %v2827, 1.442695
    %v2836 = vpow.pop %v2835
    %v2837 = vmul.f32 %v2828, 1.442695
    %v2838 = vpow.pop %v2837
    %v2839 = vmul.f32 %v2829, 1.442695
    %v2840 = vpow.pop %v2839
    %v2841 = vmul.f32 %v2830, 1.442695
    %v2842 = vpow.pop %v2841
    %v2843 = vsel %vm629, %v2832, 0.0
    %2844 = vadd.xlane.f32.xlu0 %v2843
    %v2845 = vpop.xlane.xlu0 %2844
    %v2846 = vsel %vm629, %v2834, 0.0
    %2847 = vadd.xlane.f32.xlu0 %v2846
    %v2848 = vpop.xlane.xlu0 %2847
    %v2849 = vsel %vm629, %v2836, 0.0
    %2850 = vadd.xlane.f32.xlu0 %v2849
    %v2851 = vpop.xlane.xlu0 %2850
    %v2852 = vsel %vm629, %v2838, 0.0
    %2853 = vadd.xlane.f32.xlu0 %v2852
    %v2854 = vpop.xlane.xlu0 %2853
    %v2855 = vsel %vm629, %v2840, 0.0
    %2856 = vadd.xlane.f32.xlu0 %v2855
    %v2857 = vpop.xlane.xlu0 %2856
    %v2858 = vsel %vm629, %v2842, 0.0
    %2859 = vadd.xlane.f32.xlu0 %v2858
    %v2860 = vpop.xlane.xlu0 %2859
    %v2861 = vrcp.pop %v2845
    %v2862 = vrcp.pop %v2848
    %v2863 = vrcp.pop %v2851
    %v2864 = vrcp.pop %v2854
    %v2865 = vrcp.pop %v2857
    %v2866 = vrcp.pop %v2860
    %v2867 = vmul.f32 %v2832, %v2861
    %v2868 = vmul.f32 %v2834, %v2862
    %v2869 = vmul.f32 %v2836, %v2863
    %v2870 = vmul.f32 %v2838, %v2864
    %v2871 = vmul.f32 %v2840, %v2865
    %v2872 = vmul.f32 %v2842, %v2866
    %v2873 = vpack.c.bf16 %v2868, %v2867
    %v2874 = vpack.c.bf16 %v2870, %v2869
    %v2875 = vpack.c.bf16 %v2872, %v2871
    %2879 = vrot.lane.b32.xlu0 %v2489, 112
    %v2880 = vpop.permute.xlu0 %2879
    %2881 = vrot.lane.b32.xlu0 %v2490, 112
    %v2882 = vpop.permute.xlu0 %2881
    %2883 = vrot.lane.b32.xlu0 %v2491, 112
    %v2884 = vpop.permute.xlu0 %2883
    %v2889 = vsel %vm629, %v2873, 0
    %v2892 = vsel %vm629, %v2874, 0
    %v2895 = vsel %vm629, %v2875, 0
    %2897 = vmatprep.subr.bf16.mxu0 0
    %2898 = vmatpush1.bf16.msra.mxu0 %v2880
    %2899 = vmatprep.subr.bf16.mxu0 0
    %2900 = vmatpush1.bf16.msra.mxu0 %v2882
    %2901 = vmatprep.subr.bf16.mxu0 0
    %2902 = vmatpush1.bf16.msra.mxu0 %v2884
    %2903 = vmatprep.subr.bf16.mxu0 0
    %2904 = vmatpush1.bf16.msra.mxu0 0
    %2905 = vmatprep.subr.bf16.mxu0 0
    %2906 = vmatpush1.bf16.msra.mxu0 0
    %2907 = vmatprep.subr.bf16.mxu0 0
    %2908 = vmatpush1.bf16.msra.mxu0 0
    %2909 = vmatprep.subr.bf16.mxu0 0
    %2910 = vmatpush1.bf16.msra.mxu0 0
    %2911 = vmatprep.subr.bf16.mxu0 0
    %2912 = vmatpush1.bf16.msra.mxu0 0
    %2913 = vmatprep.subr.bf16.mxu0 0
    %2914 = vmatpush1.bf16.msra.mxu0 0
    %2915 = vmatprep.subr.bf16.mxu0 0
    %2916 = vmatpush1.bf16.msra.mxu0 0
    %2917 = vmatprep.subr.bf16.mxu0 0
    %2918 = vmatpush1.bf16.msra.mxu0 0
    %2919 = vmatprep.subr.bf16.mxu0 0
    %2920 = vmatpush1.bf16.msra.mxu0 0
    %2921 = vmatprep.subr.bf16.mxu0 0
    %2922 = vmatpush1.bf16.msra.mxu0 0
    %2923 = vmatprep.subr.bf16.mxu0 0
    %2924 = vmatpush1.bf16.msra.mxu0 0
    %2925 = vmatprep.subr.bf16.mxu0 0
    %2926 = vmatpush1.bf16.msra.mxu0 0
    %2927 = vmatprep.subr.bf16.mxu0 0
    %2928 = vmatpush1.bf16.msra.mxu0 0
    %2929 = vmatprep.mubr.bf16.mxu0 0
    %2930 = vmatmul.mubr.bf16.gmra.mrb[0].mxu0 %v2889
    %v2931 = vpop.f32.mrb[0].mxu0
    %v2932 = vadd.f32 0.0, %v2931
    %v2933 = vpop.f32.mrb[0].mxu0
    %v2934 = vpop.f32.mrb[0].mxu0
    %v2935 = vadd.f32 0.0, %v2934
    %v2936 = vpop.f32.mrb[0].mxu0
    %2937 = vmatprep.mubr.bf16.mxu0 0
    %2938 = vmatmul.mubr.bf16.gmra.mrb[0].mxu0 %v2892
    %v2939 = vpop.f32.mrb[0].mxu0
    %v2940 = vadd.f32 0.0, %v2939
    %v2941 = vpop.f32.mrb[0].mxu0
    %v2942 = vpop.f32.mrb[0].mxu0
    %v2943 = vadd.f32 0.0, %v2942
    %v2944 = vpop.f32.mrb[0].mxu0
    %2945 = vmatprep.mubr.bf16.mxu0 0
    %2946 = vmatmul.mubr.bf16.gmra.mrb[0].mxu0 %v2895
    %v2947 = vpop.f32.mrb[0].mxu0
    %v2948 = vadd.f32 0.0, %v2947
    %v2949 = vpop.f32.mrb[0].mxu0
    %v2950 = vpop.f32.mrb[0].mxu0
    %v2951 = vadd.f32 0.0, %v2950
    %v2952 = vpop.f32.mrb[0].mxu0
    %2953 = vdwg.mxu0
    %2960 = vrot.lane.b32.xlu0 %v2932, 16
    %v2961 = vpop.permute.xlu0 %2960
    %2962 = vrot.lane.b32.xlu0 %v2935, 16
    %v2963 = vpop.permute.xlu0 %2962
    %2964 = vrot.lane.b32.xlu0 %v2940, 16
    %v2965 = vpop.permute.xlu0 %2964
    %2966 = vrot.lane.b32.xlu0 %v2943, 16
    %v2967 = vpop.permute.xlu0 %2966
    %2968 = vrot.lane.b32.xlu0 %v2948, 16
    %v2969 = vpop.permute.xlu0 %2968
    %2970 = vrot.lane.b32.xlu0 %v2951, 16
    %v2971 = vpop.permute.xlu0 %2970
    %2978 = vst.msk [vmem:[#allocation3] sm:$0xff] %vm1032, %v2961
    %2979 = vst.msk [vmem:[#allocation3 + $0x8] sm:$0xff] %vm1032, %v2963
    %2980 = vst.msk [vmem:[#allocation3 + $0x10] sm:$0xff] %vm1032, %v2965
    %2981 = vst.msk [vmem:[#allocation3 + $0x18] sm:$0xff] %vm1032, %v2967
    %2982 = vst.msk [vmem:[#allocation3 + $0x20] sm:$0xff] %vm1032, %v2969
    %2983 = vst.msk [vmem:[#allocation3 + $0x28] sm:$0xff] %vm1032, %v2971
    %2984 = vrot.lane.b32.xlu0 %v2483, 96
    %v2985 = vpop.permute.xlu0 %2984
    %2986 = vrot.lane.b32.xlu0 %v2484, 96
    %v2987 = vpop.permute.xlu0 %2986
    %2988 = vrot.lane.b32.xlu0 %v2485, 96
    %v2989 = vpop.permute.xlu0 %2988
    %2990 = vrot.lane.b32.xlu0 %v2486, 32
    %v2991 = vpop.permute.xlu0 %2990
    %2992 = vrot.lane.b32.xlu0 %v2487, 32
    %v2993 = vpop.permute.xlu0 %2992
    %2994 = vrot.lane.b32.xlu0 %v2488, 32
    %v2995 = vpop.permute.xlu0 %2994
    %v2997 = vsel %vm553, %v2985, 0
    %v3000 = vsel %vm553, %v2987, 0
    %v3003 = vsel %vm553, %v2989, 0
    %v3006 = vsel %vm553, %v2991, 0
    %v3009 = vsel %vm553, %v2993, 0
    %v3012 = vsel %vm553, %v2995, 0
    %3014 = vmatprep.subr.bf16.mxu0 0
    %3015 = vmatpush1.bf16.xpose.msra.mxu0 %v3006
    %3016 = vmatprep.subr.bf16.mxu0 0
    %3017 = vmatpush1.bf16.xpose.msra.mxu0 %v3009
    %3018 = vmatprep.subr.bf16.mxu0 0
    %3019 = vmatpush1.bf16.xpose.msra.mxu0 %v3012
    %3020 = vmatprep.subr.bf16.mxu0 0
    %3021 = vmatpush1.bf16.xpose.msra.mxu0 0
    %3022 = vmatprep.subr.bf16.mxu0 0
    %3023 = vmatpush1.bf16.xpose.msra.mxu0 0
    %3024 = vmatprep.subr.bf16.mxu0 0
    %3025 = vmatpush1.bf16.xpose.msra.mxu0 0
    %3026 = vmatprep.subr.bf16.mxu0 0
    %3027 = vmatpush1.bf16.xpose.msra.mxu0 0
    %3028 = vmatprep.subr.bf16.mxu0 0
    %3029 = vmatpush1.bf16.xpose.msra.mxu0 0
    %3030 = vmatprep.subr.bf16.mxu0 0
    %3031 = vmatpush1.bf16.xpose.msra.mxu0 0
    %3032 = vmatprep.subr.bf16.mxu0 0
    %3033 = vmatpush1.bf16.xpose.msra.mxu0 0
    %3034 = vmatprep.subr.bf16.mxu0 0
    %3035 = vmatpush1.bf16.xpose.msra.mxu0 0
    %3036 = vmatprep.subr.bf16.mxu0 0
    %3037 = vmatpush1.bf16.xpose.msra.mxu0 0
    %3038 = vmatprep.subr.bf16.mxu0 0
    %3039 = vmatpush1.bf16.xpose.msra.mxu0 0
    %3040 = vmatprep.subr.bf16.mxu0 0
    %3041 = vmatpush1.bf16.xpose.msra.mxu0 0
    %3042 = vmatprep.subr.bf16.mxu0 0
    %3043 = vmatpush1.bf16.xpose.msra.mxu0 0
    %3044 = vmatprep.subr.bf16.mxu0 0
    %3045 = vmatpush1.bf16.xpose.msra.mxu0 0
    %3046 = vmatprep.mubr.bf16.mxu0 0
    %3047 = vmatmul.mubr.bf16.gmra.mrb[0].mxu0 %v2997
    %v3048 = vpop.f32.mrb[0].mxu0
    %v3049 = vadd.f32 %v283, %v3048
    %v3050 = vpop.f32.mrb[0].mxu0
    %v3051 = vpop.f32.mrb[0].mxu0
    %v3052 = vadd.f32 %v284, %v3051
    %v3053 = vpop.f32.mrb[0].mxu0
    %3054 = vmatprep.mubr.bf16.mxu0 0
    %3055 = vmatmul.mubr.bf16.gmra.mrb[0].mxu0 %v3000
    %v3056 = vpop.f32.mrb[0].mxu0
    %v3057 = vadd.f32 %v285, %v3056
    %v3058 = vpop.f32.mrb[0].mxu0
    %v3059 = vpop.f32.mrb[0].mxu0
    %v3060 = vadd.f32 %v286, %v3059
    %v3061 = vpop.f32.mrb[0].mxu0
    %3062 = vmatprep.mubr.bf16.mxu0 0
    %3063 = vmatmul.mubr.bf16.gmra.mrb[0].mxu0 %v3003
    %v3064 = vpop.f32.mrb[0].mxu0
    %v3065 = vadd.f32 %v287, %v3064
    %v3066 = vpop.f32.mrb[0].mxu0
    %v3067 = vpop.f32.mrb[0].mxu0
    %v3068 = vadd.f32 %v288, %v3067
    %v3069 = vpop.f32.mrb[0].mxu0
    %3070 = vdwg.mxu0
    %v3071 = vsel %vm629, %v3049, -inf
    %3072 = vmax.xlane.f32.xlu0 %v3071
    %v3073 = vpop.xlane.xlu0 %3072
    %v3074 = vsel %vm629, %v3052, -inf
    %3075 = vmax.xlane.f32.xlu0 %v3074
    %v3076 = vpop.xlane.xlu0 %3075
    %v3077 = vsel %vm629, %v3057, -inf
    %3078 = vmax.xlane.f32.xlu0 %v3077
    %v3079 = vpop.xlane.xlu0 %3078
    %v3080 = vsel %vm629, %v3060, -inf
    %3081 = vmax.xlane.f32.xlu0 %v3080
    %v3082 = vpop.xlane.xlu0 %3081
    %v3083 = vsel %vm629, %v3065, -inf
    %3084 = vmax.xlane.f32.xlu0 %v3083
    %v3085 = vpop.xlane.xlu0 %3084
    %v3086 = vsel %vm629, %v3068, -inf
    %3087 = vmax.xlane.f32.xlu0 %v3086
    %v3088 = vpop.xlane.xlu0 %3087
    %v3089 = vsub.f32 %v3049, %v3073
    %v3090 = vsub.f32 %v3052, %v3076
    %v3091 = vsub.f32 %v3057, %v3079
    %v3092 = vsub.f32 %v3060, %v3082
    %v3093 = vsub.f32 %v3065, %v3085
    %v3094 = vsub.f32 %v3068, %v3088
    %v3095 = vmul.f32 %v3089, 1.442695
    %v3096 = vpow.pop %v3095
    %v3097 = vmul.f32 %v3090, 1.442695
    %v3098 = vpow.pop %v3097
    %v3099 = vmul.f32 %v3091, 1.442695
    %v3100 = vpow.pop %v3099
    %v3101 = vmul.f32 %v3092, 1.442695
    %v3102 = vpow.pop %v3101
    %v3103 = vmul.f32 %v3093, 1.442695
    %v3104 = vpow.pop %v3103
    %v3105 = vmul.f32 %v3094, 1.442695
    %v3106 = vpow.pop %v3105
    %v3107 = vsel %vm629, %v3096, 0.0
    %3108 = vadd.xlane.f32.xlu0 %v3107
    %v3109 = vpop.xlane.xlu0 %3108
    %v3110 = vsel %vm629, %v3098, 0.0
    %3111 = vadd.xlane.f32.xlu0 %v3110
    %v3112 = vpop.xlane.xlu0 %3111
    %v3113 = vsel %vm629, %v3100, 0.0
    %3114 = vadd.xlane.f32.xlu0 %v3113
    %v3115 = vpop.xlane.xlu0 %3114
    %v3116 = vsel %vm629, %v3102, 0.0
    %3117 = vadd.xlane.f32.xlu0 %v3116
    %v3118 = vpop.xlane.xlu0 %3117
    %v3119 = vsel %vm629, %v3104, 0.0
    %3120 = vadd.xlane.f32.xlu0 %v3119
    %v3121 = vpop.xlane.xlu0 %3120
    %v3122 = vsel %vm629, %v3106, 0.0
    %3123 = vadd.xlane.f32.xlu0 %v3122
    %v3124 = vpop.xlane.xlu0 %3123
    %v3125 = vrcp.pop %v3109
    %v3126 = vrcp.pop %v3112
    %v3127 = vrcp.pop %v3115
    %v3128 = vrcp.pop %v3118
    %v3129 = vrcp.pop %v3121
    %v3130 = vrcp.pop %v3124
    %v3131 = vmul.f32 %v3096, %v3125
    %v3132 = vmul.f32 %v3098, %v3126
    %v3133 = vmul.f32 %v3100, %v3127
    %v3134 = vmul.f32 %v3102, %v3128
    %v3135 = vmul.f32 %v3104, %v3129
    %v3136 = vmul.f32 %v3106, %v3130
    %v3137 = vpack.c.bf16 %v3132, %v3131
    %v3138 = vpack.c.bf16 %v3134, %v3133
    %v3139 = vpack.c.bf16 %v3136, %v3135
    %3140 = vrot.lane.b32.xlu0 %v2489, 96
    %v3141 = vpop.permute.xlu0 %3140
    %3142 = vrot.lane.b32.xlu0 %v2490, 96
    %v3143 = vpop.permute.xlu0 %3142
    %3144 = vrot.lane.b32.xlu0 %v2491, 96
    %v3145 = vpop.permute.xlu0 %3144
    %v3150 = vsel %vm629, %v3137, 0
    %v3153 = vsel %vm629, %v3138, 0
    %v3156 = vsel %vm629, %v3139, 0
    %3158 = vmatprep.subr.bf16.mxu0 0
    %3159 = vmatpush1.bf16.msra.mxu0 %v3141
    %3160 = vmatprep.subr.bf16.mxu0 0
    %3161 = vmatpush1.bf16.msra.mxu0 %v3143
    %3162 = vmatprep.subr.bf16.mxu0 0
    %3163 = vmatpush1.bf16.msra.mxu0 %v3145
    %3164 = vmatprep.subr.bf16.mxu0 0
    %3165 = vmatpush1.bf16.msra.mxu0 0
    %3166 = vmatprep.subr.bf16.mxu0 0
    %3167 = vmatpush1.bf16.msra.mxu0 0
    %3168 = vmatprep.subr.bf16.mxu0 0
    %3169 = vmatpush1.bf16.msra.mxu0 0
    %3170 = vmatprep.subr.bf16.mxu0 0
    %3171 = vmatpush1.bf16.msra.mxu0 0
    %3172 = vmatprep.subr.bf16.mxu0 0
    %3173 = vmatpush1.bf16.msra.mxu0 0
    %3174 = vmatprep.subr.bf16.mxu0 0
    %3175 = vmatpush1.bf16.msra.mxu0 0
    %3176 = vmatprep.subr.bf16.mxu0 0
    %3177 = vmatpush1.bf16.msra.mxu0 0
    %3178 = vmatprep.subr.bf16.mxu0 0
    %3179 = vmatpush1.bf16.msra.mxu0 0
    %3180 = vmatprep.subr.bf16.mxu0 0
    %3181 = vmatpush1.bf16.msra.mxu0 0
    %3182 = vmatprep.subr.bf16.mxu0 0
    %3183 = vmatpush1.bf16.msra.mxu0 0
    %3184 = vmatprep.subr.bf16.mxu0 0
    %3185 = vmatpush1.bf16.msra.mxu0 0
    %3186 = vmatprep.subr.bf16.mxu0 0
    %3187 = vmatpush1.bf16.msra.mxu0 0
    %3188 = vmatprep.subr.bf16.mxu0 0
    %3189 = vmatpush1.bf16.msra.mxu0 0
    %3190 = vmatprep.mubr.bf16.mxu0 0
    %3191 = vmatmul.mubr.bf16.gmra.mrb[0].mxu0 %v3150
    %v3192 = vpop.f32.mrb[0].mxu0
    %v3193 = vadd.f32 0.0, %v3192
    %v3194 = vpop.f32.mrb[0].mxu0
    %v3195 = vpop.f32.mrb[0].mxu0
    %v3196 = vadd.f32 0.0, %v3195
    %v3197 = vpop.f32.mrb[0].mxu0
    %3198 = vmatprep.mubr.bf16.mxu0 0
    %3199 = vmatmul.mubr.bf16.gmra.mrb[0].mxu0 %v3153
    %v3200 = vpop.f32.mrb[0].mxu0
    %v3201 = vadd.f32 0.0, %v3200
    %v3202 = vpop.f32.mrb[0].mxu0
    %v3203 = vpop.f32.mrb[0].mxu0
    %v3204 = vadd.f32 0.0, %v3203
    %v3205 = vpop.f32.mrb[0].mxu0
    %3206 = vmatprep.mubr.bf16.mxu0 0
    %3207 = vmatmul.mubr.bf16.gmra.mrb[0].mxu0 %v3156
    %v3208 = vpop.f32.mrb[0].mxu0
    %v3209 = vadd.f32 0.0, %v3208
    %v3210 = vpop.f32.mrb[0].mxu0
    %v3211 = vpop.f32.mrb[0].mxu0
    %v3212 = vadd.f32 0.0, %v3211
    %v3213 = vpop.f32.mrb[0].mxu0
    %3214 = vdwg.mxu0
    %3221 = vrot.lane.b32.xlu0 %v3193, 32
    %v3222 = vpop.permute.xlu0 %3221
    %3223 = vrot.lane.b32.xlu0 %v3196, 32
    %v3224 = vpop.permute.xlu0 %3223
    %3225 = vrot.lane.b32.xlu0 %v3201, 32
    %v3226 = vpop.permute.xlu0 %3225
    %3227 = vrot.lane.b32.xlu0 %v3204, 32
    %v3228 = vpop.permute.xlu0 %3227
    %3229 = vrot.lane.b32.xlu0 %v3209, 32
    %v3230 = vpop.permute.xlu0 %3229
    %3231 = vrot.lane.b32.xlu0 %v3212, 32
    %v3232 = vpop.permute.xlu0 %3231
    %3239 = vst.msk [vmem:[#allocation3] sm:$0xff] %vm1294, %v3222
    %3240 = vst.msk [vmem:[#allocation3 + $0x8] sm:$0xff] %vm1294, %v3224
    %3241 = vst.msk [vmem:[#allocation3 + $0x10] sm:$0xff] %vm1294, %v3226
    %3242 = vst.msk [vmem:[#allocation3 + $0x18] sm:$0xff] %vm1294, %v3228
    %3243 = vst.msk [vmem:[#allocation3 + $0x20] sm:$0xff] %vm1294, %v3230
    %3244 = vst.msk [vmem:[#allocation3 + $0x28] sm:$0xff] %vm1294, %v3232
    %3245 = vrot.lane.b32.xlu0 %v2483, 80
    %v3246 = vpop.permute.xlu0 %3245
    %3247 = vrot.lane.b32.xlu0 %v2484, 80
    %v3248 = vpop.permute.xlu0 %3247
    %3249 = vrot.lane.b32.xlu0 %v2485, 80
    %v3250 = vpop.permute.xlu0 %3249
    %3251 = vrot.lane.b32.xlu0 %v2486, 16
    %v3252 = vpop.permute.xlu0 %3251
    %3253 = vrot.lane.b32.xlu0 %v2487, 16
    %v3254 = vpop.permute.xlu0 %3253
    %3255 = vrot.lane.b32.xlu0 %v2488, 16
    %v3256 = vpop.permute.xlu0 %3255
    %v3258 = vsel %vm553, %v3246, 0
    %v3261 = vsel %vm553, %v3248, 0
    %v3264 = vsel %vm553, %v3250, 0
    %v3267 = vsel %vm553, %v3252, 0
    %v3270 = vsel %vm553, %v3254, 0
    %v3273 = vsel %vm553, %v3256, 0
    %3275 = vmatprep.subr.bf16.mxu0 0
    %3276 = vmatpush1.bf16.xpose.msra.mxu0 %v3267
    %3277 = vmatprep.subr.bf16.mxu0 0
    %3278 = vmatpush1.bf16.xpose.msra.mxu0 %v3270
    %3279 = vmatprep.subr.bf16.mxu0 0
    %3280 = vmatpush1.bf16.xpose.msra.mxu0 %v3273
    %3281 = vmatprep.subr.bf16.mxu0 0
    %3282 = vmatpush1.bf16.xpose.msra.mxu0 0
    %3283 = vmatprep.subr.bf16.mxu0 0
    %3284 = vmatpush1.bf16.xpose.msra.mxu0 0
    %3285 = vmatprep.subr.bf16.mxu0 0
    %3286 = vmatpush1.bf16.xpose.msra.mxu0 0
    %3287 = vmatprep.subr.bf16.mxu0 0
    %3288 = vmatpush1.bf16.xpose.msra.mxu0 0
    %3289 = vmatprep.subr.bf16.mxu0 0
    %3290 = vmatpush1.bf16.xpose.msra.mxu0 0
    %3291 = vmatprep.subr.bf16.mxu0 0
    %3292 = vmatpush1.bf16.xpose.msra.mxu0 0
    %3293 = vmatprep.subr.bf16.mxu0 0
    %3294 = vmatpush1.bf16.xpose.msra.mxu0 0
    %3295 = vmatprep.subr.bf16.mxu0 0
    %3296 = vmatpush1.bf16.xpose.msra.mxu0 0
    %3297 = vmatprep.subr.bf16.mxu0 0
    %3298 = vmatpush1.bf16.xpose.msra.mxu0 0
    %3299 = vmatprep.subr.bf16.mxu0 0
    %3300 = vmatpush1.bf16.xpose.msra.mxu0 0
    %3301 = vmatprep.subr.bf16.mxu0 0
    %3302 = vmatpush1.bf16.xpose.msra.mxu0 0
    %3303 = vmatprep.subr.bf16.mxu0 0
    %3304 = vmatpush1.bf16.xpose.msra.mxu0 0
    %3305 = vmatprep.subr.bf16.mxu0 0
    %3306 = vmatpush1.bf16.xpose.msra.mxu0 0
    %3307 = vmatprep.mubr.bf16.mxu0 0
    %3308 = vmatmul.mubr.bf16.gmra.mrb[0].mxu0 %v3258
    %v3309 = vpop.f32.mrb[0].mxu0
    %v3310 = vadd.f32 %v283, %v3309
    %v3311 = vpop.f32.mrb[0].mxu0
    %v3312 = vpop.f32.mrb[0].mxu0
    %v3313 = vadd.f32 %v284, %v3312
    %v3314 = vpop.f32.mrb[0].mxu0
    %3315 = vmatprep.mubr.bf16.mxu0 0
    %3316 = vmatmul.mubr.bf16.gmra.mrb[0].mxu0 %v3261
    %v3317 = vpop.f32.mrb[0].mxu0
    %v3318 = vadd.f32 %v285, %v3317
    %v3319 = vpop.f32.mrb[0].mxu0
    %v3320 = vpop.f32.mrb[0].mxu0
    %v3321 = vadd.f32 %v286, %v3320
    %v3322 = vpop.f32.mrb[0].mxu0
    %3323 = vmatprep.mubr.bf16.mxu0 0
    %3324 = vmatmul.mubr.bf16.gmra.mrb[0].mxu0 %v3264
    %v3325 = vpop.f32.mrb[0].mxu0
    %v3326 = vadd.f32 %v287, %v3325
    %v3327 = vpop.f32.mrb[0].mxu0
    %v3328 = vpop.f32.mrb[0].mxu0
    %v3329 = vadd.f32 %v288, %v3328
    %v3330 = vpop.f32.mrb[0].mxu0
    %3331 = vdwg.mxu0
    %v3332 = vsel %vm629, %v3310, -inf
    %3333 = vmax.xlane.f32.xlu0 %v3332
    %v3334 = vpop.xlane.xlu0 %3333
    %v3335 = vsel %vm629, %v3313, -inf
    %3336 = vmax.xlane.f32.xlu0 %v3335
    %v3337 = vpop.xlane.xlu0 %3336
    %v3338 = vsel %vm629, %v3318, -inf
    %3339 = vmax.xlane.f32.xlu0 %v3338
    %v3340 = vpop.xlane.xlu0 %3339
    %v3341 = vsel %vm629, %v3321, -inf
    %3342 = vmax.xlane.f32.xlu0 %v3341
    %v3343 = vpop.xlane.xlu0 %3342
    %v3344 = vsel %vm629, %v3326, -inf
    %3345 = vmax.xlane.f32.xlu0 %v3344
    %v3346 = vpop.xlane.xlu0 %3345
    %v3347 = vsel %vm629, %v3329, -inf
    %3348 = vmax.xlane.f32.xlu0 %v3347
    %v3349 = vpop.xlane.xlu0 %3348
    %v3350 = vsub.f32 %v3310, %v3334
    %v3351 = vsub.f32 %v3313, %v3337
    %v3352 = vsub.f32 %v3318, %v3340
    %v3353 = vsub.f32 %v3321, %v3343
    %v3354 = vsub.f32 %v3326, %v3346
    %v3355 = vsub.f32 %v3329, %v3349
    %v3356 = vmul.f32 %v3350, 1.442695
    %v3357 = vpow.pop %v3356
    %v3358 = vmul.f32 %v3351, 1.442695
    %v3359 = vpow.pop %v3358
    %v3360 = vmul.f32 %v3352, 1.442695
    %v3361 = vpow.pop %v3360
    %v3362 = vmul.f32 %v3353, 1.442695
    %v3363 = vpow.pop %v3362
    %v3364 = vmul.f32 %v3354, 1.442695
    %v3365 = vpow.pop %v3364
    %v3366 = vmul.f32 %v3355, 1.442695
    %v3367 = vpow.pop %v3366
    %v3368 = vsel %vm629, %v3357, 0.0
    %3369 = vadd.xlane.f32.xlu0 %v3368
    %v3370 = vpop.xlane.xlu0 %3369
    %v3371 = vsel %vm629, %v3359, 0.0
    %3372 = vadd.xlane.f32.xlu0 %v3371
    %v3373 = vpop.xlane.xlu0 %3372
    %v3374 = vsel %vm629, %v3361, 0.0
    %3375 = vadd.xlane.f32.xlu0 %v3374
    %v3376 = vpop.xlane.xlu0 %3375
    %v3377 = vsel %vm629, %v3363, 0.0
    %3378 = vadd.xlane.f32.xlu0 %v3377
    %v3379 = vpop.xlane.xlu0 %3378
    %v3380 = vsel %vm629, %v3365, 0.0
    %3381 = vadd.xlane.f32.xlu0 %v3380
    %v3382 = vpop.xlane.xlu0 %3381
    %v3383 = vsel %vm629, %v3367, 0.0
    %3384 = vadd.xlane.f32.xlu0 %v3383
    %v3385 = vpop.xlane.xlu0 %3384
    %v3386 = vrcp.pop %v3370
    %v3387 = vrcp.pop %v3373
    %v3388 = vrcp.pop %v3376
    %v3389 = vrcp.pop %v3379
    %v3390 = vrcp.pop %v3382
    %v3391 = vrcp.pop %v3385
    %v3392 = vmul.f32 %v3357, %v3386
    %v3393 = vmul.f32 %v3359, %v3387
    %v3394 = vmul.f32 %v3361, %v3388
    %v3395 = vmul.f32 %v3363, %v3389
    %v3396 = vmul.f32 %v3365, %v3390
    %v3397 = vmul.f32 %v3367, %v3391
    %v3398 = vpack.c.bf16 %v3393, %v3392
    %v3399 = vpack.c.bf16 %v3395, %v3394
    %v3400 = vpack.c.bf16 %v3397, %v3396
    %3401 = vrot.lane.b32.xlu0 %v2489, 80
    %v3402 = vpop.permute.xlu0 %3401
    %3403 = vrot.lane.b32.xlu0 %v2490, 80
    %v3404 = vpop.permute.xlu0 %3403
    %3405 = vrot.lane.b32.xlu0 %v2491, 80
    %v3406 = vpop.permute.xlu0 %3405
    %v3411 = vsel %vm629, %v3398, 0
    %v3414 = vsel %vm629, %v3399, 0
    %v3417 = vsel %vm629, %v3400, 0
    %3419 = vmatprep.subr.bf16.mxu0 0
    %3420 = vmatpush1.bf16.msra.mxu0 %v3402
    %3421 = vmatprep.subr.bf16.mxu0 0
    %3422 = vmatpush1.bf16.msra.mxu0 %v3404
    %3423 = vmatprep.subr.bf16.mxu0 0
    %3424 = vmatpush1.bf16.msra.mxu0 %v3406
    %3425 = vmatprep.subr.bf16.mxu0 0
    %3426 = vmatpush1.bf16.msra.mxu0 0
    %3427 = vmatprep.subr.bf16.mxu0 0
    %3428 = vmatpush1.bf16.msra.mxu0 0
    %3429 = vmatprep.subr.bf16.mxu0 0
    %3430 = vmatpush1.bf16.msra.mxu0 0
    %3431 = vmatprep.subr.bf16.mxu0 0
    %3432 = vmatpush1.bf16.msra.mxu0 0
    %3433 = vmatprep.subr.bf16.mxu0 0
    %3434 = vmatpush1.bf16.msra.mxu0 0
    %3435 = vmatprep.subr.bf16.mxu0 0
    %3436 = vmatpush1.bf16.msra.mxu0 0
    %3437 = vmatprep.subr.bf16.mxu0 0
    %3438 = vmatpush1.bf16.msra.mxu0 0
    %3439 = vmatprep.subr.bf16.mxu0 0
    %3440 = vmatpush1.bf16.msra.mxu0 0
    %3441 = vmatprep.subr.bf16.mxu0 0
    %3442 = vmatpush1.bf16.msra.mxu0 0
    %3443 = vmatprep.subr.bf16.mxu0 0
    %3444 = vmatpush1.bf16.msra.mxu0 0
    %3445 = vmatprep.subr.bf16.mxu0 0
    %3446 = vmatpush1.bf16.msra.mxu0 0
    %3447 = vmatprep.subr.bf16.mxu0 0
    %3448 = vmatpush1.bf16.msra.mxu0 0
    %3449 = vmatprep.subr.bf16.mxu0 0
    %3450 = vmatpush1.bf16.msra.mxu0 0
    %3451 = vmatprep.mubr.bf16.mxu0 0
    %3452 = vmatmul.mubr.bf16.gmra.mrb[0].mxu0 %v3411
    %v3453 = vpop.f32.mrb[0].mxu0
    %v3454 = vadd.f32 0.0, %v3453
    %v3455 = vpop.f32.mrb[0].mxu0
    %v3456 = vpop.f32.mrb[0].mxu0
    %v3457 = vadd.f32 0.0, %v3456
    %v3458 = vpop.f32.mrb[0].mxu0
    %3459 = vmatprep.mubr.bf16.mxu0 0
    %3460 = vmatmul.mubr.bf16.gmra.mrb[0].mxu0 %v3414
    %v3461 = vpop.f32.mrb[0].mxu0
    %v3462 = vadd.f32 0.0, %v3461
    %v3463 = vpop.f32.mrb[0].mxu0
    %v3464 = vpop.f32.mrb[0].mxu0
    %v3465 = vadd.f32 0.0, %v3464
    %v3466 = vpop.f32.mrb[0].mxu0
    %3467 = vmatprep.mubr.bf16.mxu0 0
    %3468 = vmatmul.mubr.bf16.gmra.mrb[0].mxu0 %v3417
    %v3469 = vpop.f32.mrb[0].mxu0
    %v3470 = vadd.f32 0.0, %v3469
    %v3471 = vpop.f32.mrb[0].mxu0
    %v3472 = vpop.f32.mrb[0].mxu0
    %v3473 = vadd.f32 0.0, %v3472
    %v3474 = vpop.f32.mrb[0].mxu0
    %3475 = vdwg.mxu0
    %3482 = vrot.lane.b32.xlu0 %v3454, 48
    %v3483 = vpop.permute.xlu0 %3482
    %3484 = vrot.lane.b32.xlu0 %v3457, 48
    %v3485 = vpop.permute.xlu0 %3484
    %3486 = vrot.lane.b32.xlu0 %v3462, 48
    %v3487 = vpop.permute.xlu0 %3486
    %3488 = vrot.lane.b32.xlu0 %v3465, 48
    %v3489 = vpop.permute.xlu0 %3488
    %3490 = vrot.lane.b32.xlu0 %v3470, 48
    %v3491 = vpop.permute.xlu0 %3490
    %3492 = vrot.lane.b32.xlu0 %v3473, 48
    %v3493 = vpop.permute.xlu0 %3492
    %3500 = vst.msk [vmem:[#allocation3] sm:$0xff] %vm1556, %v3483
    %3501 = vst.msk [vmem:[#allocation3 + $0x8] sm:$0xff] %vm1556, %v3485
    %3502 = vst.msk [vmem:[#allocation3 + $0x10] sm:$0xff] %vm1556, %v3487
    %3503 = vst.msk [vmem:[#allocation3 + $0x18] sm:$0xff] %vm1556, %v3489
    %3504 = vst.msk [vmem:[#allocation3 + $0x20] sm:$0xff] %vm1556, %v3491
    %3505 = vst.msk [vmem:[#allocation3 + $0x28] sm:$0xff] %vm1556, %v3493
    %v3506 = vld [vmem:[#allocation3] sm:$0xff]
    %v3507 = vld [vmem:[#allocation3 + $0x8] sm:$0xff]
    %v3508 = vld [vmem:[#allocation3 + $0x10] sm:$0xff]
    %v3509 = vld [vmem:[#allocation3 + $0x18] sm:$0xff]
    %v3510 = vld [vmem:[#allocation3 + $0x20] sm:$0xff]
    %v3511 = vld [vmem:[#allocation3 + $0x28] sm:$0xff]
    %v3512 = vpack.c.bf16 %v3507, %v3506
    %v3513 = vpack.c.bf16 %v3509, %v3508
    %v3514 = vpack.c.bf16 %v3511, %v3510
    %s3515 = scalar_lea.vmem %s10, 32
    %v3516 = vld [vmem:[%s3515] sm:$0xf]
    %v3517 = vld [vmem:[%s3515 + $0x4] sm:$0xf]
    %v3518 = vld [vmem:[%s3515 + $0x8] sm:$0xf]
    %v3519 = vld [vmem:[%s3515 + $0xc] sm:$0xf]
    %v3520 = vld [vmem:[%s3515 + $0x10] sm:$0xf]
    %v3521 = vld [vmem:[%s3515 + $0x14] sm:$0xf]
    %v3522 = vld [vmem:[%s3515 + $0x18] sm:$0xf]
    %v3523 = vld [vmem:[%s3515 + $0x1c] sm:$0xf]
    %s3524 = scalar_lea.vmem %s11, 1
    %v3525 = vld [vmem:[%s3524] sm:$0x1]
    %v3527 = vlaneseq
    %v3528 = vshrl.u32 %v3527, 7
    %v3529 = vsub.s32 0, %v3528
    %v3530 = vrot.slane %v3525, %v3529
    %v3540 = vunpack.c.l.b16 %v3516
    %v3541 = vunpack.c.l.b16 %v3517
    %v3542 = vunpack.c.l.b16 %v3518
    %v3543 = vunpack.c.l.b16 %v3519
    %v3544 = vunpack.c.l.b16 %v3520
    %v3545 = vunpack.c.l.b16 %v3521
    %v3546 = vunpack.c.l.b16 %v3522
    %v3547 = vunpack.c.l.b16 %v3523
    %v3548 = vpack.c.b16 %v3541, %v3540
    %v3549 = vpack.c.b16 %v3543, %v3542
    %v3550 = vpack.c.b16 %v3545, %v3544
    %v3551 = vpack.c.b16 %v3547, %v3546
    %v3557 = vsel %vm198, %v3512, 0
    %v3560 = vsel %vm198, %v3513, 0
    %v3563 = vsel %vm198, %v3514, 0
    %3565 = vmatprep.subr.bf16.mxu0 0
    %3566 = vmatpush1.bf16.msra.mxu0 %v3548
    %3567 = vmatprep.subr.bf16.mxu0 0
    %3568 = vmatpush1.bf16.msra.mxu0 %v3549
    %3569 = vmatprep.subr.bf16.mxu0 0
    %3570 = vmatpush1.bf16.msra.mxu0 %v3550
    %3571 = vmatprep.subr.bf16.mxu0 0
    %3572 = vmatpush1.bf16.msra.mxu0 %v3551
    %3573 = vmatprep.subr.bf16.mxu0 0
    %3574 = vmatpush1.bf16.msra.mxu0 0
    %3575 = vmatprep.subr.bf16.mxu0 0
    %3576 = vmatpush1.bf16.msra.mxu0 0
    %3577 = vmatprep.subr.bf16.mxu0 0
    %3578 = vmatpush1.bf16.msra.mxu0 0
    %3579 = vmatprep.subr.bf16.mxu0 0
    %3580 = vmatpush1.bf16.msra.mxu0 0
    %3581 = vmatprep.subr.bf16.mxu0 0
    %3582 = vmatpush1.bf16.msra.mxu0 0
    %3583 = vmatprep.subr.bf16.mxu0 0
    %3584 = vmatpush1.bf16.msra.mxu0 0
    %3585 = vmatprep.subr.bf16.mxu0 0
    %3586 = vmatpush1.bf16.msra.mxu0 0
    %3587 = vmatprep.subr.bf16.mxu0 0
    %3588 = vmatpush1.bf16.msra.mxu0 0
    %3589 = vmatprep.subr.bf16.mxu0 0
    %3590 = vmatpush1.bf16.msra.mxu0 0
    %3591 = vmatprep.subr.bf16.mxu0 0
    %3592 = vmatpush1.bf16.msra.mxu0 0
    %3593 = vmatprep.subr.bf16.mxu0 0
    %3594 = vmatpush1.bf16.msra.mxu0 0
    %3595 = vmatprep.subr.bf16.mxu0 0
    %3596 = vmatpush1.bf16.msra.mxu0 0
    %3597 = vmatprep.mubr.bf16.mxu0 0
    %3598 = vmatmul.mubr.bf16.gmra.mrb[0].mxu0 %v3557
    %v3599 = vpop.f32.mrb[0].mxu0
    %v3600 = vadd.f32 %v3530, %v3599
    %v3601 = vpop.f32.mrb[0].mxu0
    %v3602 = vpop.f32.mrb[0].mxu0
    %v3603 = vadd.f32 %v3530, %v3602
    %v3604 = vpop.f32.mrb[0].mxu0
    %3605 = vmatprep.mubr.bf16.mxu0 0
    %3606 = vmatmul.mubr.bf16.gmra.mrb[0].mxu0 %v3560
    %v3607 = vpop.f32.mrb[0].mxu0
    %v3608 = vadd.f32 %v3530, %v3607
    %v3609 = vpop.f32.mrb[0].mxu0
    %v3610 = vpop.f32.mrb[0].mxu0
    %v3611 = vadd.f32 %v3530, %v3610
    %v3612 = vpop.f32.mrb[0].mxu0
    %3613 = vmatprep.mubr.bf16.mxu0 0
    %3614 = vmatmul.mubr.bf16.gmra.mrb[0].mxu0 %v3563
    %v3615 = vpop.f32.mrb[0].mxu0
    %v3616 = vadd.f32 %v3530, %v3615
    %v3617 = vpop.f32.mrb[0].mxu0
    %v3618 = vpop.f32.mrb[0].mxu0
    %v3619 = vadd.f32 %v3530, %v3618
    %v3620 = vpop.f32.mrb[0].mxu0
    %3621 = vdwg.mxu0
    %v3622 = vadd.f32 %v2228, %v3600
    %v3623 = vadd.f32 %v2229, %v3603
    %v3624 = vadd.f32 %v2230, %v3608
    %v3625 = vadd.f32 %v2231, %v3611
    %v3626 = vadd.f32 %v2232, %v3616
    %v3627 = vadd.f32 %v2233, %v3619
    %s3628 = scalar_lea.vmem %s12, 1
    %v3629 = vld [vmem:[%s3628] sm:$0x1]
    %s3630 = scalar_lea.vmem %s13, 1
    %v3631 = vld [vmem:[%s3630] sm:$0x1]
    %v3632 = vsel %vm198, %v3622, 0.0
    %3633 = vadd.xlane.f32.xlu0 %v3632
    %v3634 = vpop.xlane.xlu0 %3633
    %v3635 = vsel %vm198, %v3623, 0.0
    %3636 = vadd.xlane.f32.xlu0 %v3635
    %v3637 = vpop.xlane.xlu0 %3636
    %v3638 = vsel %vm198, %v3624, 0.0
    %3639 = vadd.xlane.f32.xlu0 %v3638
    %v3640 = vpop.xlane.xlu0 %3639
    %v3641 = vsel %vm198, %v3625, 0.0
    %3642 = vadd.xlane.f32.xlu0 %v3641
    %v3643 = vpop.xlane.xlu0 %3642
    %v3644 = vsel %vm198, %v3626, 0.0
    %3645 = vadd.xlane.f32.xlu0 %v3644
    %v3646 = vpop.xlane.xlu0 %3645
    %v3647 = vsel %vm198, %v3627, 0.0
    %3648 = vadd.xlane.f32.xlu0 %v3647
    %v3649 = vpop.xlane.xlu0 %3648
    %v3650 = vmul.f32 %v3634, %v309
    %v3651 = vmul.f32 %v3637, %v309
    %v3652 = vmul.f32 %v3640, %v309
    %v3653 = vmul.f32 %v3643, %v309
    %v3654 = vmul.f32 %v3646, %v309
    %v3655 = vmul.f32 %v3649, %v309
    %v3656 = vsub.f32 %v3622, %v3650
    %v3657 = vsub.f32 %v3623, %v3651
    %v3658 = vsub.f32 %v3624, %v3652
    %v3659 = vsub.f32 %v3625, %v3653
    %v3660 = vsub.f32 %v3626, %v3654
    %v3661 = vsub.f32 %v3627, %v3655
    %v3662 = vmul.f32 %v3656, %v3656
    %v3663 = vmul.f32 %v3657, %v3657
    %v3664 = vmul.f32 %v3658, %v3658
    %v3665 = vmul.f32 %v3659, %v3659
    %v3666 = vmul.f32 %v3660, %v3660
    %v3667 = vmul.f32 %v3661, %v3661
    %v3668 = vsel %vm198, %v3662, 0.0
    %3669 = vadd.xlane.f32.xlu0 %v3668
    %v3670 = vpop.xlane.xlu0 %3669
    %v3671 = vsel %vm198, %v3663, 0.0
    %3672 = vadd.xlane.f32.xlu0 %v3671
    %v3673 = vpop.xlane.xlu0 %3672
    %v3674 = vsel %vm198, %v3664, 0.0
    %3675 = vadd.xlane.f32.xlu0 %v3674
    %v3676 = vpop.xlane.xlu0 %3675
    %v3677 = vsel %vm198, %v3665, 0.0
    %3678 = vadd.xlane.f32.xlu0 %v3677
    %v3679 = vpop.xlane.xlu0 %3678
    %v3680 = vsel %vm198, %v3666, 0.0
    %3681 = vadd.xlane.f32.xlu0 %v3680
    %v3682 = vpop.xlane.xlu0 %3681
    %v3683 = vsel %vm198, %v3667, 0.0
    %3684 = vadd.xlane.f32.xlu0 %v3683
    %v3685 = vpop.xlane.xlu0 %3684
    %v3686 = vmul.f32 %v3670, %v309
    %v3687 = vmul.f32 %v3673, %v309
    %v3688 = vmul.f32 %v3676, %v309
    %v3689 = vmul.f32 %v3679, %v309
    %v3690 = vmul.f32 %v3682, %v309
    %v3691 = vmul.f32 %v3685, %v309
    %v3692 = vadd.f32 %v3686, 1e-06
    %v3693 = vadd.f32 %v3687, 1e-06
    %v3694 = vadd.f32 %v3688, 1e-06
    %v3695 = vadd.f32 %v3689, 1e-06
    %v3696 = vadd.f32 %v3690, 1e-06
    %v3697 = vadd.f32 %v3691, 1e-06
    %v3698 = vrsqrt.pop %v3692
    %v3699 = vrsqrt.pop %v3693
    %v3700 = vrsqrt.pop %v3694
    %v3701 = vrsqrt.pop %v3695
    %v3702 = vrsqrt.pop %v3696
    %v3703 = vrsqrt.pop %v3697
    %v3704 = vmul.f32 %v3656, %v3698
    %v3705 = vmul.f32 %v3657, %v3699
    %v3706 = vmul.f32 %v3658, %v3700
    %v3707 = vmul.f32 %v3659, %v3701
    %v3708 = vmul.f32 %v3660, %v3702
    %v3709 = vmul.f32 %v3661, %v3703
    %v3711 = vlaneseq
    %v3712 = vshrl.u32 %v3711, 7
    %v3713 = vsub.s32 0, %v3712
    %v3714 = vrot.slane %v3629, %v3713
    %v3716 = vmul.f32 %v3704, %v3714
    %v3717 = vmul.f32 %v3705, %v3714
    %v3718 = vmul.f32 %v3706, %v3714
    %v3719 = vmul.f32 %v3707, %v3714
    %v3720 = vmul.f32 %v3708, %v3714
    %v3721 = vmul.f32 %v3709, %v3714
    %v3723 = vlaneseq
    %v3724 = vshrl.u32 %v3723, 7
    %v3725 = vsub.s32 0, %v3724
    %v3726 = vrot.slane %v3631, %v3725
    %v3728 = vadd.f32 %v3716, %v3726
    %v3729 = vadd.f32 %v3717, %v3726
    %v3730 = vadd.f32 %v3718, %v3726
    %v3731 = vadd.f32 %v3719, %v3726
    %v3732 = vadd.f32 %v3720, %v3726
    %v3733 = vadd.f32 %v3721, %v3726
    %v3734 = vpack.c.bf16 %v3729, %v3728
    %v3735 = vpack.c.bf16 %v3731, %v3730
    %v3736 = vpack.c.bf16 %v3733, %v3732
    %s3737 = scalar_lea.vmem %s14, 64
    %v3738 = vld [vmem:[%s3737] sm:$0xff]
    %v3739 = vld [vmem:[%s3737 + $0x8] sm:$0xff]
    %v3740 = vld [vmem:[%s3737 + $0x10] sm:$0xff]
    %v3741 = vld [vmem:[%s3737 + $0x18] sm:$0xff]
    %v3742 = vld [vmem:[%s3737 + $0x20] sm:$0xff]
    %v3743 = vld [vmem:[%s3737 + $0x28] sm:$0xff]
    %v3744 = vld [vmem:[%s3737 + $0x30] sm:$0xff]
    %v3745 = vld [vmem:[%s3737 + $0x38] sm:$0xff]
    %s3746 = scalar_lea.vmem %s15, 2
    %v3747 = vld [vmem:[%s3746] sm:$0x3]
    %v3749 = vlaneseq
    %v3750 = vshrl.u32 %v3749, 7
    %v3751 = vsub.s32 0, %v3750
    %v3752 = vrot.slane %v3747, %v3751
    %v3753 = vlaneseq
    %v3754 = vshrl.u32 %v3753, 7
    %v3755 = vsub.s32 1, %v3754
    %v3756 = vrot.slane %v3747, %v3755
    %v3767 = vunpack.c.l.b16 %v3738
    %v3768 = vunpack.c.h.b16 %v3738
    %v3769 = vunpack.c.l.b16 %v3739
    %v3770 = vunpack.c.h.b16 %v3739
    %v3771 = vunpack.c.l.b16 %v3740
    %v3772 = vunpack.c.h.b16 %v3740
    %v3773 = vunpack.c.l.b16 %v3741
    %v3774 = vunpack.c.h.b16 %v3741
    %v3775 = vunpack.c.l.b16 %v3742
    %v3776 = vunpack.c.h.b16 %v3742
    %v3777 = vunpack.c.l.b16 %v3743
    %v3778 = vunpack.c.h.b16 %v3743
    %v3779 = vunpack.c.l.b16 %v3744
    %v3780 = vunpack.c.h.b16 %v3744
    %v3781 = vunpack.c.l.b16 %v3745
    %v3782 = vunpack.c.h.b16 %v3745
    %v3783 = vpack.c.b16 %v3769, %v3767
    %v3784 = vpack.c.b16 %v3770, %v3768
    %v3785 = vpack.c.b16 %v3773, %v3771
    %v3786 = vpack.c.b16 %v3774, %v3772
    %v3787 = vpack.c.b16 %v3777, %v3775
    %v3788 = vpack.c.b16 %v3778, %v3776
    %v3789 = vpack.c.b16 %v3781, %v3779
    %v3790 = vpack.c.b16 %v3782, %v3780
    %v3800 = vsel %vm198, %v3734, 0
    %v3803 = vsel %vm198, %v3735, 0
    %v3806 = vsel %vm198, %v3736, 0
    %3808 = vmatprep.subr.bf16.mxu0 %v3784
    %3809 = vmatpush1.bf16.msra.mxu0 %v3783
    %3810 = vmatprep.subr.bf16.mxu0 %v3786
    %3811 = vmatpush1.bf16.msra.mxu0 %v3785
    %3812 = vmatprep.subr.bf16.mxu0 %v3788
    %3813 = vmatpush1.bf16.msra.mxu0 %v3787
    %3814 = vmatprep.subr.bf16.mxu0 %v3790
    %3815 = vmatpush1.bf16.msra.mxu0 %v3789
    %3816 = vmatprep.subr.bf16.mxu0 0
    %3817 = vmatpush1.bf16.msra.mxu0 0
    %3818 = vmatprep.subr.bf16.mxu0 0
    %3819 = vmatpush1.bf16.msra.mxu0 0
    %3820 = vmatprep.subr.bf16.mxu0 0
    %3821 = vmatpush1.bf16.msra.mxu0 0
    %3822 = vmatprep.subr.bf16.mxu0 0
    %3823 = vmatpush1.bf16.msra.mxu0 0
    %3824 = vmatprep.subr.bf16.mxu0 0
    %3825 = vmatpush1.bf16.msra.mxu0 0
    %3826 = vmatprep.subr.bf16.mxu0 0
    %3827 = vmatpush1.bf16.msra.mxu0 0
    %3828 = vmatprep.subr.bf16.mxu0 0
    %3829 = vmatpush1.bf16.msra.mxu0 0
    %3830 = vmatprep.subr.bf16.mxu0 0
    %3831 = vmatpush1.bf16.msra.mxu0 0
    %3832 = vmatprep.subr.bf16.mxu0 0
    %3833 = vmatpush1.bf16.msra.mxu0 0
    %3834 = vmatprep.subr.bf16.mxu0 0
    %3835 = vmatpush1.bf16.msra.mxu0 0
    %3836 = vmatprep.subr.bf16.mxu0 0
    %3837 = vmatpush1.bf16.msra.mxu0 0
    %3838 = vmatprep.subr.bf16.mxu0 0
    %3839 = vmatpush1.bf16.msra.mxu0 0
    %3840 = vmatprep.mubr.bf16.mxu0 0
    %3841 = vmatmul.mubr.bf16.gmra.mrb[0].mxu0 %v3800
    %v3842 = vpop.f32.mrb[0].mxu0
    %v3843 = vadd.f32 %v3752, %v3842
    %v3844 = vpop.f32.mrb[0].mxu0
    %v3845 = vadd.f32 %v3756, %v3844
    %v3846 = vpop.f32.mrb[0].mxu0
    %v3847 = vadd.f32 %v3752, %v3846
    %v3848 = vpop.f32.mrb[0].mxu0
    %v3849 = vadd.f32 %v3756, %v3848
    %3850 = vmatprep.mubr.bf16.mxu0 0
    %3851 = vmatmul.mubr.bf16.gmra.mrb[0].mxu0 %v3803
    %v3852 = vpop.f32.mrb[0].mxu0
    %v3853 = vadd.f32 %v3752, %v3852
    %v3854 = vpop.f32.mrb[0].mxu0
    %v3855 = vadd.f32 %v3756, %v3854
    %v3856 = vpop.f32.mrb[0].mxu0
    %v3857 = vadd.f32 %v3752, %v3856
    %v3858 = vpop.f32.mrb[0].mxu0
    %v3859 = vadd.f32 %v3756, %v3858
    %3860 = vmatprep.mubr.bf16.mxu0 0
    %3861 = vmatmul.mubr.bf16.gmra.mrb[0].mxu0 %v3806
    %v3862 = vpop.f32.mrb[0].mxu0
    %v3863 = vadd.f32 %v3752, %v3862
    %v3864 = vpop.f32.mrb[0].mxu0
    %v3865 = vadd.f32 %v3756, %v3864
    %v3866 = vpop.f32.mrb[0].mxu0
    %v3867 = vadd.f32 %v3752, %v3866
    %v3868 = vpop.f32.mrb[0].mxu0
    %v3869 = vadd.f32 %v3756, %v3868
    %3870 = vdwg.mxu0
    %v3871 = vmul.f32 %v3843, %v3843
    %v3872 = vmul.f32 %v3845, %v3845
    %v3873 = vmul.f32 %v3847, %v3847
    %v3874 = vmul.f32 %v3849, %v3849
    %v3875 = vmul.f32 %v3853, %v3853
    %v3876 = vmul.f32 %v3855, %v3855
    %v3877 = vmul.f32 %v3857, %v3857
    %v3878 = vmul.f32 %v3859, %v3859
    %v3879 = vmul.f32 %v3863, %v3863
    %v3880 = vmul.f32 %v3865, %v3865
    %v3881 = vmul.f32 %v3867, %v3867
    %v3882 = vmul.f32 %v3869, %v3869
    %v3883 = vmul.f32 %v3843, %v3871
    %v3884 = vmul.f32 %v3845, %v3872
    %v3885 = vmul.f32 %v3847, %v3873
    %v3886 = vmul.f32 %v3849, %v3874
    %v3887 = vmul.f32 %v3853, %v3875
    %v3888 = vmul.f32 %v3855, %v3876
    %v3889 = vmul.f32 %v3857, %v3877
    %v3890 = vmul.f32 %v3859, %v3878
    %v3891 = vmul.f32 %v3863, %v3879
    %v3892 = vmul.f32 %v3865, %v3880
    %v3893 = vmul.f32 %v3867, %v3881
    %v3894 = vmul.f32 %v3869, %v3882
    %v3895 = vmul.f32 %v3883, 0.044715
    %v3896 = vmul.f32 %v3884, 0.044715
    %v3897 = vmul.f32 %v3885, 0.044715
    %v3898 = vmul.f32 %v3886, 0.044715
    %v3899 = vmul.f32 %v3887, 0.044715
    %v3900 = vmul.f32 %v3888, 0.044715
    %v3901 = vmul.f32 %v3889, 0.044715
    %v3902 = vmul.f32 %v3890, 0.044715
    %v3903 = vmul.f32 %v3891, 0.044715
    %v3904 = vmul.f32 %v3892, 0.044715
    %v3905 = vmul.f32 %v3893, 0.044715
    %v3906 = vmul.f32 %v3894, 0.044715
    %v3907 = vadd.f32 %v3843, %v3895
    %v3908 = vadd.f32 %v3845, %v3896
    %v3909 = vadd.f32 %v3847, %v3897
    %v3910 = vadd.f32 %v3849, %v3898
    %v3911 = vadd.f32 %v3853, %v3899
    %v3912 = vadd.f32 %v3855, %v3900
    %v3913 = vadd.f32 %v3857, %v3901
    %v3914 = vadd.f32 %v3859, %v3902
    %v3915 = vadd.f32 %v3863, %v3903
    %v3916 = vadd.f32 %v3865, %v3904
    %v3917 = vadd.f32 %v3867, %v3905
    %v3918 = vadd.f32 %v3869, %v3906
    %v3919 = vmul.f32 %v3907, 0.7978846
    %v3920 = vmul.f32 %v3908, 0.7978846
    %v3921 = vmul.f32 %v3909, 0.7978846
    %v3922 = vmul.f32 %v3910, 0.7978846
    %v3923 = vmul.f32 %v3911, 0.7978846
    %v3924 = vmul.f32 %v3912, 0.7978846
    %v3925 = vmul.f32 %v3913, 0.7978846
    %v3926 = vmul.f32 %v3914, 0.7978846
    %v3927 = vmul.f32 %v3915, 0.7978846
    %v3928 = vmul.f32 %v3916, 0.7978846
    %v3929 = vmul.f32 %v3917, 0.7978846
    %v3930 = vmul.f32 %v3918, 0.7978846
    %v3931 = vtanh.pop %v3919
    %v3932 = vtanh.pop %v3920
    %v3933 = vtanh.pop %v3921
    %v3934 = vtanh.pop %v3922
    %v3935 = vtanh.pop %v3923
    %v3936 = vtanh.pop %v3924
    %v3937 = vtanh.pop %v3925
    %v3938 = vtanh.pop %v3926
    %v3939 = vtanh.pop %v3927
    %v3940 = vtanh.pop %v3928
    %v3941 = vtanh.pop %v3929
    %v3942 = vtanh.pop %v3930
    %v3943 = vadd.f32 %v3931, 1.0
    %v3944 = vadd.f32 %v3932, 1.0
    %v3945 = vadd.f32 %v3933, 1.0
    %v3946 = vadd.f32 %v3934, 1.0
    %v3947 = vadd.f32 %v3935, 1.0
    %v3948 = vadd.f32 %v3936, 1.0
    %v3949 = vadd.f32 %v3937, 1.0
    %v3950 = vadd.f32 %v3938, 1.0
    %v3951 = vadd.f32 %v3939, 1.0
    %v3952 = vadd.f32 %v3940, 1.0
    %v3953 = vadd.f32 %v3941, 1.0
    %v3954 = vadd.f32 %v3942, 1.0
    %v3955 = vmul.f32 %v3943, 0.5
    %v3956 = vmul.f32 %v3944, 0.5
    %v3957 = vmul.f32 %v3945, 0.5
    %v3958 = vmul.f32 %v3946, 0.5
    %v3959 = vmul.f32 %v3947, 0.5
    %v3960 = vmul.f32 %v3948, 0.5
    %v3961 = vmul.f32 %v3949, 0.5
    %v3962 = vmul.f32 %v3950, 0.5
    %v3963 = vmul.f32 %v3951, 0.5
    %v3964 = vmul.f32 %v3952, 0.5
    %v3965 = vmul.f32 %v3953, 0.5
    %v3966 = vmul.f32 %v3954, 0.5
    %v3967 = vmul.f32 %v3843, %v3955
    %v3968 = vmul.f32 %v3845, %v3956
    %v3969 = vmul.f32 %v3847, %v3957
    %v3970 = vmul.f32 %v3849, %v3958
    %v3971 = vmul.f32 %v3853, %v3959
    %v3972 = vmul.f32 %v3855, %v3960
    %v3973 = vmul.f32 %v3857, %v3961
    %v3974 = vmul.f32 %v3859, %v3962
    %v3975 = vmul.f32 %v3863, %v3963
    %v3976 = vmul.f32 %v3865, %v3964
    %v3977 = vmul.f32 %v3867, %v3965
    %v3978 = vmul.f32 %v3869, %v3966
    %v3979 = vpack.c.bf16 %v3969, %v3967
    %v3980 = vpack.c.bf16 %v3970, %v3968
    %v3981 = vpack.c.bf16 %v3973, %v3971
    %v3982 = vpack.c.bf16 %v3974, %v3972
    %v3983 = vpack.c.bf16 %v3977, %v3975
    %v3984 = vpack.c.bf16 %v3978, %v3976
    %s3985 = scalar_lea.vmem %s16, 128
    %v3986 = vld [vmem:[%s3985] sm:$0xf]
    %v3987 = vld [vmem:[%s3985 + $0x4] sm:$0xf]
    %v3988 = vld [vmem:[%s3985 + $0x8] sm:$0xf]
    %v3989 = vld [vmem:[%s3985 + $0xc] sm:$0xf]
    %v3990 = vld [vmem:[%s3985 + $0x10] sm:$0xf]
    %v3991 = vld [vmem:[%s3985 + $0x14] sm:$0xf]
    %v3992 = vld [vmem:[%s3985 + $0x18] sm:$0xf]
    %v3993 = vld [vmem:[%s3985 + $0x1c] sm:$0xf]
    %v3994 = vld [vmem:[%s3985 + $0x20] sm:$0xf]
    %v3995 = vld [vmem:[%s3985 + $0x24] sm:$0xf]
    %v3996 = vld [vmem:[%s3985 + $0x28] sm:$0xf]
    %v3997 = vld [vmem:[%s3985 + $0x2c] sm:$0xf]
    %v3998 = vld [vmem:[%s3985 + $0x30] sm:$0xf]
    %v3999 = vld [vmem:[%s3985 + $0x34] sm:$0xf]
    %v4000 = vld [vmem:[%s3985 + $0x38] sm:$0xf]
    %v4001 = vld [vmem:[%s3985 + $0x3c] sm:$0xf]
    %v4002 = vld [vmem:[%s3985 + $0x40] sm:$0xf]
    %v4003 = vld [vmem:[%s3985 + $0x44] sm:$0xf]
    %v4004 = vld [vmem:[%s3985 + $0x48] sm:$0xf]
    %v4005 = vld [vmem:[%s3985 + $0x4c] sm:$0xf]
    %v4006 = vld [vmem:[%s3985 + $0x50] sm:$0xf]
    %v4007 = vld [vmem:[%s3985 + $0x54] sm:$0xf]
    %v4008 = vld [vmem:[%s3985 + $0x58] sm:$0xf]
    %v4009 = vld [vmem:[%s3985 + $0x5c] sm:$0xf]
    %v4010 = vld [vmem:[%s3985 + $0x60] sm:$0xf]
    %v4011 = vld [vmem:[%s3985 + $0x64] sm:$0xf]
    %v4012 = vld [vmem:[%s3985 + $0x68] sm:$0xf]
    %v4013 = vld [vmem:[%s3985 + $0x6c] sm:$0xf]
    %v4014 = vld [vmem:[%s3985 + $0x70] sm:$0xf]
    %v4015 = vld [vmem:[%s3985 + $0x74] sm:$0xf]
    %v4016 = vld [vmem:[%s3985 + $0x78] sm:$0xf]
    %v4017 = vld [vmem:[%s3985 + $0x7c] sm:$0xf]
    %s4018 = scalar_lea.vmem %s17, 1
    %v4019 = vld [vmem:[%s4018] sm:$0x1]
    %v4021 = vlaneseq
    %v4022 = vshrl.u32 %v4021, 7
    %v4023 = vsub.s32 0, %v4022
    %v4024 = vrot.slane %v4019, %v4023
    %v4058 = vunpack.c.l.b16 %v3986
    %v4059 = vunpack.c.l.b16 %v3987
    %v4060 = vunpack.c.l.b16 %v3988
    %v4061 = vunpack.c.l.b16 %v3989
    %v4062 = vunpack.c.l.b16 %v3990
    %v4063 = vunpack.c.l.b16 %v3991
    %v4064 = vunpack.c.l.b16 %v3992
    %v4065 = vunpack.c.l.b16 %v3993
    %v4066 = vunpack.c.l.b16 %v3994
    %v4067 = vunpack.c.l.b16 %v3995
    %v4068 = vunpack.c.l.b16 %v3996
    %v4069 = vunpack.c.l.b16 %v3997
    %v4070 = vunpack.c.l.b16 %v3998
    %v4071 = vunpack.c.l.b16 %v3999
    %v4072 = vunpack.c.l.b16 %v4000
    %v4073 = vunpack.c.l.b16 %v4001
    %v4074 = vunpack.c.l.b16 %v4002
    %v4075 = vunpack.c.l.b16 %v4003
    %v4076 = vunpack.c.l.b16 %v4004
    %v4077 = vunpack.c.l.b16 %v4005
    %v4078 = vunpack.c.l.b16 %v4006
    %v4079 = vunpack.c.l.b16 %v4007
    %v4080 = vunpack.c.l.b16 %v4008
    %v4081 = vunpack.c.l.b16 %v4009
    %v4082 = vunpack.c.l.b16 %v4010
    %v4083 = vunpack.c.l.b16 %v4011
    %v4084 = vunpack.c.l.b16 %v4012
    %v4085 = vunpack.c.l.b16 %v4013
    %v4086 = vunpack.c.l.b16 %v4014
    %v4087 = vunpack.c.l.b16 %v4015
    %v4088 = vunpack.c.l.b16 %v4016
    %v4089 = vunpack.c.l.b16 %v4017
    %v4090 = vpack.c.b16 %v4059, %v4058
    %v4091 = vpack.c.b16 %v4061, %v4060
    %v4092 = vpack.c.b16 %v4063, %v4062
    %v4093 = vpack.c.b16 %v4065, %v4064
    %v4094 = vpack.c.b16 %v4067, %v4066
    %v4095 = vpack.c.b16 %v4069, %v4068
    %v4096 = vpack.c.b16 %v4071, %v4070
    %v4097 = vpack.c.b16 %v4073, %v4072
    %v4098 = vpack.c.b16 %v4075, %v4074
    %v4099 = vpack.c.b16 %v4077, %v4076
    %v4100 = vpack.c.b16 %v4079, %v4078
    %v4101 = vpack.c.b16 %v4081, %v4080
    %v4102 = vpack.c.b16 %v4083, %v4082
    %v4103 = vpack.c.b16 %v4085, %v4084
    %v4104 = vpack.c.b16 %v4087, %v4086
    %v4105 = vpack.c.b16 %v4089, %v4088
    %4122 = vmatprep.subr.bf16.mxu0 0
    %4123 = vmatpush1.bf16.msra.mxu0 %v4090
    %4124 = vmatprep.subr.bf16.mxu0 0
    %4125 = vmatpush1.bf16.msra.mxu0 %v4091
    %4126 = vmatprep.subr.bf16.mxu0 0
    %4127 = vmatpush1.bf16.msra.mxu0 %v4092
    %4128 = vmatprep.subr.bf16.mxu0 0
    %4129 = vmatpush1.bf16.msra.mxu0 %v4093
    %4130 = vmatprep.subr.bf16.mxu0 0
    %4131 = vmatpush1.bf16.msra.mxu0 %v4094
    %4132 = vmatprep.subr.bf16.mxu0 0
    %4133 = vmatpush1.bf16.msra.mxu0 %v4095
    %4134 = vmatprep.subr.bf16.mxu0 0
    %4135 = vmatpush1.bf16.msra.mxu0 %v4096
    %4136 = vmatprep.subr.bf16.mxu0 0
    %4137 = vmatpush1.bf16.msra.mxu0 %v4097
    %4138 = vmatprep.subr.bf16.mxu0 0
    %4139 = vmatpush1.bf16.msra.mxu0 %v4098
    %4140 = vmatprep.subr.bf16.mxu0 0
    %4141 = vmatpush1.bf16.msra.mxu0 %v4099
    %4142 = vmatprep.subr.bf16.mxu0 0
    %4143 = vmatpush1.bf16.msra.mxu0 %v4100
    %4144 = vmatprep.subr.bf16.mxu0 0
    %4145 = vmatpush1.bf16.msra.mxu0 %v4101
    %4146 = vmatprep.subr.bf16.mxu0 0
    %4147 = vmatpush1.bf16.msra.mxu0 %v4102
    %4148 = vmatprep.subr.bf16.mxu0 0
    %4149 = vmatpush1.bf16.msra.mxu0 %v4103
    %4150 = vmatprep.subr.bf16.mxu0 0
    %4151 = vmatpush1.bf16.msra.mxu0 %v4104
    %4152 = vmatprep.subr.bf16.mxu0 0
    %4153 = vmatpush1.bf16.msra.mxu0 %v4105
    %4154 = vmatprep.mubr.bf16.mxu0 %v3980
    %4155 = vmatmul.mubr.bf16.gmra.mrb[0].mxu0 %v3979
    %v4156 = vpop.f32.mrb[0].mxu0
    %v4157 = vadd.f32 %v4024, %v4156
    %v4158 = vpop.f32.mrb[0].mxu0
    %v4159 = vpop.f32.mrb[0].mxu0
    %v4160 = vadd.f32 %v4024, %v4159
    %v4161 = vpop.f32.mrb[0].mxu0
    %4162 = vmatprep.mubr.bf16.mxu0 %v3982
    %4163 = vmatmul.mubr.bf16.gmra.mrb[0].mxu0 %v3981
    %v4164 = vpop.f32.mrb[0].mxu0
    %v4165 = vadd.f32 %v4024, %v4164
    %v4166 = vpop.f32.mrb[0].mxu0
    %v4167 = vpop.f32.mrb[0].mxu0
    %v4168 = vadd.f32 %v4024, %v4167
    %v4169 = vpop.f32.mrb[0].mxu0
    %4170 = vmatprep.mubr.bf16.mxu0 %v3984
    %4171 = vmatmul.mubr.bf16.gmra.mrb[0].mxu0 %v3983
    %v4172 = vpop.f32.mrb[0].mxu0
    %v4173 = vadd.f32 %v4024, %v4172
    %v4174 = vpop.f32.mrb[0].mxu0
    %v4175 = vpop.f32.mrb[0].mxu0
    %v4176 = vadd.f32 %v4024, %v4175
    %v4177 = vpop.f32.mrb[0].mxu0
    %4178 = vdwg.mxu0
    %v4179 = vadd.f32 %v3622, %v4157
    %v4180 = vadd.f32 %v3623, %v4160
    %v4181 = vadd.f32 %v3624, %v4165
    %v4182 = vadd.f32 %v3625, %v4168
    %v4183 = vadd.f32 %v3626, %v4173
    %v4184 = vadd.f32 %v3627, %v4176
    %v4185 = vld [vmem:[%s18] sm:$0x1]
    %v4186 = vld [vmem:[%s19] sm:$0x1]
    %v4187 = vsel %vm198, %v4179, 0.0
    %4188 = vadd.xlane.f32.xlu0 %v4187
    %v4189 = vpop.xlane.xlu0 %4188
    %v4190 = vsel %vm198, %v4180, 0.0
    %4191 = vadd.xlane.f32.xlu0 %v4190
    %v4192 = vpop.xlane.xlu0 %4191
    %v4193 = vsel %vm198, %v4181, 0.0
    %4194 = vadd.xlane.f32.xlu0 %v4193
    %v4195 = vpop.xlane.xlu0 %4194
    %v4196 = vsel %vm198, %v4182, 0.0
    %4197 = vadd.xlane.f32.xlu0 %v4196
    %v4198 = vpop.xlane.xlu0 %4197
    %v4199 = vsel %vm198, %v4183, 0.0
    %4200 = vadd.xlane.f32.xlu0 %v4199
    %v4201 = vpop.xlane.xlu0 %4200
    %v4202 = vsel %vm198, %v4184, 0.0
    %4203 = vadd.xlane.f32.xlu0 %v4202
    %v4204 = vpop.xlane.xlu0 %4203
    %v4205 = vmul.f32 %v4189, %v309
    %v4206 = vmul.f32 %v4192, %v309
    %v4207 = vmul.f32 %v4195, %v309
    %v4208 = vmul.f32 %v4198, %v309
    %v4209 = vmul.f32 %v4201, %v309
    %v4210 = vmul.f32 %v4204, %v309
    %v4211 = vsub.f32 %v4179, %v4205
    %v4212 = vsub.f32 %v4180, %v4206
    %v4213 = vsub.f32 %v4181, %v4207
    %v4214 = vsub.f32 %v4182, %v4208
    %v4215 = vsub.f32 %v4183, %v4209
    %v4216 = vsub.f32 %v4184, %v4210
    %v4217 = vmul.f32 %v4211, %v4211
    %v4218 = vmul.f32 %v4212, %v4212
    %v4219 = vmul.f32 %v4213, %v4213
    %v4220 = vmul.f32 %v4214, %v4214
    %v4221 = vmul.f32 %v4215, %v4215
    %v4222 = vmul.f32 %v4216, %v4216
    %v4223 = vsel %vm198, %v4217, 0.0
    %4224 = vadd.xlane.f32.xlu0 %v4223
    %v4225 = vpop.xlane.xlu0 %4224
    %v4226 = vsel %vm198, %v4218, 0.0
    %4227 = vadd.xlane.f32.xlu0 %v4226
    %v4228 = vpop.xlane.xlu0 %4227
    %v4229 = vsel %vm198, %v4219, 0.0
    %4230 = vadd.xlane.f32.xlu0 %v4229
    %v4231 = vpop.xlane.xlu0 %4230
    %v4232 = vsel %vm198, %v4220, 0.0
    %4233 = vadd.xlane.f32.xlu0 %v4232
    %v4234 = vpop.xlane.xlu0 %4233
    %v4235 = vsel %vm198, %v4221, 0.0
    %4236 = vadd.xlane.f32.xlu0 %v4235
    %v4237 = vpop.xlane.xlu0 %4236
    %v4238 = vsel %vm198, %v4222, 0.0
    %4239 = vadd.xlane.f32.xlu0 %v4238
    %v4240 = vpop.xlane.xlu0 %4239
    %v4241 = vmul.f32 %v4225, %v309
    %v4242 = vmul.f32 %v4228, %v309
    %v4243 = vmul.f32 %v4231, %v309
    %v4244 = vmul.f32 %v4234, %v309
    %v4245 = vmul.f32 %v4237, %v309
    %v4246 = vmul.f32 %v4240, %v309
    %v4247 = vadd.f32 %v4241, 1e-06
    %v4248 = vadd.f32 %v4242, 1e-06
    %v4249 = vadd.f32 %v4243, 1e-06
    %v4250 = vadd.f32 %v4244, 1e-06
    %v4251 = vadd.f32 %v4245, 1e-06
    %v4252 = vadd.f32 %v4246, 1e-06
    %v4253 = vrsqrt.pop %v4247
    %v4254 = vrsqrt.pop %v4248
    %v4255 = vrsqrt.pop %v4249
    %v4256 = vrsqrt.pop %v4250
    %v4257 = vrsqrt.pop %v4251
    %v4258 = vrsqrt.pop %v4252
    %v4259 = vmul.f32 %v4211, %v4253
    %v4260 = vmul.f32 %v4212, %v4254
    %v4261 = vmul.f32 %v4213, %v4255
    %v4262 = vmul.f32 %v4214, %v4256
    %v4263 = vmul.f32 %v4215, %v4257
    %v4264 = vmul.f32 %v4216, %v4258
    %v4266 = vlaneseq
    %v4267 = vshrl.u32 %v4266, 7
    %v4268 = vsub.s32 0, %v4267
    %v4269 = vrot.slane %v4185, %v4268
    %v4271 = vmul.f32 %v4259, %v4269
    %v4272 = vmul.f32 %v4260, %v4269
    %v4273 = vmul.f32 %v4261, %v4269
    %v4274 = vmul.f32 %v4262, %v4269
    %v4275 = vmul.f32 %v4263, %v4269
    %v4276 = vmul.f32 %v4264, %v4269
    %v4278 = vlaneseq
    %v4279 = vshrl.u32 %v4278, 7
    %v4280 = vsub.s32 0, %v4279
    %v4281 = vrot.slane %v4186, %v4280
    %v4283 = vadd.f32 %v4271, %v4281
    %v4284 = vadd.f32 %v4272, %v4281
    %v4285 = vadd.f32 %v4273, %v4281
    %v4286 = vadd.f32 %v4274, %v4281
    %v4287 = vadd.f32 %v4275, %v4281
    %v4288 = vadd.f32 %v4276, %v4281
    %v4289 = vpack.c.bf16 %v4284, %v4283
    %v4290 = vpack.c.bf16 %v4286, %v4285
    %v4291 = vpack.c.bf16 %v4288, %v4287
    %v4292 = vld [vmem:[%s20] sm:$0xf]
    %v4293 = vld [vmem:[%s20 + $0x4] sm:$0xf]
    %v4294 = vld [vmem:[%s20 + $0x8] sm:$0xf]
    %v4295 = vld [vmem:[%s20 + $0xc] sm:$0xf]
    %v4296 = vld [vmem:[%s20 + $0x10] sm:$0xf]
    %v4297 = vld [vmem:[%s20 + $0x14] sm:$0xf]
    %v4298 = vld [vmem:[%s20 + $0x18] sm:$0xf]
    %v4299 = vld [vmem:[%s20 + $0x1c] sm:$0xf]
    %v4300 = vld [vmem:[%s21] sm:$0x1]
    %v4302 = vlaneseq
    %v4303 = vshrl.u32 %v4302, 7
    %v4304 = vsub.s32 0, %v4303
    %v4305 = vrot.slane %v4300, %v4304
    %v4315 = vunpack.c.l.b16 %v4292
    %v4316 = vunpack.c.l.b16 %v4293
    %v4317 = vunpack.c.l.b16 %v4294
    %v4318 = vunpack.c.l.b16 %v4295
    %v4319 = vunpack.c.l.b16 %v4296
    %v4320 = vunpack.c.l.b16 %v4297
    %v4321 = vunpack.c.l.b16 %v4298
    %v4322 = vunpack.c.l.b16 %v4299
    %v4323 = vpack.c.b16 %v4316, %v4315
    %v4324 = vpack.c.b16 %v4318, %v4317
    %v4325 = vpack.c.b16 %v4320, %v4319
    %v4326 = vpack.c.b16 %v4322, %v4321
    %v4332 = vsel %vm198, %v4289, 0
    %v4335 = vsel %vm198, %v4290, 0
    %v4338 = vsel %vm198, %v4291, 0
    %4340 = vmatprep.subr.bf16.mxu0 0
    %4341 = vmatpush1.bf16.msra.mxu0 %v4323
    %4342 = vmatprep.subr.bf16.mxu0 0
    %4343 = vmatpush1.bf16.msra.mxu0 %v4324
    %4344 = vmatprep.subr.bf16.mxu0 0
    %4345 = vmatpush1.bf16.msra.mxu0 %v4325
    %4346 = vmatprep.subr.bf16.mxu0 0
    %4347 = vmatpush1.bf16.msra.mxu0 %v4326
    %4348 = vmatprep.subr.bf16.mxu0 0
    %4349 = vmatpush1.bf16.msra.mxu0 0
    %4350 = vmatprep.subr.bf16.mxu0 0
    %4351 = vmatpush1.bf16.msra.mxu0 0
    %4352 = vmatprep.subr.bf16.mxu0 0
    %4353 = vmatpush1.bf16.msra.mxu0 0
    %4354 = vmatprep.subr.bf16.mxu0 0
    %4355 = vmatpush1.bf16.msra.mxu0 0
    %4356 = vmatprep.subr.bf16.mxu0 0
    %4357 = vmatpush1.bf16.msra.mxu0 0
    %4358 = vmatprep.subr.bf16.mxu0 0
    %4359 = vmatpush1.bf16.msra.mxu0 0
    %4360 = vmatprep.subr.bf16.mxu0 0
    %4361 = vmatpush1.bf16.msra.mxu0 0
    %4362 = vmatprep.subr.bf16.mxu0 0
    %4363 = vmatpush1.bf16.msra.mxu0 0
    %4364 = vmatprep.subr.bf16.mxu0 0
    %4365 = vmatpush1.bf16.msra.mxu0 0
    %4366 = vmatprep.subr.bf16.mxu0 0
    %4367 = vmatpush1.bf16.msra.mxu0 0
    %4368 = vmatprep.subr.bf16.mxu0 0
    %4369 = vmatpush1.bf16.msra.mxu0 0
    %4370 = vmatprep.subr.bf16.mxu0 0
    %4371 = vmatpush1.bf16.msra.mxu0 0
    %4372 = vmatprep.mubr.bf16.mxu0 0
    %4373 = vmatmul.mubr.bf16.gmra.mrb[0].mxu0 %v4332
    %v4374 = vpop.f32.mrb[0].mxu0
    %v4375 = vadd.f32 %v4305, %v4374
    %v4376 = vpop.f32.mrb[0].mxu0
    %v4377 = vpop.f32.mrb[0].mxu0
    %v4378 = vpop.f32.mrb[0].mxu0
    %4379 = vmatprep.mubr.bf16.mxu0 0
    %4380 = vmatmul.mubr.bf16.gmra.mrb[0].mxu0 %v4335
    %v4381 = vpop.f32.mrb[0].mxu0
    %v4382 = vpop.f32.mrb[0].mxu0
    %v4383 = vpop.f32.mrb[0].mxu0
    %v4384 = vadd.f32 %v4305, %v4383
    %v4385 = vpop.f32.mrb[0].mxu0
    %4386 = vmatprep.mubr.bf16.mxu0 0
    %4387 = vmatmul.mubr.bf16.gmra.mrb[0].mxu0 %v4338
    %v4388 = vpop.f32.mrb[0].mxu0
    %v4389 = vpop.f32.mrb[0].mxu0
    %v4390 = vpop.f32.mrb[0].mxu0
    %v4391 = vpop.f32.mrb[0].mxu0
    %4392 = vdwg.mxu0
    %vm4393 = vcmask 57344
    %4394 = vst.msk [vmem:[#allocation4] sm:$0x1] %vm4393, %v4375
    %4395 = vst.msk [vmem:[#allocation4 + $0x1] sm:$0x1] %vm4393, %v4384
    // Predicated region
    $region90: #{vit_forward.1} parent=1 // pred_check
      _
    $region91: #{vit_forward.1} parent=1 // pred_check_branch
      %4397 = sbr.rel (0) target = $region93
    $region92: #{vit_forward.1} parent=1 // pred_region
      %s4399 = ssub.s32 32, 32
      %4400 = vsyncadd [#allocation5], %s4399
      %s4402 = sshll.u32 [#allocation4], 4
      %s4403 = int_to_ptr.vmem [resolvable:$true] %s4402
      %4405 = dma.vmem_to_hbm [thread:$0]  %s4403, 32, %s22, [#allocation5]
    $region93: #{vit_forward.1} parent=1 // pred_fallthru
      _
    // Predicated region
    $region94: #{vit_forward.1} parent=1 // pred_check
      _
    $region95: #{vit_forward.1} parent=1 // pred_check_branch
      %4407 = sbr.rel (0) target = $region97
    $region96: #{vit_forward.1} parent=1 // pred_region
      %4408 = dma.done [#allocation5], 32
    $region97: #{vit_forward.1} parent=1 // pred_fallthru
      _
    %4409 = vsyncpa [#allocation5], 1

</llo_original>
